<compile_context>
chip_gen: v7x
topology: tpu7x:2x2x1
jax: 0.10.0
libtpu: 0.0.40
codegen_flags: <defaults>
</compile_context>

<pallas_src>
import functools

import numpy as np
import jax
import jax.numpy as jnp
from jax.experimental import pallas as pl
from jax.experimental.pallas import tpu as pltpu
from jax.scipy.special import gammaln

LN10 = float(np.log(10.0))
FLUX_CONST = 3.2143882024295685e-07


# ----------------------------- Pallas kernel -------------------------------

def _emline_kernel(n_hidden_layers, n_filters, *refs):
    theta_ref = refs[0]
    layer_refs = refs[1:1 + 2 * n_hidden_layers]
    wneg_ref, bneg_ref, gn_ref, r_ref, o_ref = refs[1 + 2 * n_hidden_layers:]

    theta = theta_ref[...]                                   # (TB, P)
    one_plus_z = 1.0 + theta[:, -1:]                         # (TB, 1)

    # --- Speculator MLP (standardization folded into layer 0); activation
    #     (gamma + sigmoid(alpha*h)*(1-gamma))*h rewritten exactly as
    #     (c0 + c1*tanh(alpha*h/2))*h -> one EUP op, no divide ---
    x = theta
    for li in range(n_hidden_layers):
        w = layer_refs[2 * li][...]                          # (Hin, Hout)
        lay = layer_refs[2 * li + 1][...]                    # (4, Hout)
        b, half_alpha, c0, c1 = lay[0:1, :], lay[1:2, :], lay[2:3, :], lay[3:4, :]
        h = jnp.dot(x, w, preferred_element_type=jnp.float32) + b
        x = (c0 + c1 * jnp.tanh(half_alpha * h)) * h

    # folded last layer + PCA + log-spectrum scaling + line gather + ln(lam):
    # lamstr = lam * 10**(-0.4*logspec_selected)              (TB, L)
    lamstr = jnp.exp(jnp.dot(x, wneg_ref[...], preferred_element_type=jnp.float32)
                     + bneg_ref[...])
    flux_norm = jnp.exp(LN10 * (9.0 - 0.4 * theta[:, 0:1])) * FLUX_CONST   # (TB, 1)
    scale_bl = (flux_norm * one_plus_z) * lamstr             # flux_norm*lz*strengths, (TB, L)

    # --- generalized-normal bandpass mixture, fully lane-dense (TB, F*C*L) ---
    gn = gn_ref[...]                                         # (4, FCL)
    lam_over_sig, loc_over_sig, beta, namp = gn[0:1], gn[1:2], gn[2:3], gn[3:4]
    a_abs = jnp.maximum(jnp.abs(one_plus_z * lam_over_sig - loc_over_sig), 1e-30)
    powed = jnp.exp(beta * jnp.log(a_abs))                   # |a|**beta (guard via max)
    weighted = namp * jnp.exp(-powed)                        # amps*norm folded into namp

    # per-filter sum over the C mixture components as a 0/1 matmul (idle MXU)
    window = jnp.dot(weighted, r_ref[...],
                     preferred_element_type=jnp.float32)     # (TB, F*L)

    # replicate the per-line scale across filters (exact; tiny lane concat)
    scale_fl = jnp.concatenate([scale_bl] * n_filters, axis=1)   # (TB, F*L)

    o_ref[...] = window * scale_fl                           # lane-dense store


# ------------------------------ JAX wrapper ---------------------------------

def emline_forward(theta, params, *, tile_b=None):
    theta = theta.astype(jnp.float32)
    B, P = theta.shape
    if tile_b is None:
        tile_b = min(B, 256)
        # keep >= 2 grid steps so the "parallel" axis can shard across both
        # TensorCores on v7x / megacore.
        if B == tile_b and B % 2 == 0 and B >= 16:
            tile_b = B // 2
    assert B % tile_b == 0, "batch must be divisible by tile_b"

    n_hidden_layers = len(params['Ws']) - 1
    F, C = params['g_amps'].shape
    L = params['lam_sel'].shape[0]
    FC, FL, FCL = F * C, F * L, F * C * L
    f32 = jnp.float32

    # --- host-side constant folding (exact algebraic rewrites) ---
    inv_scale = 1.0 / params['p_scale']
    shift_over_scale = params['p_shift'] / params['p_scale']

    layer_inputs = []
    for i in range(n_hidden_layers):
        Wi, bi = params['Ws'][i], params['bs'][i]
        if i == 0:
            # fold input standardization into the first layer (exact)
            bi = bi - shift_over_scale @ Wi
            Wi = Wi * inv_scale[:, None]
        gam = params['gammas'][i]
        lay = jnp.stack([bi,
                         0.5 * params['alphas'][i],
                         0.5 * (1.0 + gam),
                         0.5 * (1.0 - gam)]).astype(f32)                     # (4, H_i)
        layer_inputs += [Wi.astype(f32), lay]

    # last layer + PCA scale/shift + log-spectrum scale/shift (+ line gather)
    # + (-0.4*ln10) + ln(lam) folded into one matmul + bias.
    M = (params['pca_scale'][:, None] * params['pca_sel']) * params['ls_scale_sel'][None, :]
    w_neg = ((-0.4 * LN10) * (params['Ws'][-1] @ M)).astype(f32)             # (H, L)
    b_full = (params['bs'][-1] @ M
              + (params['pca_shift'] @ params['pca_sel']) * params['ls_scale_sel']
              + params['ls_shift_sel'])
    b_neg = ((-0.4 * LN10) * b_full
             + jnp.log(params['lam_sel']))[None, :].astype(f32)              # (1, L)

    # gennorm constants, flat (4, F*C*L): [lam/sig, loc/sig, beta, amps*norm].
    # TODO(synk): gammaln has no Pallas lowering; constant-parameter use is
    # precomputed host-side (exact rewrite, not an approximation).
    sigs = params['g_sigs'].reshape((FC,))
    locs = params['g_locs'].reshape((FC,))
    betas = params['g_betas'].reshape((FC,))
    amps = params['g_amps'].reshape((FC,))
    normamp = amps * betas / (2.0 * sigs * jnp.exp(gammaln(1.0 / betas)))
    gn_flat = jnp.stack([
        (params['lam_sel'][None, :] / sigs[:, None]).reshape((FCL,)),
        jnp.repeat(locs / sigs, L),
        jnp.repeat(betas, L),
        jnp.repeat(normamp, L)]).astype(f32)                                 # (4, FCL)

    # 0/1 reduction matrix summing the C components per (filter, line):
    # R[(f*C+c)*L + l, f*L + l] = 1.
    R = jnp.asarray(np.kron(np.kron(np.eye(F, dtype=np.float32),
                                    np.ones((C, 1), dtype=np.float32)),
                            np.eye(L, dtype=np.float32)))                    # (FCL, FL)

    inputs = [theta, *layer_inputs, w_neg, b_neg, gn_flat, R]

    in_specs = [pl.BlockSpec((tile_b, P), lambda i: (i, 0))]
    in_specs += [pl.BlockSpec(a.shape, lambda i, _n=a.ndim: (0,) * _n)
                 for a in inputs[1:]]
    out_specs = pl.BlockSpec((tile_b, FL), lambda i: (i, 0))

    # VMEM: a handful of (tile_b, FCL) f32 temps + ~4 MiB constants/windows.
    # Always set explicitly (v5e default scoped VMEM is only 16 MiB); cap at
    # 44 MiB so there is headroom on v7x's 64 MiB physical VMEM.
    est = 10 * tile_b * FCL * 4 + (8 << 20)
    vmem_limit = int(min(max(est, 32 << 20), 44 << 20))

    kernel = functools.partial(_emline_kernel, n_hidden_layers, F)
    out = pl.pallas_call(
        kernel,
        out_shape=jax.ShapeDtypeStruct((B, FL), jnp.float32),
        grid=(B // tile_b,),
        in_specs=in_specs,
        out_specs=out_specs,
        compiler_params=pltpu.CompilerParams(
            dimension_semantics=("parallel",),
            vmem_limit_bytes=vmem_limit),
    )(*inputs)
    return out.reshape(B, F, L)          # free metadata reshape -> torch layout


# ------------------------- deterministic parameters --------------------------

def init_params(key, n_parameters, n_hidden, n_pca, n_wave, n_lines,
                n_filters, n_comp):
    keys = iter(jax.random.split(key, 40))
    sizes = [n_parameters] + list(n_hidden) + [n_pca]
    Ws, bs, alphas, gammas = [], [], [], []
    for i in range(len(sizes) - 1):
        Ws.append(0.2 * jax.random.normal(next(keys), (sizes[i], sizes[i + 1]), jnp.float32))
        bs.append(0.05 * jax.random.normal(next(keys), (sizes[i + 1],), jnp.float32))
    for i in range(len(sizes) - 2):
        alphas.append(jax.random.uniform(next(keys), (sizes[i + 1],), jnp.float32, 0.5, 1.5))
        gammas.append(jax.random.uniform(next(keys), (sizes[i + 1],), jnp.float32, 0.0, 1.0))

    p_shift = jax.random.normal(next(keys), (n_parameters,), jnp.float32)
    p_scale = jax.random.uniform(next(keys), (n_parameters,), jnp.float32, 0.5, 2.0)
    pca_scale = jax.random.uniform(next(keys), (n_pca,), jnp.float32, 0.5, 1.5)
    pca_shift = 0.1 * jax.random.normal(next(keys), (n_pca,), jnp.float32)
    pca_tm = 0.3 * jax.random.normal(next(keys), (n_pca, n_wave), jnp.float32)
    ls_scale = jax.random.uniform(next(keys), (n_wave,), jnp.float32, 0.5, 1.5)
    ls_shift = 0.5 * jax.random.normal(next(keys), (n_wave,), jnp.float32)
    line_idx = jax.random.permutation(next(keys), n_wave)[:n_lines]
    lam_sel = jax.random.uniform(next(keys), (n_lines,), jnp.float32, 1000.0, 10000.0)
    g_amps = jax.random.uniform(next(keys), (n_filters, n_comp), jnp.float32, 0.1, 1.0)
    g_locs = jax.random.uniform(next(keys), (n_filters, n_comp), jnp.float32, 3000.0, 11000.0)
    g_sigs = jax.random.uniform(next(keys), (n_filters, n_comp), jnp.float32, 200.0, 900.0)
    g_betas = jax.random.uniform(next(keys), (n_filters, n_comp), jnp.float32, 1.5, 4.0)

    # fold the constant line-index gather into the parameters (exact rewrite)
    pca_sel = pca_tm[:, line_idx]
    return dict(Ws=Ws, bs=bs, alphas=alphas, gammas=gammas,
                p_shift=p_shift, p_scale=p_scale,
                pca_scale=pca_scale, pca_shift=pca_shift,
                pca_tm=pca_tm, line_idx=line_idx, pca_sel=pca_sel,
                ls_scale=ls_scale, ls_shift=ls_shift,
                ls_scale_sel=ls_scale[line_idx], ls_shift_sel=ls_shift[line_idx],
                lam_sel=lam_sel,
                g_amps=g_amps, g_locs=g_locs, g_sigs=g_sigs, g_betas=g_betas)


# ---------------------------- pure-JAX reference -----------------------------

def reference_forward(theta, p):
    x = (theta - p['p_shift']) / p['p_scale']
    nl = len(p['Ws'])
    for i in range(nl - 1):
        h = x @ p['Ws'][i] + p['bs'][i]
        x = (p['gammas'][i] + jax.nn.sigmoid(p['alphas'][i] * h) * (1.0 - p['gammas'][i])) * h
    coeffs = x @ p['Ws'][-1] + p['bs'][-1]
    logspec = ((coeffs * p['pca_scale'] + p['pca_shift']) @ p['pca_tm']
               * p['ls_scale'] + p['ls_shift'])
    logspec_sel = logspec[..., p['line_idx']]
    strengths = 10.0 ** (-0.4 * logspec_sel)                       # (B, L)
    lz = (1.0 + theta[:, -1, None]) * p['lam_sel'][None, :]        # (B, L)
    flux_norm = 10.0 ** (9.0 - 0.4 * theta[..., 0]) * FLUX_CONST   # (B,)
    betas, sigs, locs, amps = p['g_betas'], p['g_sigs'], p['g_locs'], p['g_amps']
    x4 = lz[:, :, None, None]                                      # (B, L, 1, 1)
    pdf = (betas / (2.0 * sigs * jnp.exp(gammaln(1.0 / betas)))
           * jnp.exp(-jnp.abs((x4 - locs) / sigs) ** betas))       # (B, L, F, C)
    window = jnp.sum(amps * pdf, axis=-1)                          # (B, L, F)
    res = (window * flux_norm[:, None, None] * lz[:, :, None]
           * strengths[:, :, None])                                # (B, L, F)
    return jnp.transpose(res, (0, 2, 1))                           # (B, F, L)


# ---------------------------------- main -------------------------------------

if __name__ == "__main__":
    B, P = 256, 16                  # batch, n_parameters
    n_hidden = [32, 32, 32]
    n_pca, n_wave, n_lines = 16, 64, 48
    n_filters, n_comp = 4, 8

    key = jax.random.PRNGKey(0)
    kp, kt, kz, km = jax.random.split(key, 4)
    params = init_params(kp, P, n_hidden, n_pca, n_wave, n_lines, n_filters, n_comp)

    theta = jax.random.normal(kt, (B, P), jnp.float32)
    theta = theta.at[:, 0].set(jax.random.uniform(km, (B,), jnp.float32, 8.0, 11.0))
    theta = theta.at[:, -1].set(jax.random.uniform(kz, (B,), jnp.float32, 0.0, 1.0))

    out = emline_forward(theta, params, tile_b=128)   # grid of 2 (megacore-friendly)
    out = jax.block_until_ready(out)

    ref = reference_forward(theta, params)
    assert out.shape == (B, n_filters, n_lines)
    np.testing.assert_allclose(np.asarray(out), np.asarray(ref), rtol=5e-3, atol=1e-6)
    print("KERNEL_OK")
</pallas_src>

<mosaic_0001>
module attributes {stable_mosaic.version = 11 : i64} {
  func.func @_emline_kernel(%arg0: i32, %arg1: memref<128x16xf32, #tpu.memory_space<vmem>>, %arg2: memref<16x32xf32, #tpu.memory_space<vmem>>, %arg3: memref<4x32xf32, #tpu.memory_space<vmem>>, %arg4: memref<32x32xf32, #tpu.memory_space<vmem>>, %arg5: memref<4x32xf32, #tpu.memory_space<vmem>>, %arg6: memref<32x32xf32, #tpu.memory_space<vmem>>, %arg7: memref<4x32xf32, #tpu.memory_space<vmem>>, %arg8: memref<32x48xf32, #tpu.memory_space<vmem>>, %arg9: memref<1x48xf32, #tpu.memory_space<vmem>>, %arg10: memref<4x1536xf32, #tpu.memory_space<vmem>>, %arg11: memref<1536x192xf32, #tpu.memory_space<vmem>>, %arg12: memref<128x192xf32, #tpu.memory_space<vmem>>) attributes {dimension_semantics = [#tpu.dimension_semantics<parallel>], iteration_bounds = array<i64: 2>, scalar_prefetch = 0 : i64, scratch_operands = 0 : i64, tpu.core_type = #tpu.core_type<tc>, window_params = [{transform_indices = @transform_0, window_bounds = array<i64: 128, 16>}, {pipeline_mode = #tpu.pipeline_mode<synchronous>, transform_indices = @transform_1, window_bounds = array<i64: 16, 32>}, {pipeline_mode = #tpu.pipeline_mode<synchronous>, transform_indices = @transform_2, window_bounds = array<i64: 4, 32>}, {pipeline_mode = #tpu.pipeline_mode<synchronous>, transform_indices = @transform_3, window_bounds = array<i64: 32, 32>}, {pipeline_mode = #tpu.pipeline_mode<synchronous>, transform_indices = @transform_4, window_bounds = array<i64: 4, 32>}, {pipeline_mode = #tpu.pipeline_mode<synchronous>, transform_indices = @transform_5, window_bounds = array<i64: 32, 32>}, {pipeline_mode = #tpu.pipeline_mode<synchronous>, transform_indices = @transform_6, window_bounds = array<i64: 4, 32>}, {pipeline_mode = #tpu.pipeline_mode<synchronous>, transform_indices = @transform_7, window_bounds = array<i64: 32, 48>}, {pipeline_mode = #tpu.pipeline_mode<synchronous>, transform_indices = @transform_8, window_bounds = array<i64: 1, 48>}, {pipeline_mode = #tpu.pipeline_mode<synchronous>, transform_indices = @transform_9, window_bounds = array<i64: 4, 1536>}, {pipeline_mode = #tpu.pipeline_mode<synchronous>, transform_indices = @transform_10, window_bounds = array<i64: 1536, 192>}, {transform_indices = @transform_11, window_bounds = array<i64: 128, 192>}]} {
    %c0 = arith.constant 0 : index
    %c0_0 = arith.constant 0 : index
    %0 = vector.load %arg1[%c0, %c0_0] : memref<128x16xf32, #tpu.memory_space<vmem>>, vector<128x16xf32>
    %1 = vector.extract_strided_slice %0 {offsets = [0, 15], sizes = [128, 1], strides = [1, 1]} : vector<128x16xf32> to vector<128x1xf32>
    %cst = arith.constant 1.000000e+00 : f32
    %2 = vector.broadcast %cst : f32 to vector<128x1xf32>
    %3 = arith.addf %2, %1 : vector<128x1xf32>
    %c0_1 = arith.constant 0 : index
    %c0_2 = arith.constant 0 : index
    %4 = vector.load %arg2[%c0_1, %c0_2] : memref<16x32xf32, #tpu.memory_space<vmem>>, vector<16x32xf32>
    %c0_3 = arith.constant 0 : index
    %c0_4 = arith.constant 0 : index
    %5 = vector.load %arg3[%c0_3, %c0_4] : memref<4x32xf32, #tpu.memory_space<vmem>>, vector<4x32xf32>
    %6 = vector.extract_strided_slice %5 {offsets = [0, 0], sizes = [1, 32], strides = [1, 1]} : vector<4x32xf32> to vector<1x32xf32>
    %7 = vector.extract_strided_slice %5 {offsets = [1, 0], sizes = [1, 32], strides = [1, 1]} : vector<4x32xf32> to vector<1x32xf32>
    %8 = vector.extract_strided_slice %5 {offsets = [2, 0], sizes = [1, 32], strides = [1, 1]} : vector<4x32xf32> to vector<1x32xf32>
    %9 = vector.extract_strided_slice %5 {offsets = [3, 0], sizes = [1, 32], strides = [1, 1]} : vector<4x32xf32> to vector<1x32xf32>
    %cst_5 = arith.constant dense<0.000000e+00> : vector<128x32xf32>
    %10 = tpu.matmul %0, %4, %cst_5 {dimension_numbers = #tpu.dot_dimension_numbers<[1], [0], [0], [1], [0, 0, 1, 1], [], []>} : vector<128x16xf32>, vector<16x32xf32>, vector<128x32xf32> -> vector<128x32xf32>
    %11 = vector.broadcast %6 : vector<1x32xf32> to vector<128x32xf32>
    %12 = arith.addf %10, %11 : vector<128x32xf32>
    %13 = vector.broadcast %7 : vector<1x32xf32> to vector<128x32xf32>
    %14 = arith.mulf %13, %12 : vector<128x32xf32>
    %15 = math.tanh %14 : vector<128x32xf32>
    %16 = vector.broadcast %9 : vector<1x32xf32> to vector<128x32xf32>
    %17 = arith.mulf %16, %15 : vector<128x32xf32>
    %18 = vector.broadcast %8 : vector<1x32xf32> to vector<128x32xf32>
    %19 = arith.addf %18, %17 : vector<128x32xf32>
    %20 = arith.mulf %19, %12 : vector<128x32xf32>
    %c0_6 = arith.constant 0 : index
    %c0_7 = arith.constant 0 : index
    %21 = vector.load %arg4[%c0_6, %c0_7] : memref<32x32xf32, #tpu.memory_space<vmem>>, vector<32x32xf32>
    %c0_8 = arith.constant 0 : index
    %c0_9 = arith.constant 0 : index
    %22 = vector.load %arg5[%c0_8, %c0_9] : memref<4x32xf32, #tpu.memory_space<vmem>>, vector<4x32xf32>
    %23 = vector.extract_strided_slice %22 {offsets = [0, 0], sizes = [1, 32], strides = [1, 1]} : vector<4x32xf32> to vector<1x32xf32>
    %24 = vector.extract_strided_slice %22 {offsets = [1, 0], sizes = [1, 32], strides = [1, 1]} : vector<4x32xf32> to vector<1x32xf32>
    %25 = vector.extract_strided_slice %22 {offsets = [2, 0], sizes = [1, 32], strides = [1, 1]} : vector<4x32xf32> to vector<1x32xf32>
    %26 = vector.extract_strided_slice %22 {offsets = [3, 0], sizes = [1, 32], strides = [1, 1]} : vector<4x32xf32> to vector<1x32xf32>
    %cst_10 = arith.constant dense<0.000000e+00> : vector<128x32xf32>
    %27 = tpu.matmul %20, %21, %cst_10 {dimension_numbers = #tpu.dot_dimension_numbers<[1], [0], [0], [1], [0, 0, 1, 1], [], []>} : vector<128x32xf32>, vector<32x32xf32>, vector<128x32xf32> -> vector<128x32xf32>
    %28 = vector.broadcast %23 : vector<1x32xf32> to vector<128x32xf32>
    %29 = arith.addf %27, %28 : vector<128x32xf32>
    %30 = vector.broadcast %24 : vector<1x32xf32> to vector<128x32xf32>
    %31 = arith.mulf %30, %29 : vector<128x32xf32>
    %32 = math.tanh %31 : vector<128x32xf32>
    %33 = vector.broadcast %26 : vector<1x32xf32> to vector<128x32xf32>
    %34 = arith.mulf %33, %32 : vector<128x32xf32>
    %35 = vector.broadcast %25 : vector<1x32xf32> to vector<128x32xf32>
    %36 = arith.addf %35, %34 : vector<128x32xf32>
    %37 = arith.mulf %36, %29 : vector<128x32xf32>
    %c0_11 = arith.constant 0 : index
    %c0_12 = arith.constant 0 : index
    %38 = vector.load %arg6[%c0_11, %c0_12] : memref<32x32xf32, #tpu.memory_space<vmem>>, vector<32x32xf32>
    %c0_13 = arith.constant 0 : index
    %c0_14 = arith.constant 0 : index
    %39 = vector.load %arg7[%c0_13, %c0_14] : memref<4x32xf32, #tpu.memory_space<vmem>>, vector<4x32xf32>
    %40 = vector.extract_strided_slice %39 {offsets = [0, 0], sizes = [1, 32], strides = [1, 1]} : vector<4x32xf32> to vector<1x32xf32>
    %41 = vector.extract_strided_slice %39 {offsets = [1, 0], sizes = [1, 32], strides = [1, 1]} : vector<4x32xf32> to vector<1x32xf32>
    %42 = vector.extract_strided_slice %39 {offsets = [2, 0], sizes = [1, 32], strides = [1, 1]} : vector<4x32xf32> to vector<1x32xf32>
    %43 = vector.extract_strided_slice %39 {offsets = [3, 0], sizes = [1, 32], strides = [1, 1]} : vector<4x32xf32> to vector<1x32xf32>
    %cst_15 = arith.constant dense<0.000000e+00> : vector<128x32xf32>
    %44 = tpu.matmul %37, %38, %cst_15 {dimension_numbers = #tpu.dot_dimension_numbers<[1], [0], [0], [1], [0, 0, 1, 1], [], []>} : vector<128x32xf32>, vector<32x32xf32>, vector<128x32xf32> -> vector<128x32xf32>
    %45 = vector.broadcast %40 : vector<1x32xf32> to vector<128x32xf32>
    %46 = arith.addf %44, %45 : vector<128x32xf32>
    %47 = vector.broadcast %41 : vector<1x32xf32> to vector<128x32xf32>
    %48 = arith.mulf %47, %46 : vector<128x32xf32>
    %49 = math.tanh %48 : vector<128x32xf32>
    %50 = vector.broadcast %43 : vector<1x32xf32> to vector<128x32xf32>
    %51 = arith.mulf %50, %49 : vector<128x32xf32>
    %52 = vector.broadcast %42 : vector<1x32xf32> to vector<128x32xf32>
    %53 = arith.addf %52, %51 : vector<128x32xf32>
    %54 = arith.mulf %53, %46 : vector<128x32xf32>
    %c0_16 = arith.constant 0 : index
    %c0_17 = arith.constant 0 : index
    %55 = vector.load %arg8[%c0_16, %c0_17] : memref<32x48xf32, #tpu.memory_space<vmem>>, vector<32x48xf32>
    %cst_18 = arith.constant dense<0.000000e+00> : vector<128x48xf32>
    %56 = tpu.matmul %54, %55, %cst_18 {dimension_numbers = #tpu.dot_dimension_numbers<[1], [0], [0], [1], [0, 0, 1, 1], [], []>} : vector<128x32xf32>, vector<32x48xf32>, vector<128x48xf32> -> vector<128x48xf32>
    %c0_19 = arith.constant 0 : index
    %c0_20 = arith.constant 0 : index
    %57 = vector.load %arg9[%c0_19, %c0_20] : memref<1x48xf32, #tpu.memory_space<vmem>>, vector<1x48xf32>
    %58 = vector.broadcast %57 : vector<1x48xf32> to vector<128x48xf32>
    %59 = arith.addf %56, %58 : vector<128x48xf32>
    %60 = math.exp %59 : vector<128x48xf32>
    %61 = vector.extract_strided_slice %0 {offsets = [0, 0], sizes = [128, 1], strides = [1, 1]} : vector<128x16xf32> to vector<128x1xf32>
    %cst_21 = arith.constant 4.000000e-01 : f32
    %62 = vector.broadcast %cst_21 : f32 to vector<128x1xf32>
    %63 = arith.mulf %62, %61 : vector<128x1xf32>
    %cst_22 = arith.constant 9.000000e+00 : f32
    %64 = vector.broadcast %cst_22 : f32 to vector<128x1xf32>
    %65 = arith.subf %64, %63 : vector<128x1xf32>
    %cst_23 = arith.constant 2.30258512 : f32
    %66 = vector.broadcast %cst_23 : f32 to vector<128x1xf32>
    %67 = arith.mulf %66, %65 : vector<128x1xf32>
    %68 = math.exp %67 : vector<128x1xf32>
    %cst_24 = arith.constant 3.21438819E-7 : f32
    %69 = vector.broadcast %cst_24 : f32 to vector<128x1xf32>
    %70 = arith.mulf %68, %69 : vector<128x1xf32>
    %71 = arith.mulf %70, %3 : vector<128x1xf32>
    %72 = vector.broadcast %71 : vector<128x1xf32> to vector<128x48xf32>
    %73 = arith.mulf %72, %60 : vector<128x48xf32>
    %c0_25 = arith.constant 0 : index
    %c0_26 = arith.constant 0 : index
    %74 = vector.load %arg10[%c0_25, %c0_26] : memref<4x1536xf32, #tpu.memory_space<vmem>>, vector<4x1536xf32>
    %75 = vector.extract_strided_slice %74 {offsets = [0, 0], sizes = [1, 1536], strides = [1, 1]} : vector<4x1536xf32> to vector<1x1536xf32>
    %76 = vector.extract_strided_slice %74 {offsets = [1, 0], sizes = [1, 1536], strides = [1, 1]} : vector<4x1536xf32> to vector<1x1536xf32>
    %77 = vector.extract_strided_slice %74 {offsets = [2, 0], sizes = [1, 1536], strides = [1, 1]} : vector<4x1536xf32> to vector<1x1536xf32>
    %78 = vector.extract_strided_slice %74 {offsets = [3, 0], sizes = [1, 1536], strides = [1, 1]} : vector<4x1536xf32> to vector<1x1536xf32>
    %79 = vector.broadcast %3 : vector<128x1xf32> to vector<128x1536xf32>
    %80 = vector.broadcast %75 : vector<1x1536xf32> to vector<128x1536xf32>
    %81 = arith.mulf %79, %80 : vector<128x1536xf32>
    %82 = vector.broadcast %76 : vector<1x1536xf32> to vector<128x1536xf32>
    %83 = arith.subf %81, %82 : vector<128x1536xf32>
    %84 = math.absf %83 : vector<128x1536xf32>
    %cst_27 = arith.constant 1.000000e-30 : f32
    %85 = vector.broadcast %cst_27 : f32 to vector<128x1536xf32>
    %86 = arith.maximumf %84, %85 : vector<128x1536xf32>
    %87 = math.log %86 : vector<128x1536xf32>
    %88 = vector.broadcast %77 : vector<1x1536xf32> to vector<128x1536xf32>
    %89 = arith.mulf %88, %87 : vector<128x1536xf32>
    %90 = math.exp %89 : vector<128x1536xf32>
    %cst_28 = arith.constant 0.000000e+00 : f32
    %91 = vector.broadcast %cst_28 : f32 to vector<128x1536xf32>
    %92 = arith.subf %91, %90 : vector<128x1536xf32>
    %93 = math.exp %92 : vector<128x1536xf32>
    %94 = vector.broadcast %78 : vector<1x1536xf32> to vector<128x1536xf32>
    %95 = arith.mulf %94, %93 : vector<128x1536xf32>
    %c0_29 = arith.constant 0 : index
    %c0_30 = arith.constant 0 : index
    %96 = vector.load %arg11[%c0_29, %c0_30] : memref<1536x192xf32, #tpu.memory_space<vmem>>, vector<1536x192xf32>
    %cst_31 = arith.constant dense<0.000000e+00> : vector<128x192xf32>
    %97 = tpu.matmul %95, %96, %cst_31 {dimension_numbers = #tpu.dot_dimension_numbers<[1], [0], [0], [1], [0, 0, 1, 1], [], []>} : vector<128x1536xf32>, vector<1536x192xf32>, vector<128x192xf32> -> vector<128x192xf32>
    %98 = tpu.concatenate %73, %73, %73, %73 in 1 : vector<128x48xf32>, vector<128x48xf32>, vector<128x48xf32>, vector<128x48xf32> -> vector<128x192xf32>
    %99 = arith.mulf %97, %98 : vector<128x192xf32>
    %c0_32 = arith.constant 0 : index
    %c0_33 = arith.constant 0 : index
    %100 = vector.load %arg12[%c0_32, %c0_33] : memref<128x192xf32, #tpu.memory_space<vmem>>, vector<128x192xf32>
    tpu.vector_store %arg12[%c0_32, %c0_33], %99 {strides = array<i32>} : memref<128x192xf32, #tpu.memory_space<vmem>>, vector<128x192xf32>,
    return
  }
  func.func @transform_0(%arg0: i32) -> (i32, i32) {
    %c0_i32 = arith.constant 0 : i32
    %c0_i32_0 = arith.constant 0 : i32
    return %arg0, %c0_i32 : i32, i32
  }
  func.func @transform_1(%arg0: i32) -> (i32, i32) {
    %c0_i32 = arith.constant 0 : i32
    %c0_i32_0 = arith.constant 0 : i32
    %c0_i32_1 = arith.constant 0 : i32
    return %c0_i32, %c0_i32_0 : i32, i32
  }
  func.func @transform_2(%arg0: i32) -> (i32, i32) {
    %c0_i32 = arith.constant 0 : i32
    %c0_i32_0 = arith.constant 0 : i32
    %c0_i32_1 = arith.constant 0 : i32
    return %c0_i32, %c0_i32_0 : i32, i32
  }
  func.func @transform_3(%arg0: i32) -> (i32, i32) {
    %c0_i32 = arith.constant 0 : i32
    %c0_i32_0 = arith.constant 0 : i32
    %c0_i32_1 = arith.constant 0 : i32
    return %c0_i32, %c0_i32_0 : i32, i32
  }
  func.func @transform_4(%arg0: i32) -> (i32, i32) {
    %c0_i32 = arith.constant 0 : i32
    %c0_i32_0 = arith.constant 0 : i32
    %c0_i32_1 = arith.constant 0 : i32
    return %c0_i32, %c0_i32_0 : i32, i32
  }
  func.func @transform_5(%arg0: i32) -> (i32, i32) {
    %c0_i32 = arith.constant 0 : i32
    %c0_i32_0 = arith.constant 0 : i32
    %c0_i32_1 = arith.constant 0 : i32
    return %c0_i32, %c0_i32_0 : i32, i32
  }
  func.func @transform_6(%arg0: i32) -> (i32, i32) {
    %c0_i32 = arith.constant 0 : i32
    %c0_i32_0 = arith.constant 0 : i32
    %c0_i32_1 = arith.constant 0 : i32
    return %c0_i32, %c0_i32_0 : i32, i32
  }
  func.func @transform_7(%arg0: i32) -> (i32, i32) {
    %c0_i32 = arith.constant 0 : i32
    %c0_i32_0 = arith.constant 0 : i32
    %c0_i32_1 = arith.constant 0 : i32
    return %c0_i32, %c0_i32_0 : i32, i32
  }
  func.func @transform_8(%arg0: i32) -> (i32, i32) {
    %c0_i32 = arith.constant 0 : i32
    %c0_i32_0 = arith.constant 0 : i32
    %c0_i32_1 = arith.constant 0 : i32
    return %c0_i32, %c0_i32_0 : i32, i32
  }
  func.func @transform_9(%arg0: i32) -> (i32, i32) {
    %c0_i32 = arith.constant 0 : i32
    %c0_i32_0 = arith.constant 0 : i32
    %c0_i32_1 = arith.constant 0 : i32
    return %c0_i32, %c0_i32_0 : i32, i32
  }
  func.func @transform_10(%arg0: i32) -> (i32, i32) {
    %c0_i32 = arith.constant 0 : i32
    %c0_i32_0 = arith.constant 0 : i32
    %c0_i32_1 = arith.constant 0 : i32
    return %c0_i32, %c0_i32_0 : i32, i32
  }
  func.func @transform_11(%arg0: i32) -> (i32, i32) {
    %c0_i32 = arith.constant 0 : i32
    %c0_i32_0 = arith.constant 0 : i32
    return %arg0, %c0_i32 : i32, i32
  }
}

</mosaic_0001>

<llo_original>
// kernel: tpu_custom_call.1
$region0: #{tpu_custom_call.1}
  #allocation0 [shape = 'u32[]', space=smem, size = 0x4, offset = 0x4, fixed_abs, tag = 'smem constant byte address 0x4 - core index']
  #allocation1 [shape = 'u32[144,128]{1,0:T(1,128)}', space=vmem, size = 0x12000, scoped, tag = 'internal scratch']
  %s0 = inlined_call_operand.vmem [shape: f32[256,16], index: 0, kind: input, shape index: {}]
  %s1 = inlined_call_operand.vmem [shape: f32[16,32], index: 1, kind: input, shape index: {}]
  %s2 = inlined_call_operand.vmem [shape: f32[4,32], index: 2, kind: input, shape index: {}]
  %s3 = inlined_call_operand.vmem [shape: f32[32,32], index: 3, kind: input, shape index: {}]
  %s4 = inlined_call_operand.vmem [shape: f32[4,32], index: 4, kind: input, shape index: {}]
  %s5 = inlined_call_operand.vmem [shape: f32[32,32], index: 5, kind: input, shape index: {}]
  %s6 = inlined_call_operand.vmem [shape: f32[4,32], index: 6, kind: input, shape index: {}]
  %s7 = inlined_call_operand.vmem [shape: f32[32,48], index: 7, kind: input, shape index: {}]
  %s8 = inlined_call_operand.vmem [shape: f32[1,48], index: 8, kind: input, shape index: {}]
  %s9 = inlined_call_operand.vmem [shape: f32[4,1536], index: 9, kind: input, shape index: {}]
  %s10 = inlined_call_operand.vmem [shape: f32[1536,192], index: 10, kind: input, shape index: {}]
  %s11 = inlined_call_operand.vmem [shape: f32[256,192], index: 11, kind: output, shape index: {}]
  %s12 = sld [smem:[#allocation0]]
  $region77: #{tpu_custom_call.1} parent=0
    _
  %s14 = ssub.s32 1, %s12
  %s15 = scalar_select 0, %s14, %s12
  loop: start=0, step=1, limit=4
  $region2: #{tpu_custom_call.1} parent=0 // loop_pre_header
    _
  $region3: #{tpu_custom_call.1} parent=0 // loop_header
    %s17 = sphi 0, %s21
    %p18 = scmp.ge.s32.totalorder %s17, 4
    %s27 = sphi 0, %s29
    %s30 = sphi 0, %s27
    %s31 = sphi 0, %s30
    %s47 = sphi 0, %s31
    %s51 = sphi 0, %s51
    %s53 = sphi 0, %s51
    %s54 = sphi 0, %s53
    %s68 = sphi 0, %s54
    %s72 = sphi 0, %s72
    %s74 = sphi 0, %s72
    %s75 = sphi 0, %s74
    %s89 = sphi 0, %s75
    %s93 = sphi 0, %s93
    %s95 = sphi 0, %s93
    %s96 = sphi 0, %s95
    %s110 = sphi 0, %s96
    %s114 = sphi 0, %s114
    %s116 = sphi 0, %s114
    %s117 = sphi 0, %s116
    %s131 = sphi 0, %s117
    %s135 = sphi 0, %s135
    %s137 = sphi 0, %s135
    %s138 = sphi 0, %s137
    %s152 = sphi 0, %s138
    %s156 = sphi 0, %s156
    %s158 = sphi 0, %s156
    %s159 = sphi 0, %s158
    %s173 = sphi 0, %s159
    %s177 = sphi 0, %s177
    %s179 = sphi 0, %s177
    %s180 = sphi 0, %s179
    %s194 = sphi 0, %s180
    %s198 = sphi 0, %s198
    %s200 = sphi 0, %s198
    %s201 = sphi 0, %s200
    %s215 = sphi 0, %s201
    %s219 = sphi 0, %s219
    %s221 = sphi 0, %s219
    %s222 = sphi 0, %s221
    %s236 = sphi 0, %s222
    %s240 = sphi 0, %s240
    %s242 = sphi 0, %s240
    %s243 = sphi 0, %s242
    %s257 = sphi 0, %s243
    %s263 = sphi 0, %s265
    %s266 = sphi 0, %s263
    %s267 = sphi 0, %s266
    %s283 = sphi 0, %s267
  $region4: #{tpu_custom_call.1} parent=0 // loop_header_branch
    %20 = sbr.rel (%p18) target = $region8
  $region5: #{tpu_custom_call.1} parent=0 // loop_body
    %s22 = ssub.s32 %s17, 1
    %s23 = ssub.s32 %s17, 2
    %s24 = sadd.s32 %s17, 1
    %s25 = ssub.s32 %s17, %s24
    %p26 = scmp.eq.s32.totalorder %s25, 0
    %s28 = sadd.s32 %s27, 1
    %s29 = scalar_select %p26, %s27, %s28
    %p32 = pneg %p26
    %p33 = scmp.eq.s32.totalorder %s17, 1
    %p34 = por %p32, %p33
    %p35 = scmp.ne.s32.totalorder %s27, %s30
    %p36 = scmp.eq.s32.totalorder %s17, 0
    %p37 = por %p35, %p36
    %p38 = scmp.ne.s32.totalorder %s27, %s30
    %p39 = scmp.eq.s32.totalorder %s22, 1
    %p40 = por %p38, %p39
    %p41 = scmp.ne.s32.totalorder %s30, %s31
    %p42 = scmp.eq.s32.totalorder %s22, 0
    %p43 = por %p41, %p42
    %p44 = scmp.ne.s32.totalorder %s30, %s31
    %p45 = scmp.eq.s32.totalorder %s23, 1
    %p46 = por %p44, %p45
    %p48 = scmp.ne.s32.totalorder %s31, %s47
    %p49 = scmp.eq.s32.totalorder %s23, 0
    %p50 = por %p48, %p49
    %s52 = sadd.s32 %s51, 1
    %p55 = scmp.eq.s32.totalorder %s17, 1
    %p56 = scmp.ne.s32.totalorder %s51, %s53
    %p57 = scmp.eq.s32.totalorder %s17, 0
    %p58 = por %p56, %p57
    %p59 = scmp.ne.s32.totalorder %s51, %s53
    %p60 = scmp.eq.s32.totalorder %s22, 1
    %p61 = por %p59, %p60
    %p62 = scmp.ne.s32.totalorder %s53, %s54
    %p63 = scmp.eq.s32.totalorder %s22, 0
    %p64 = por %p62, %p63
    %p65 = scmp.ne.s32.totalorder %s53, %s54
    %p66 = scmp.eq.s32.totalorder %s23, 1
    %p67 = por %p65, %p66
    %p69 = scmp.ne.s32.totalorder %s54, %s68
    %p70 = scmp.eq.s32.totalorder %s23, 0
    %p71 = por %p69, %p70
    %s73 = sadd.s32 %s72, 1
    %p76 = scmp.eq.s32.totalorder %s17, 1
    %p77 = scmp.ne.s32.totalorder %s72, %s74
    %p78 = scmp.eq.s32.totalorder %s17, 0
    %p79 = por %p77, %p78
    %p80 = scmp.ne.s32.totalorder %s72, %s74
    %p81 = scmp.eq.s32.totalorder %s22, 1
    %p82 = por %p80, %p81
    %p83 = scmp.ne.s32.totalorder %s74, %s75
    %p84 = scmp.eq.s32.totalorder %s22, 0
    %p85 = por %p83, %p84
    %p86 = scmp.ne.s32.totalorder %s74, %s75
    %p87 = scmp.eq.s32.totalorder %s23, 1
    %p88 = por %p86, %p87
    %p90 = scmp.ne.s32.totalorder %s75, %s89
    %p91 = scmp.eq.s32.totalorder %s23, 0
    %p92 = por %p90, %p91
    %s94 = sadd.s32 %s93, 1
    %p97 = scmp.eq.s32.totalorder %s17, 1
    %p98 = scmp.ne.s32.totalorder %s93, %s95
    %p99 = scmp.eq.s32.totalorder %s17, 0
    %p100 = por %p98, %p99
    %p101 = scmp.ne.s32.totalorder %s93, %s95
    %p102 = scmp.eq.s32.totalorder %s22, 1
    %p103 = por %p101, %p102
    %p104 = scmp.ne.s32.totalorder %s95, %s96
    %p105 = scmp.eq.s32.totalorder %s22, 0
    %p106 = por %p104, %p105
    %p107 = scmp.ne.s32.totalorder %s95, %s96
    %p108 = scmp.eq.s32.totalorder %s23, 1
    %p109 = por %p107, %p108
    %p111 = scmp.ne.s32.totalorder %s96, %s110
    %p112 = scmp.eq.s32.totalorder %s23, 0
    %p113 = por %p111, %p112
    %s115 = sadd.s32 %s114, 1
    %p118 = scmp.eq.s32.totalorder %s17, 1
    %p119 = scmp.ne.s32.totalorder %s114, %s116
    %p120 = scmp.eq.s32.totalorder %s17, 0
    %p121 = por %p119, %p120
    %p122 = scmp.ne.s32.totalorder %s114, %s116
    %p123 = scmp.eq.s32.totalorder %s22, 1
    %p124 = por %p122, %p123
    %p125 = scmp.ne.s32.totalorder %s116, %s117
    %p126 = scmp.eq.s32.totalorder %s22, 0
    %p127 = por %p125, %p126
    %p128 = scmp.ne.s32.totalorder %s116, %s117
    %p129 = scmp.eq.s32.totalorder %s23, 1
    %p130 = por %p128, %p129
    %p132 = scmp.ne.s32.totalorder %s117, %s131
    %p133 = scmp.eq.s32.totalorder %s23, 0
    %p134 = por %p132, %p133
    %s136 = sadd.s32 %s135, 1
    %p139 = scmp.eq.s32.totalorder %s17, 1
    %p140 = scmp.ne.s32.totalorder %s135, %s137
    %p141 = scmp.eq.s32.totalorder %s17, 0
    %p142 = por %p140, %p141
    %p143 = scmp.ne.s32.totalorder %s135, %s137
    %p144 = scmp.eq.s32.totalorder %s22, 1
    %p145 = por %p143, %p144
    %p146 = scmp.ne.s32.totalorder %s137, %s138
    %p147 = scmp.eq.s32.totalorder %s22, 0
    %p148 = por %p146, %p147
    %p149 = scmp.ne.s32.totalorder %s137, %s138
    %p150 = scmp.eq.s32.totalorder %s23, 1
    %p151 = por %p149, %p150
    %p153 = scmp.ne.s32.totalorder %s138, %s152
    %p154 = scmp.eq.s32.totalorder %s23, 0
    %p155 = por %p153, %p154
    %s157 = sadd.s32 %s156, 1
    %p160 = scmp.eq.s32.totalorder %s17, 1
    %p161 = scmp.ne.s32.totalorder %s156, %s158
    %p162 = scmp.eq.s32.totalorder %s17, 0
    %p163 = por %p161, %p162
    %p164 = scmp.ne.s32.totalorder %s156, %s158
    %p165 = scmp.eq.s32.totalorder %s22, 1
    %p166 = por %p164, %p165
    %p167 = scmp.ne.s32.totalorder %s158, %s159
    %p168 = scmp.eq.s32.totalorder %s22, 0
    %p169 = por %p167, %p168
    %p170 = scmp.ne.s32.totalorder %s158, %s159
    %p171 = scmp.eq.s32.totalorder %s23, 1
    %p172 = por %p170, %p171
    %p174 = scmp.ne.s32.totalorder %s159, %s173
    %p175 = scmp.eq.s32.totalorder %s23, 0
    %p176 = por %p174, %p175
    %s178 = sadd.s32 %s177, 1
    %p181 = scmp.eq.s32.totalorder %s17, 1
    %p182 = scmp.ne.s32.totalorder %s177, %s179
    %p183 = scmp.eq.s32.totalorder %s17, 0
    %p184 = por %p182, %p183
    %p185 = scmp.ne.s32.totalorder %s177, %s179
    %p186 = scmp.eq.s32.totalorder %s22, 1
    %p187 = por %p185, %p186
    %p188 = scmp.ne.s32.totalorder %s179, %s180
    %p189 = scmp.eq.s32.totalorder %s22, 0
    %p190 = por %p188, %p189
    %p191 = scmp.ne.s32.totalorder %s179, %s180
    %p192 = scmp.eq.s32.totalorder %s23, 1
    %p193 = por %p191, %p192
    %p195 = scmp.ne.s32.totalorder %s180, %s194
    %p196 = scmp.eq.s32.totalorder %s23, 0
    %p197 = por %p195, %p196
    %s199 = sadd.s32 %s198, 1
    %p202 = scmp.eq.s32.totalorder %s17, 1
    %p203 = scmp.ne.s32.totalorder %s198, %s200
    %p204 = scmp.eq.s32.totalorder %s17, 0
    %p205 = por %p203, %p204
    %p206 = scmp.ne.s32.totalorder %s198, %s200
    %p207 = scmp.eq.s32.totalorder %s22, 1
    %p208 = por %p206, %p207
    %p209 = scmp.ne.s32.totalorder %s200, %s201
    %p210 = scmp.eq.s32.totalorder %s22, 0
    %p211 = por %p209, %p210
    %p212 = scmp.ne.s32.totalorder %s200, %s201
    %p213 = scmp.eq.s32.totalorder %s23, 1
    %p214 = por %p212, %p213
    %p216 = scmp.ne.s32.totalorder %s201, %s215
    %p217 = scmp.eq.s32.totalorder %s23, 0
    %p218 = por %p216, %p217
    %s220 = sadd.s32 %s219, 1
    %p223 = scmp.eq.s32.totalorder %s17, 1
    %p224 = scmp.ne.s32.totalorder %s219, %s221
    %p225 = scmp.eq.s32.totalorder %s17, 0
    %p226 = por %p224, %p225
    %p227 = scmp.ne.s32.totalorder %s219, %s221
    %p228 = scmp.eq.s32.totalorder %s22, 1
    %p229 = por %p227, %p228
    %p230 = scmp.ne.s32.totalorder %s221, %s222
    %p231 = scmp.eq.s32.totalorder %s22, 0
    %p232 = por %p230, %p231
    %p233 = scmp.ne.s32.totalorder %s221, %s222
    %p234 = scmp.eq.s32.totalorder %s23, 1
    %p235 = por %p233, %p234
    %p237 = scmp.ne.s32.totalorder %s222, %s236
    %p238 = scmp.eq.s32.totalorder %s23, 0
    %p239 = por %p237, %p238
    %s241 = sadd.s32 %s240, 1
    %p244 = scmp.eq.s32.totalorder %s17, 1
    %p245 = scmp.ne.s32.totalorder %s240, %s242
    %p246 = scmp.eq.s32.totalorder %s17, 0
    %p247 = por %p245, %p246
    %p248 = scmp.ne.s32.totalorder %s240, %s242
    %p249 = scmp.eq.s32.totalorder %s22, 1
    %p250 = por %p248, %p249
    %p251 = scmp.ne.s32.totalorder %s242, %s243
    %p252 = scmp.eq.s32.totalorder %s22, 0
    %p253 = por %p251, %p252
    %p254 = scmp.ne.s32.totalorder %s242, %s243
    %p255 = scmp.eq.s32.totalorder %s23, 1
    %p256 = por %p254, %p255
    %p258 = scmp.ne.s32.totalorder %s243, %s257
    %p259 = scmp.eq.s32.totalorder %s23, 0
    %p260 = por %p258, %p259
    %s261 = ssub.s32 %s17, %s24
    %p262 = scmp.eq.s32.totalorder %s261, 0
    %s264 = sadd.s32 %s263, 1
    %s265 = scalar_select %p262, %s263, %s264
    %p268 = pneg %p262
    %p269 = scmp.eq.s32.totalorder %s17, 1
    %p270 = por %p268, %p269
    %p271 = scmp.ne.s32.totalorder %s263, %s266
    %p272 = scmp.eq.s32.totalorder %s17, 0
    %p273 = por %p271, %p272
    %p274 = scmp.ne.s32.totalorder %s263, %s266
    %p275 = scmp.eq.s32.totalorder %s22, 1
    %p276 = por %p274, %p275
    %p277 = scmp.ne.s32.totalorder %s266, %s267
    %p278 = scmp.eq.s32.totalorder %s22, 0
    %p279 = por %p277, %p278
    %p280 = scmp.ne.s32.totalorder %s266, %s267
    %p281 = scmp.eq.s32.totalorder %s23, 1
    %p282 = por %p280, %p281
    %p284 = scmp.ne.s32.totalorder %s267, %s283
    %p285 = scmp.eq.s32.totalorder %s23, 0
    %p286 = por %p284, %p285
    %p287 = scmp.le.s32.totalorder 1, %s17
    %p288 = scmp.lt.s32.totalorder %s17, 3
    %p289 = pnand %p287, %p288
    %p290 = pneg %p289
    // Predicated region
    $region9: #{tpu_custom_call.1} parent=5 // pred_check
      _
    $region10: #{tpu_custom_call.1} parent=5 // pred_check_branch
      %292 = sbr.rel (%p289) target = $region12
    $region11: #{tpu_custom_call.1} parent=5 // pred_region
      %s293 = ssub.s32 %s17, 1
      // Predicated region
      $region13: #{tpu_custom_call.1} parent=11 // pred_check
        %p294 = pneg %p64
      $region14: #{tpu_custom_call.1} parent=11 // pred_check_branch
        %296 = sbr.rel (%p294) target = $region16
      $region15: #{tpu_custom_call.1} parent=11 // pred_region
        _
      $region16: #{tpu_custom_call.1} parent=11 // pred_fallthru
        _
      // Predicated region
      $region17: #{tpu_custom_call.1} parent=11 // pred_check
        %p297 = pneg %p85
      $region18: #{tpu_custom_call.1} parent=11 // pred_check_branch
        %299 = sbr.rel (%p297) target = $region20
      $region19: #{tpu_custom_call.1} parent=11 // pred_region
        _
      $region20: #{tpu_custom_call.1} parent=11 // pred_fallthru
        _
      // Predicated region
      $region21: #{tpu_custom_call.1} parent=11 // pred_check
        %p300 = pneg %p106
      $region22: #{tpu_custom_call.1} parent=11 // pred_check_branch
        %302 = sbr.rel (%p300) target = $region24
      $region23: #{tpu_custom_call.1} parent=11 // pred_region
        _
      $region24: #{tpu_custom_call.1} parent=11 // pred_fallthru
        _
      // Predicated region
      $region25: #{tpu_custom_call.1} parent=11 // pred_check
        %p303 = pneg %p127
      $region26: #{tpu_custom_call.1} parent=11 // pred_check_branch
        %305 = sbr.rel (%p303) target = $region28
      $region27: #{tpu_custom_call.1} parent=11 // pred_region
        _
      $region28: #{tpu_custom_call.1} parent=11 // pred_fallthru
        _
      // Predicated region
      $region29: #{tpu_custom_call.1} parent=11 // pred_check
        %p306 = pneg %p148
      $region30: #{tpu_custom_call.1} parent=11 // pred_check_branch
        %308 = sbr.rel (%p306) target = $region32
      $region31: #{tpu_custom_call.1} parent=11 // pred_region
        _
      $region32: #{tpu_custom_call.1} parent=11 // pred_fallthru
        _
      // Predicated region
      $region33: #{tpu_custom_call.1} parent=11 // pred_check
        %p309 = pneg %p169
      $region34: #{tpu_custom_call.1} parent=11 // pred_check_branch
        %311 = sbr.rel (%p309) target = $region36
      $region35: #{tpu_custom_call.1} parent=11 // pred_region
        _
      $region36: #{tpu_custom_call.1} parent=11 // pred_fallthru
        _
      // Predicated region
      $region37: #{tpu_custom_call.1} parent=11 // pred_check
        %p312 = pneg %p190
      $region38: #{tpu_custom_call.1} parent=11 // pred_check_branch
        %314 = sbr.rel (%p312) target = $region40
      $region39: #{tpu_custom_call.1} parent=11 // pred_region
        _
      $region40: #{tpu_custom_call.1} parent=11 // pred_fallthru
        _
      // Predicated region
      $region41: #{tpu_custom_call.1} parent=11 // pred_check
        %p315 = pneg %p211
      $region42: #{tpu_custom_call.1} parent=11 // pred_check_branch
        %317 = sbr.rel (%p315) target = $region44
      $region43: #{tpu_custom_call.1} parent=11 // pred_region
        _
      $region44: #{tpu_custom_call.1} parent=11 // pred_fallthru
        _
      // Predicated region
      $region45: #{tpu_custom_call.1} parent=11 // pred_check
        %p318 = pneg %p232
      $region46: #{tpu_custom_call.1} parent=11 // pred_check_branch
        %320 = sbr.rel (%p318) target = $region48
      $region47: #{tpu_custom_call.1} parent=11 // pred_region
        _
      $region48: #{tpu_custom_call.1} parent=11 // pred_fallthru
        _
      // Predicated region
      $region49: #{tpu_custom_call.1} parent=11 // pred_check
        %p321 = pneg %p253
      $region50: #{tpu_custom_call.1} parent=11 // pred_check_branch
        %323 = sbr.rel (%p321) target = $region52
      $region51: #{tpu_custom_call.1} parent=11 // pred_region
        _
      $region52: #{tpu_custom_call.1} parent=11 // pred_fallthru
        _
    $region12: #{tpu_custom_call.1} parent=5 // pred_fallthru
      _
    %p324 = scmp.lt.s32.totalorder %s17, 2
    // Predicated region
    $region53: #{tpu_custom_call.1} parent=5 // pred_check
      %p325 = pneg %p324
    $region54: #{tpu_custom_call.1} parent=5 // pred_check_branch
      %327 = sbr.rel (%p325) target = $region56
    $region55: #{tpu_custom_call.1} parent=5 // pred_region
      // Predicated region
      $region57: #{tpu_custom_call.1} parent=55 // pred_check
        %p328 = pneg %p37
      $region58: #{tpu_custom_call.1} parent=55 // pred_check_branch
        %330 = sbr.rel (%p328) target = $region60
      $region59: #{tpu_custom_call.1} parent=55 // pred_region
        %s331 = smul.u32 16, %s17
        %p332 = scmp.lt.s32.totalorder %s331, 31
        %s333 = scalar_select %p332, %s331, 31
        %s334 = smul.addr %s333, 8
        %s335 = scalar_lea.vmem %s0, %s334
        %s336 = smul.u32 16, %s17
      $region60: #{tpu_custom_call.1} parent=55 // pred_fallthru
        _
    $region56: #{tpu_custom_call.1} parent=5 // pred_fallthru
      _
    %p337 = scmp.le.s32.totalorder 1, %s17
    %p338 = scmp.lt.s32.totalorder %s17, 3
    %p339 = pnand %p337, %p338
    %p340 = pneg %p339
    // Predicated region
    $region61: #{tpu_custom_call.1} parent=5 // pred_check
      _
    $region62: #{tpu_custom_call.1} parent=5 // pred_check_branch
      %342 = sbr.rel (%p339) target = $region64
    $region63: #{tpu_custom_call.1} parent=5 // pred_region
      %s343 = ssub.s32 %s17, 1
      %s344 = smul.u32 16, %s22
      %p345 = scmp.lt.s32.totalorder %s344, 31
      %s346 = scalar_select %p345, %s344, 31
      %s347 = smul.addr %s346, 8
      %s348 = scalar_lea.vmem %s0, %s347
      %p349 = pneg %p43
      %p350 = pneg %p40
      %p351 = pneg %p64
      %p352 = pneg %p61
      %p353 = pneg %p85
      %p354 = pneg %p82
      %p355 = pneg %p106
      %p356 = pneg %p103
      %p357 = pneg %p127
      %p358 = pneg %p124
      %p359 = pneg %p148
      %p360 = pneg %p145
      %p361 = pneg %p169
      %p362 = pneg %p166
      %p363 = pneg %p190
      %p364 = pneg %p187
      %p365 = pneg %p211
      %p366 = pneg %p208
      %p367 = pneg %p232
      %p368 = pneg %p229
      %p369 = pneg %p253
      %p370 = pneg %p250
      %p371 = pneg %p279
      %p372 = pneg %p276
      %s373 = smul.u32 16, %s22
      %p374 = scmp.lt.s32.totalorder %s373, 31
      %s375 = scalar_select %p374, %s373, 31
      %s376 = smul.addr %s375, 2
      %s377 = smul.addr %s376, 8
      %s378 = scalar_lea.vmem %s11, %s377
      %s379 = smul.u32 16, %s22
      %p380 = scmp.lt.s32.totalorder %s379, 31
      %s381 = scalar_select %p380, %s379, 31
      %s382 = smul.addr %s381, 8
      %s383 = scalar_lea.vmem %s0, %s382
      %s384 = smul.u32 16, %s22
      %s385 = smul.u32 16, %s22
      %p386 = scmp.lt.s32.totalorder %s385, 31
      %s387 = scalar_select %p386, %s385, 31
      %s388 = smul.addr %s387, 2
      %s389 = smul.addr %s388, 8
      %s390 = scalar_lea.vmem %s11, %s389
      %s391 = smul.u32 16, %s22
      %v392 = vld [vmem:[%s383] sm:$0xff]
      %v393 = vld [vmem:[%s383 + $0x8] sm:$0xff]
      %v394 = vld [vmem:[%s383 + $0x10] sm:$0xff]
      %v395 = vld [vmem:[%s383 + $0x18] sm:$0xff]
      %v396 = vld [vmem:[%s383 + $0x20] sm:$0xff]
      %v397 = vld [vmem:[%s383 + $0x28] sm:$0xff]
      %v398 = vld [vmem:[%s383 + $0x30] sm:$0xff]
      %v399 = vld [vmem:[%s383 + $0x38] sm:$0xff]
      %v400 = vld [vmem:[%s383 + $0x40] sm:$0xff]
      %v401 = vld [vmem:[%s383 + $0x48] sm:$0xff]
      %v402 = vld [vmem:[%s383 + $0x50] sm:$0xff]
      %v403 = vld [vmem:[%s383 + $0x58] sm:$0xff]
      %v404 = vld [vmem:[%s383 + $0x60] sm:$0xff]
      %v405 = vld [vmem:[%s383 + $0x68] sm:$0xff]
      %v406 = vld [vmem:[%s383 + $0x70] sm:$0xff]
      %v407 = vld [vmem:[%s383 + $0x78] sm:$0xff]
      %v408 = vadd.f32 %v392, 1.0
      %v409 = vadd.f32 %v393, 1.0
      %v410 = vadd.f32 %v394, 1.0
      %v411 = vadd.f32 %v395, 1.0
      %v412 = vadd.f32 %v396, 1.0
      %v413 = vadd.f32 %v397, 1.0
      %v414 = vadd.f32 %v398, 1.0
      %v415 = vadd.f32 %v399, 1.0
      %v416 = vadd.f32 %v400, 1.0
      %v417 = vadd.f32 %v401, 1.0
      %v418 = vadd.f32 %v402, 1.0
      %v419 = vadd.f32 %v403, 1.0
      %v420 = vadd.f32 %v404, 1.0
      %v421 = vadd.f32 %v405, 1.0
      %v422 = vadd.f32 %v406, 1.0
      %v423 = vadd.f32 %v407, 1.0
      %v424 = vld [vmem:[%s1] sm:$0xff]
      %v425 = vld [vmem:[%s1 + $0x8] sm:$0xff]
      %v426 = vld [vmem:[%s2] sm:$0xf]
      %v427 = vlaneseq
      %v428 = vshrl.u32 %v427, 7
      %v429 = vsub.s32 0, %v428
      %v430 = vrot.slane %v426, %v429
      %vm431 = vcmask 130048
      %v433 = vsel %vm431, %v392, 0
      %v436 = vsel %vm431, %v393, 0
      %v439 = vsel %vm431, %v394, 0
      %v442 = vsel %vm431, %v395, 0
      %v445 = vsel %vm431, %v396, 0
      %v448 = vsel %vm431, %v397, 0
      %v451 = vsel %vm431, %v398, 0
      %v454 = vsel %vm431, %v399, 0
      %v457 = vsel %vm431, %v400, 0
      %v460 = vsel %vm431, %v401, 0
      %v463 = vsel %vm431, %v402, 0
      %v466 = vsel %vm431, %v403, 0
      %v469 = vsel %vm431, %v404, 0
      %v472 = vsel %vm431, %v405, 0
      %v475 = vsel %vm431, %v406, 0
      %v478 = vsel %vm431, %v407, 0
      %480 = vmatprep.subr.mxu0 0.0
      %481 = vmatpush1.msra.mxu0 %v424
      %482 = vmatprep.subr.mxu0 0.0
      %483 = vmatpush1.msra.mxu0 %v425
      %484 = vmatprep.subr.mxu0 0.0
      %485 = vmatpush1.msra.mxu0 0.0
      %486 = vmatprep.subr.mxu0 0.0
      %487 = vmatpush1.msra.mxu0 0.0
      %488 = vmatprep.subr.mxu0 0.0
      %489 = vmatpush1.msra.mxu0 0.0
      %490 = vmatprep.subr.mxu0 0.0
      %491 = vmatpush1.msra.mxu0 0.0
      %492 = vmatprep.subr.mxu0 0.0
      %493 = vmatpush1.msra.mxu0 0.0
      %494 = vmatprep.subr.mxu0 0.0
      %495 = vmatpush1.msra.mxu0 0.0
      %496 = vmatprep.subr.mxu0 0.0
      %497 = vmatpush1.msra.mxu0 0.0
      %498 = vmatprep.subr.mxu0 0.0
      %499 = vmatpush1.msra.mxu0 0.0
      %500 = vmatprep.subr.mxu0 0.0
      %501 = vmatpush1.msra.mxu0 0.0
      %502 = vmatprep.subr.mxu0 0.0
      %503 = vmatpush1.msra.mxu0 0.0
      %504 = vmatprep.subr.mxu0 0.0
      %505 = vmatpush1.msra.mxu0 0.0
      %506 = vmatprep.subr.mxu0 0.0
      %507 = vmatpush1.msra.mxu0 0.0
      %508 = vmatprep.subr.mxu0 0.0
      %509 = vmatpush1.msra.mxu0 0.0
      %510 = vmatprep.subr.mxu0 0.0
      %511 = vmatpush1.msra.mxu0 0.0
      %512 = vmatprep.subr.mxu0 0.0
      %513 = vmatpush1.msra.mxu0 0.0
      %514 = vmatprep.subr.mxu0 0.0
      %515 = vmatpush1.msra.mxu0 0.0
      %516 = vmatprep.subr.mxu0 0.0
      %517 = vmatpush1.msra.mxu0 0.0
      %518 = vmatprep.subr.mxu0 0.0
      %519 = vmatpush1.msra.mxu0 0.0
      %520 = vmatprep.subr.mxu0 0.0
      %521 = vmatpush1.msra.mxu0 0.0
      %522 = vmatprep.subr.mxu0 0.0
      %523 = vmatpush1.msra.mxu0 0.0
      %524 = vmatprep.subr.mxu0 0.0
      %525 = vmatpush1.msra.mxu0 0.0
      %526 = vmatprep.subr.mxu0 0.0
      %527 = vmatpush1.msra.mxu0 0.0
      %528 = vmatprep.subr.mxu0 0.0
      %529 = vmatpush1.msra.mxu0 0.0
      %530 = vmatprep.subr.mxu0 0.0
      %531 = vmatpush1.msra.mxu0 0.0
      %532 = vmatprep.subr.mxu0 0.0
      %533 = vmatpush1.msra.mxu0 0.0
      %534 = vmatprep.subr.mxu0 0.0
      %535 = vmatpush1.msra.mxu0 0.0
      %536 = vmatprep.subr.mxu0 0.0
      %537 = vmatpush1.msra.mxu0 0.0
      %538 = vmatprep.subr.mxu0 0.0
      %539 = vmatpush1.msra.mxu0 0.0
      %540 = vmatprep.subr.mxu0 0.0
      %541 = vmatpush1.msra.mxu0 0.0
      %542 = vmatprep.subr.mxu0 0.0
      %543 = vmatpush1.msra.mxu0 0.0
      %544 = vmatprep.mubr.f32.mxu0 0.0
      %545 = vmatmul.mubr.f32.gmra.mrb[0].mxu0 %v433
      %v546 = vpop.f32.mrb[0].mxu0
      %v547 = vadd.f32 %v430, %v546
      %v548 = vpop.f32.mrb[0].mxu0
      %549 = vmatprep.mubr.f32.mxu0 0.0
      %550 = vmatmul.mubr.f32.gmra.mrb[0].mxu0 %v436
      %v551 = vpop.f32.mrb[0].mxu0
      %v552 = vadd.f32 %v430, %v551
      %v553 = vpop.f32.mrb[0].mxu0
      %554 = vmatprep.mubr.f32.mxu0 0.0
      %555 = vmatmul.mubr.f32.gmra.mrb[0].mxu0 %v439
      %v556 = vpop.f32.mrb[0].mxu0
      %v557 = vadd.f32 %v430, %v556
      %v558 = vpop.f32.mrb[0].mxu0
      %559 = vmatprep.mubr.f32.mxu0 0.0
      %560 = vmatmul.mubr.f32.gmra.mrb[0].mxu0 %v442
      %v561 = vpop.f32.mrb[0].mxu0
      %v562 = vadd.f32 %v430, %v561
      %v563 = vpop.f32.mrb[0].mxu0
      %564 = vmatprep.mubr.f32.mxu0 0.0
      %565 = vmatmul.mubr.f32.gmra.mrb[0].mxu0 %v445
      %v566 = vpop.f32.mrb[0].mxu0
      %v567 = vadd.f32 %v430, %v566
      %v568 = vpop.f32.mrb[0].mxu0
      %569 = vmatprep.mubr.f32.mxu0 0.0
      %570 = vmatmul.mubr.f32.gmra.mrb[0].mxu0 %v448
      %v571 = vpop.f32.mrb[0].mxu0
      %v572 = vadd.f32 %v430, %v571
      %v573 = vpop.f32.mrb[0].mxu0
      %574 = vmatprep.mubr.f32.mxu0 0.0
      %575 = vmatmul.mubr.f32.gmra.mrb[0].mxu0 %v451
      %v576 = vpop.f32.mrb[0].mxu0
      %v577 = vadd.f32 %v430, %v576
      %v578 = vpop.f32.mrb[0].mxu0
      %579 = vmatprep.mubr.f32.mxu0 0.0
      %580 = vmatmul.mubr.f32.gmra.mrb[0].mxu0 %v454
      %v581 = vpop.f32.mrb[0].mxu0
      %v582 = vadd.f32 %v430, %v581
      %v583 = vpop.f32.mrb[0].mxu0
      %584 = vmatprep.mubr.f32.mxu0 0.0
      %585 = vmatmul.mubr.f32.gmra.mrb[0].mxu0 %v457
      %v586 = vpop.f32.mrb[0].mxu0
      %v587 = vadd.f32 %v430, %v586
      %v588 = vpop.f32.mrb[0].mxu0
      %589 = vmatprep.mubr.f32.mxu0 0.0
      %590 = vmatmul.mubr.f32.gmra.mrb[0].mxu0 %v460
      %v591 = vpop.f32.mrb[0].mxu0
      %v592 = vadd.f32 %v430, %v591
      %v593 = vpop.f32.mrb[0].mxu0
      %594 = vmatprep.mubr.f32.mxu0 0.0
      %595 = vmatmul.mubr.f32.gmra.mrb[0].mxu0 %v463
      %v596 = vpop.f32.mrb[0].mxu0
      %v597 = vadd.f32 %v430, %v596
      %v598 = vpop.f32.mrb[0].mxu0
      %599 = vmatprep.mubr.f32.mxu0 0.0
      %600 = vmatmul.mubr.f32.gmra.mrb[0].mxu0 %v466
      %v601 = vpop.f32.mrb[0].mxu0
      %v602 = vadd.f32 %v430, %v601
      %v603 = vpop.f32.mrb[0].mxu0
      %604 = vmatprep.mubr.f32.mxu0 0.0
      %605 = vmatmul.mubr.f32.gmra.mrb[0].mxu0 %v469
      %v606 = vpop.f32.mrb[0].mxu0
      %v607 = vadd.f32 %v430, %v606
      %v608 = vpop.f32.mrb[0].mxu0
      %609 = vmatprep.mubr.f32.mxu0 0.0
      %610 = vmatmul.mubr.f32.gmra.mrb[0].mxu0 %v472
      %v611 = vpop.f32.mrb[0].mxu0
      %v612 = vadd.f32 %v430, %v611
      %v613 = vpop.f32.mrb[0].mxu0
      %614 = vmatprep.mubr.f32.mxu0 0.0
      %615 = vmatmul.mubr.f32.gmra.mrb[0].mxu0 %v475
      %v616 = vpop.f32.mrb[0].mxu0
      %v617 = vadd.f32 %v430, %v616
      %v618 = vpop.f32.mrb[0].mxu0
      %619 = vmatprep.mubr.f32.mxu0 0.0
      %620 = vmatmul.mubr.f32.gmra.mrb[0].mxu0 %v478
      %v621 = vpop.f32.mrb[0].mxu0
      %v622 = vadd.f32 %v430, %v621
      %v623 = vpop.f32.mrb[0].mxu0
      %624 = vdwg.mxu0
      %v625 = vlaneseq
      %v626 = vshrl.u32 %v625, 7
      %v627 = vsub.s32 1, %v626
      %v628 = vrot.slane %v426, %v627
      %v629 = vmul.f32 %v628, %v547
      %v630 = vmul.f32 %v628, %v552
      %v631 = vmul.f32 %v628, %v557
      %v632 = vmul.f32 %v628, %v562
      %v633 = vmul.f32 %v628, %v567
      %v634 = vmul.f32 %v628, %v572
      %v635 = vmul.f32 %v628, %v577
      %v636 = vmul.f32 %v628, %v582
      %v637 = vmul.f32 %v628, %v587
      %v638 = vmul.f32 %v628, %v592
      %v639 = vmul.f32 %v628, %v597
      %v640 = vmul.f32 %v628, %v602
      %v641 = vmul.f32 %v628, %v607
      %v642 = vmul.f32 %v628, %v612
      %v643 = vmul.f32 %v628, %v617
      %v644 = vmul.f32 %v628, %v622
      %v645 = vtanh.pop %v629
      %v646 = vtanh.pop %v630
      %v647 = vtanh.pop %v631
      %v648 = vtanh.pop %v632
      %v649 = vtanh.pop %v633
      %v650 = vtanh.pop %v634
      %v651 = vtanh.pop %v635
      %v652 = vtanh.pop %v636
      %v653 = vtanh.pop %v637
      %v654 = vtanh.pop %v638
      %v655 = vtanh.pop %v639
      %v656 = vtanh.pop %v640
      %v657 = vtanh.pop %v641
      %v658 = vtanh.pop %v642
      %v659 = vtanh.pop %v643
      %v660 = vtanh.pop %v644
      %v661 = vlaneseq
      %v662 = vshrl.u32 %v661, 7
      %v663 = vsub.s32 3, %v662
      %v664 = vrot.slane %v426, %v663
      %v665 = vmul.f32 %v664, %v645
      %v666 = vmul.f32 %v664, %v646
      %v667 = vmul.f32 %v664, %v647
      %v668 = vmul.f32 %v664, %v648
      %v669 = vmul.f32 %v664, %v649
      %v670 = vmul.f32 %v664, %v650
      %v671 = vmul.f32 %v664, %v651
      %v672 = vmul.f32 %v664, %v652
      %v673 = vmul.f32 %v664, %v653
      %v674 = vmul.f32 %v664, %v654
      %v675 = vmul.f32 %v664, %v655
      %v676 = vmul.f32 %v664, %v656
      %v677 = vmul.f32 %v664, %v657
      %v678 = vmul.f32 %v664, %v658
      %v679 = vmul.f32 %v664, %v659
      %v680 = vmul.f32 %v664, %v660
      %v681 = vlaneseq
      %v682 = vshrl.u32 %v681, 7
      %v683 = vsub.s32 2, %v682
      %v684 = vrot.slane %v426, %v683
      %v685 = vadd.f32 %v684, %v665
      %v686 = vadd.f32 %v684, %v666
      %v687 = vadd.f32 %v684, %v667
      %v688 = vadd.f32 %v684, %v668
      %v689 = vadd.f32 %v684, %v669
      %v690 = vadd.f32 %v684, %v670
      %v691 = vadd.f32 %v684, %v671
      %v692 = vadd.f32 %v684, %v672
      %v693 = vadd.f32 %v684, %v673
      %v694 = vadd.f32 %v684, %v674
      %v695 = vadd.f32 %v684, %v675
      %v696 = vadd.f32 %v684, %v676
      %v697 = vadd.f32 %v684, %v677
      %v698 = vadd.f32 %v684, %v678
      %v699 = vadd.f32 %v684, %v679
      %v700 = vadd.f32 %v684, %v680
      %v701 = vmul.f32 %v685, %v547
      %v702 = vmul.f32 %v686, %v552
      %v703 = vmul.f32 %v687, %v557
      %v704 = vmul.f32 %v688, %v562
      %v705 = vmul.f32 %v689, %v567
      %v706 = vmul.f32 %v690, %v572
      %v707 = vmul.f32 %v691, %v577
      %v708 = vmul.f32 %v692, %v582
      %v709 = vmul.f32 %v693, %v587
      %v710 = vmul.f32 %v694, %v592
      %v711 = vmul.f32 %v695, %v597
      %v712 = vmul.f32 %v696, %v602
      %v713 = vmul.f32 %v697, %v607
      %v714 = vmul.f32 %v698, %v612
      %v715 = vmul.f32 %v699, %v617
      %v716 = vmul.f32 %v700, %v622
      %v717 = vld [vmem:[%s3] sm:$0xff]
      %v718 = vld [vmem:[%s3 + $0x8] sm:$0xff]
      %v719 = vld [vmem:[%s3 + $0x10] sm:$0xff]
      %v720 = vld [vmem:[%s3 + $0x18] sm:$0xff]
      %v721 = vld [vmem:[%s4] sm:$0xf]
      %v722 = vlaneseq
      %v723 = vshrl.u32 %v722, 7
      %v724 = vsub.s32 0, %v723
      %v725 = vrot.slane %v721, %v724
      %vm726 = vcmask 261120
      %v728 = vsel %vm726, %v701, 0
      %v731 = vsel %vm726, %v702, 0
      %v734 = vsel %vm726, %v703, 0
      %v737 = vsel %vm726, %v704, 0
      %v740 = vsel %vm726, %v705, 0
      %v743 = vsel %vm726, %v706, 0
      %v746 = vsel %vm726, %v707, 0
      %v749 = vsel %vm726, %v708, 0
      %v752 = vsel %vm726, %v709, 0
      %v755 = vsel %vm726, %v710, 0
      %v758 = vsel %vm726, %v711, 0
      %v761 = vsel %vm726, %v712, 0
      %v764 = vsel %vm726, %v713, 0
      %v767 = vsel %vm726, %v714, 0
      %v770 = vsel %vm726, %v715, 0
      %v773 = vsel %vm726, %v716, 0
      %775 = vmatprep.subr.mxu0 0.0
      %776 = vmatpush1.msra.mxu0 %v717
      %777 = vmatprep.subr.mxu0 0.0
      %778 = vmatpush1.msra.mxu0 %v718
      %779 = vmatprep.subr.mxu0 0.0
      %780 = vmatpush1.msra.mxu0 %v719
      %781 = vmatprep.subr.mxu0 0.0
      %782 = vmatpush1.msra.mxu0 %v720
      %783 = vmatprep.subr.mxu0 0.0
      %784 = vmatpush1.msra.mxu0 0.0
      %785 = vmatprep.subr.mxu0 0.0
      %786 = vmatpush1.msra.mxu0 0.0
      %787 = vmatprep.subr.mxu0 0.0
      %788 = vmatpush1.msra.mxu0 0.0
      %789 = vmatprep.subr.mxu0 0.0
      %790 = vmatpush1.msra.mxu0 0.0
      %791 = vmatprep.subr.mxu0 0.0
      %792 = vmatpush1.msra.mxu0 0.0
      %793 = vmatprep.subr.mxu0 0.0
      %794 = vmatpush1.msra.mxu0 0.0
      %795 = vmatprep.subr.mxu0 0.0
      %796 = vmatpush1.msra.mxu0 0.0
      %797 = vmatprep.subr.mxu0 0.0
      %798 = vmatpush1.msra.mxu0 0.0
      %799 = vmatprep.subr.mxu0 0.0
      %800 = vmatpush1.msra.mxu0 0.0
      %801 = vmatprep.subr.mxu0 0.0
      %802 = vmatpush1.msra.mxu0 0.0
      %803 = vmatprep.subr.mxu0 0.0
      %804 = vmatpush1.msra.mxu0 0.0
      %805 = vmatprep.subr.mxu0 0.0
      %806 = vmatpush1.msra.mxu0 0.0
      %807 = vmatprep.subr.mxu0 0.0
      %808 = vmatpush1.msra.mxu0 0.0
      %809 = vmatprep.subr.mxu0 0.0
      %810 = vmatpush1.msra.mxu0 0.0
      %811 = vmatprep.subr.mxu0 0.0
      %812 = vmatpush1.msra.mxu0 0.0
      %813 = vmatprep.subr.mxu0 0.0
      %814 = vmatpush1.msra.mxu0 0.0
      %815 = vmatprep.subr.mxu0 0.0
      %816 = vmatpush1.msra.mxu0 0.0
      %817 = vmatprep.subr.mxu0 0.0
      %818 = vmatpush1.msra.mxu0 0.0
      %819 = vmatprep.subr.mxu0 0.0
      %820 = vmatpush1.msra.mxu0 0.0
      %821 = vmatprep.subr.mxu0 0.0
      %822 = vmatpush1.msra.mxu0 0.0
      %823 = vmatprep.subr.mxu0 0.0
      %824 = vmatpush1.msra.mxu0 0.0
      %825 = vmatprep.subr.mxu0 0.0
      %826 = vmatpush1.msra.mxu0 0.0
      %827 = vmatprep.subr.mxu0 0.0
      %828 = vmatpush1.msra.mxu0 0.0
      %829 = vmatprep.subr.mxu0 0.0
      %830 = vmatpush1.msra.mxu0 0.0
      %831 = vmatprep.subr.mxu0 0.0
      %832 = vmatpush1.msra.mxu0 0.0
      %833 = vmatprep.subr.mxu0 0.0
      %834 = vmatpush1.msra.mxu0 0.0
      %835 = vmatprep.subr.mxu0 0.0
      %836 = vmatpush1.msra.mxu0 0.0
      %837 = vmatprep.subr.mxu0 0.0
      %838 = vmatpush1.msra.mxu0 0.0
      %839 = vmatprep.mubr.f32.mxu0 0.0
      %840 = vmatmul.mubr.f32.gmra.mrb[0].mxu0 %v728
      %v841 = vpop.f32.mrb[0].mxu0
      %v842 = vadd.f32 %v725, %v841
      %v843 = vpop.f32.mrb[0].mxu0
      %844 = vmatprep.mubr.f32.mxu0 0.0
      %845 = vmatmul.mubr.f32.gmra.mrb[0].mxu0 %v731
      %v846 = vpop.f32.mrb[0].mxu0
      %v847 = vadd.f32 %v725, %v846
      %v848 = vpop.f32.mrb[0].mxu0
      %849 = vmatprep.mubr.f32.mxu0 0.0
      %850 = vmatmul.mubr.f32.gmra.mrb[0].mxu0 %v734
      %v851 = vpop.f32.mrb[0].mxu0
      %v852 = vadd.f32 %v725, %v851
      %v853 = vpop.f32.mrb[0].mxu0
      %854 = vmatprep.mubr.f32.mxu0 0.0
      %855 = vmatmul.mubr.f32.gmra.mrb[0].mxu0 %v737
      %v856 = vpop.f32.mrb[0].mxu0
      %v857 = vadd.f32 %v725, %v856
      %v858 = vpop.f32.mrb[0].mxu0
      %859 = vmatprep.mubr.f32.mxu0 0.0
      %860 = vmatmul.mubr.f32.gmra.mrb[0].mxu0 %v740
      %v861 = vpop.f32.mrb[0].mxu0
      %v862 = vadd.f32 %v725, %v861
      %v863 = vpop.f32.mrb[0].mxu0
      %864 = vmatprep.mubr.f32.mxu0 0.0
      %865 = vmatmul.mubr.f32.gmra.mrb[0].mxu0 %v743
      %v866 = vpop.f32.mrb[0].mxu0
      %v867 = vadd.f32 %v725, %v866
      %v868 = vpop.f32.mrb[0].mxu0
      %869 = vmatprep.mubr.f32.mxu0 0.0
      %870 = vmatmul.mubr.f32.gmra.mrb[0].mxu0 %v746
      %v871 = vpop.f32.mrb[0].mxu0
      %v872 = vadd.f32 %v725, %v871
      %v873 = vpop.f32.mrb[0].mxu0
      %874 = vmatprep.mubr.f32.mxu0 0.0
      %875 = vmatmul.mubr.f32.gmra.mrb[0].mxu0 %v749
      %v876 = vpop.f32.mrb[0].mxu0
      %v877 = vadd.f32 %v725, %v876
      %v878 = vpop.f32.mrb[0].mxu0
      %879 = vmatprep.mubr.f32.mxu0 0.0
      %880 = vmatmul.mubr.f32.gmra.mrb[0].mxu0 %v752
      %v881 = vpop.f32.mrb[0].mxu0
      %v882 = vadd.f32 %v725, %v881
      %v883 = vpop.f32.mrb[0].mxu0
      %884 = vmatprep.mubr.f32.mxu0 0.0
      %885 = vmatmul.mubr.f32.gmra.mrb[0].mxu0 %v755
      %v886 = vpop.f32.mrb[0].mxu0
      %v887 = vadd.f32 %v725, %v886
      %v888 = vpop.f32.mrb[0].mxu0
      %889 = vmatprep.mubr.f32.mxu0 0.0
      %890 = vmatmul.mubr.f32.gmra.mrb[0].mxu0 %v758
      %v891 = vpop.f32.mrb[0].mxu0
      %v892 = vadd.f32 %v725, %v891
      %v893 = vpop.f32.mrb[0].mxu0
      %894 = vmatprep.mubr.f32.mxu0 0.0
      %895 = vmatmul.mubr.f32.gmra.mrb[0].mxu0 %v761
      %v896 = vpop.f32.mrb[0].mxu0
      %v897 = vadd.f32 %v725, %v896
      %v898 = vpop.f32.mrb[0].mxu0
      %899 = vmatprep.mubr.f32.mxu0 0.0
      %900 = vmatmul.mubr.f32.gmra.mrb[0].mxu0 %v764
      %v901 = vpop.f32.mrb[0].mxu0
      %v902 = vadd.f32 %v725, %v901
      %v903 = vpop.f32.mrb[0].mxu0
      %904 = vmatprep.mubr.f32.mxu0 0.0
      %905 = vmatmul.mubr.f32.gmra.mrb[0].mxu0 %v767
      %v906 = vpop.f32.mrb[0].mxu0
      %v907 = vadd.f32 %v725, %v906
      %v908 = vpop.f32.mrb[0].mxu0
      %909 = vmatprep.mubr.f32.mxu0 0.0
      %910 = vmatmul.mubr.f32.gmra.mrb[0].mxu0 %v770
      %v911 = vpop.f32.mrb[0].mxu0
      %v912 = vadd.f32 %v725, %v911
      %v913 = vpop.f32.mrb[0].mxu0
      %914 = vmatprep.mubr.f32.mxu0 0.0
      %915 = vmatmul.mubr.f32.gmra.mrb[0].mxu0 %v773
      %v916 = vpop.f32.mrb[0].mxu0
      %v917 = vadd.f32 %v725, %v916
      %v918 = vpop.f32.mrb[0].mxu0
      %919 = vdwg.mxu0
      %v920 = vlaneseq
      %v921 = vshrl.u32 %v920, 7
      %v922 = vsub.s32 1, %v921
      %v923 = vrot.slane %v721, %v922
      %v924 = vmul.f32 %v923, %v842
      %v925 = vmul.f32 %v923, %v847
      %v926 = vmul.f32 %v923, %v852
      %v927 = vmul.f32 %v923, %v857
      %v928 = vmul.f32 %v923, %v862
      %v929 = vmul.f32 %v923, %v867
      %v930 = vmul.f32 %v923, %v872
      %v931 = vmul.f32 %v923, %v877
      %v932 = vmul.f32 %v923, %v882
      %v933 = vmul.f32 %v923, %v887
      %v934 = vmul.f32 %v923, %v892
      %v935 = vmul.f32 %v923, %v897
      %v936 = vmul.f32 %v923, %v902
      %v937 = vmul.f32 %v923, %v907
      %v938 = vmul.f32 %v923, %v912
      %v939 = vmul.f32 %v923, %v917
      %v940 = vtanh.pop %v924
      %v941 = vtanh.pop %v925
      %v942 = vtanh.pop %v926
      %v943 = vtanh.pop %v927
      %v944 = vtanh.pop %v928
      %v945 = vtanh.pop %v929
      %v946 = vtanh.pop %v930
      %v947 = vtanh.pop %v931
      %v948 = vtanh.pop %v932
      %v949 = vtanh.pop %v933
      %v950 = vtanh.pop %v934
      %v951 = vtanh.pop %v935
      %v952 = vtanh.pop %v936
      %v953 = vtanh.pop %v937
      %v954 = vtanh.pop %v938
      %v955 = vtanh.pop %v939
      %v956 = vlaneseq
      %v957 = vshrl.u32 %v956, 7
      %v958 = vsub.s32 3, %v957
      %v959 = vrot.slane %v721, %v958
      %v960 = vmul.f32 %v959, %v940
      %v961 = vmul.f32 %v959, %v941
      %v962 = vmul.f32 %v959, %v942
      %v963 = vmul.f32 %v959, %v943
      %v964 = vmul.f32 %v959, %v944
      %v965 = vmul.f32 %v959, %v945
      %v966 = vmul.f32 %v959, %v946
      %v967 = vmul.f32 %v959, %v947
      %v968 = vmul.f32 %v959, %v948
      %v969 = vmul.f32 %v959, %v949
      %v970 = vmul.f32 %v959, %v950
      %v971 = vmul.f32 %v959, %v951
      %v972 = vmul.f32 %v959, %v952
      %v973 = vmul.f32 %v959, %v953
      %v974 = vmul.f32 %v959, %v954
      %v975 = vmul.f32 %v959, %v955
      %v976 = vlaneseq
      %v977 = vshrl.u32 %v976, 7
      %v978 = vsub.s32 2, %v977
      %v979 = vrot.slane %v721, %v978
      %v980 = vadd.f32 %v979, %v960
      %v981 = vadd.f32 %v979, %v961
      %v982 = vadd.f32 %v979, %v962
      %v983 = vadd.f32 %v979, %v963
      %v984 = vadd.f32 %v979, %v964
      %v985 = vadd.f32 %v979, %v965
      %v986 = vadd.f32 %v979, %v966
      %v987 = vadd.f32 %v979, %v967
      %v988 = vadd.f32 %v979, %v968
      %v989 = vadd.f32 %v979, %v969
      %v990 = vadd.f32 %v979, %v970
      %v991 = vadd.f32 %v979, %v971
      %v992 = vadd.f32 %v979, %v972
      %v993 = vadd.f32 %v979, %v973
      %v994 = vadd.f32 %v979, %v974
      %v995 = vadd.f32 %v979, %v975
      %v996 = vmul.f32 %v980, %v842
      %v997 = vmul.f32 %v981, %v847
      %v998 = vmul.f32 %v982, %v852
      %v999 = vmul.f32 %v983, %v857
      %v1000 = vmul.f32 %v984, %v862
      %v1001 = vmul.f32 %v985, %v867
      %v1002 = vmul.f32 %v986, %v872
      %v1003 = vmul.f32 %v987, %v877
      %v1004 = vmul.f32 %v988, %v882
      %v1005 = vmul.f32 %v989, %v887
      %v1006 = vmul.f32 %v990, %v892
      %v1007 = vmul.f32 %v991, %v897
      %v1008 = vmul.f32 %v992, %v902
      %v1009 = vmul.f32 %v993, %v907
      %v1010 = vmul.f32 %v994, %v912
      %v1011 = vmul.f32 %v995, %v917
      %v1012 = vld [vmem:[%s5] sm:$0xff]
      %v1013 = vld [vmem:[%s5 + $0x8] sm:$0xff]
      %v1014 = vld [vmem:[%s5 + $0x10] sm:$0xff]
      %v1015 = vld [vmem:[%s5 + $0x18] sm:$0xff]
      %v1016 = vld [vmem:[%s6] sm:$0xf]
      %v1017 = vlaneseq
      %v1018 = vshrl.u32 %v1017, 7
      %v1019 = vsub.s32 0, %v1018
      %v1020 = vrot.slane %v1016, %v1019
      %v1022 = vsel %vm726, %v996, 0
      %v1025 = vsel %vm726, %v997, 0
      %v1028 = vsel %vm726, %v998, 0
      %v1031 = vsel %vm726, %v999, 0
      %v1034 = vsel %vm726, %v1000, 0
      %v1037 = vsel %vm726, %v1001, 0
      %v1040 = vsel %vm726, %v1002, 0
      %v1043 = vsel %vm726, %v1003, 0
      %v1046 = vsel %vm726, %v1004, 0
      %v1049 = vsel %vm726, %v1005, 0
      %v1052 = vsel %vm726, %v1006, 0
      %v1055 = vsel %vm726, %v1007, 0
      %v1058 = vsel %vm726, %v1008, 0
      %v1061 = vsel %vm726, %v1009, 0
      %v1064 = vsel %vm726, %v1010, 0
      %v1067 = vsel %vm726, %v1011, 0
      %1069 = vmatprep.subr.mxu0 0.0
      %1070 = vmatpush1.msra.mxu0 %v1012
      %1071 = vmatprep.subr.mxu0 0.0
      %1072 = vmatpush1.msra.mxu0 %v1013
      %1073 = vmatprep.subr.mxu0 0.0
      %1074 = vmatpush1.msra.mxu0 %v1014
      %1075 = vmatprep.subr.mxu0 0.0
      %1076 = vmatpush1.msra.mxu0 %v1015
      %1077 = vmatprep.subr.mxu0 0.0
      %1078 = vmatpush1.msra.mxu0 0.0
      %1079 = vmatprep.subr.mxu0 0.0
      %1080 = vmatpush1.msra.mxu0 0.0
      %1081 = vmatprep.subr.mxu0 0.0
      %1082 = vmatpush1.msra.mxu0 0.0
      %1083 = vmatprep.subr.mxu0 0.0
      %1084 = vmatpush1.msra.mxu0 0.0
      %1085 = vmatprep.subr.mxu0 0.0
      %1086 = vmatpush1.msra.mxu0 0.0
      %1087 = vmatprep.subr.mxu0 0.0
      %1088 = vmatpush1.msra.mxu0 0.0
      %1089 = vmatprep.subr.mxu0 0.0
      %1090 = vmatpush1.msra.mxu0 0.0
      %1091 = vmatprep.subr.mxu0 0.0
      %1092 = vmatpush1.msra.mxu0 0.0
      %1093 = vmatprep.subr.mxu0 0.0
      %1094 = vmatpush1.msra.mxu0 0.0
      %1095 = vmatprep.subr.mxu0 0.0
      %1096 = vmatpush1.msra.mxu0 0.0
      %1097 = vmatprep.subr.mxu0 0.0
      %1098 = vmatpush1.msra.mxu0 0.0
      %1099 = vmatprep.subr.mxu0 0.0
      %1100 = vmatpush1.msra.mxu0 0.0
      %1101 = vmatprep.subr.mxu0 0.0
      %1102 = vmatpush1.msra.mxu0 0.0
      %1103 = vmatprep.subr.mxu0 0.0
      %1104 = vmatpush1.msra.mxu0 0.0
      %1105 = vmatprep.subr.mxu0 0.0
      %1106 = vmatpush1.msra.mxu0 0.0
      %1107 = vmatprep.subr.mxu0 0.0
      %1108 = vmatpush1.msra.mxu0 0.0
      %1109 = vmatprep.subr.mxu0 0.0
      %1110 = vmatpush1.msra.mxu0 0.0
      %1111 = vmatprep.subr.mxu0 0.0
      %1112 = vmatpush1.msra.mxu0 0.0
      %1113 = vmatprep.subr.mxu0 0.0
      %1114 = vmatpush1.msra.mxu0 0.0
      %1115 = vmatprep.subr.mxu0 0.0
      %1116 = vmatpush1.msra.mxu0 0.0
      %1117 = vmatprep.subr.mxu0 0.0
      %1118 = vmatpush1.msra.mxu0 0.0
      %1119 = vmatprep.subr.mxu0 0.0
      %1120 = vmatpush1.msra.mxu0 0.0
      %1121 = vmatprep.subr.mxu0 0.0
      %1122 = vmatpush1.msra.mxu0 0.0
      %1123 = vmatprep.subr.mxu0 0.0
      %1124 = vmatpush1.msra.mxu0 0.0
      %1125 = vmatprep.subr.mxu0 0.0
      %1126 = vmatpush1.msra.mxu0 0.0
      %1127 = vmatprep.subr.mxu0 0.0
      %1128 = vmatpush1.msra.mxu0 0.0
      %1129 = vmatprep.subr.mxu0 0.0
      %1130 = vmatpush1.msra.mxu0 0.0
      %1131 = vmatprep.subr.mxu0 0.0
      %1132 = vmatpush1.msra.mxu0 0.0
      %1133 = vmatprep.mubr.f32.mxu0 0.0
      %1134 = vmatmul.mubr.f32.gmra.mrb[0].mxu0 %v1022
      %v1135 = vpop.f32.mrb[0].mxu0
      %v1136 = vadd.f32 %v1020, %v1135
      %v1137 = vpop.f32.mrb[0].mxu0
      %1138 = vmatprep.mubr.f32.mxu0 0.0
      %1139 = vmatmul.mubr.f32.gmra.mrb[0].mxu0 %v1025
      %v1140 = vpop.f32.mrb[0].mxu0
      %v1141 = vadd.f32 %v1020, %v1140
      %v1142 = vpop.f32.mrb[0].mxu0
      %1143 = vmatprep.mubr.f32.mxu0 0.0
      %1144 = vmatmul.mubr.f32.gmra.mrb[0].mxu0 %v1028
      %v1145 = vpop.f32.mrb[0].mxu0
      %v1146 = vadd.f32 %v1020, %v1145
      %v1147 = vpop.f32.mrb[0].mxu0
      %1148 = vmatprep.mubr.f32.mxu0 0.0
      %1149 = vmatmul.mubr.f32.gmra.mrb[0].mxu0 %v1031
      %v1150 = vpop.f32.mrb[0].mxu0
      %v1151 = vadd.f32 %v1020, %v1150
      %v1152 = vpop.f32.mrb[0].mxu0
      %1153 = vmatprep.mubr.f32.mxu0 0.0
      %1154 = vmatmul.mubr.f32.gmra.mrb[0].mxu0 %v1034
      %v1155 = vpop.f32.mrb[0].mxu0
      %v1156 = vadd.f32 %v1020, %v1155
      %v1157 = vpop.f32.mrb[0].mxu0
      %1158 = vmatprep.mubr.f32.mxu0 0.0
      %1159 = vmatmul.mubr.f32.gmra.mrb[0].mxu0 %v1037
      %v1160 = vpop.f32.mrb[0].mxu0
      %v1161 = vadd.f32 %v1020, %v1160
      %v1162 = vpop.f32.mrb[0].mxu0
      %1163 = vmatprep.mubr.f32.mxu0 0.0
      %1164 = vmatmul.mubr.f32.gmra.mrb[0].mxu0 %v1040
      %v1165 = vpop.f32.mrb[0].mxu0
      %v1166 = vadd.f32 %v1020, %v1165
      %v1167 = vpop.f32.mrb[0].mxu0
      %1168 = vmatprep.mubr.f32.mxu0 0.0
      %1169 = vmatmul.mubr.f32.gmra.mrb[0].mxu0 %v1043
      %v1170 = vpop.f32.mrb[0].mxu0
      %v1171 = vadd.f32 %v1020, %v1170
      %v1172 = vpop.f32.mrb[0].mxu0
      %1173 = vmatprep.mubr.f32.mxu0 0.0
      %1174 = vmatmul.mubr.f32.gmra.mrb[0].mxu0 %v1046
      %v1175 = vpop.f32.mrb[0].mxu0
      %v1176 = vadd.f32 %v1020, %v1175
      %v1177 = vpop.f32.mrb[0].mxu0
      %1178 = vmatprep.mubr.f32.mxu0 0.0
      %1179 = vmatmul.mubr.f32.gmra.mrb[0].mxu0 %v1049
      %v1180 = vpop.f32.mrb[0].mxu0
      %v1181 = vadd.f32 %v1020, %v1180
      %v1182 = vpop.f32.mrb[0].mxu0
      %1183 = vmatprep.mubr.f32.mxu0 0.0
      %1184 = vmatmul.mubr.f32.gmra.mrb[0].mxu0 %v1052
      %v1185 = vpop.f32.mrb[0].mxu0
      %v1186 = vadd.f32 %v1020, %v1185
      %v1187 = vpop.f32.mrb[0].mxu0
      %1188 = vmatprep.mubr.f32.mxu0 0.0
      %1189 = vmatmul.mubr.f32.gmra.mrb[0].mxu0 %v1055
      %v1190 = vpop.f32.mrb[0].mxu0
      %v1191 = vadd.f32 %v1020, %v1190
      %v1192 = vpop.f32.mrb[0].mxu0
      %1193 = vmatprep.mubr.f32.mxu0 0.0
      %1194 = vmatmul.mubr.f32.gmra.mrb[0].mxu0 %v1058
      %v1195 = vpop.f32.mrb[0].mxu0
      %v1196 = vadd.f32 %v1020, %v1195
      %v1197 = vpop.f32.mrb[0].mxu0
      %1198 = vmatprep.mubr.f32.mxu0 0.0
      %1199 = vmatmul.mubr.f32.gmra.mrb[0].mxu0 %v1061
      %v1200 = vpop.f32.mrb[0].mxu0
      %v1201 = vadd.f32 %v1020, %v1200
      %v1202 = vpop.f32.mrb[0].mxu0
      %1203 = vmatprep.mubr.f32.mxu0 0.0
      %1204 = vmatmul.mubr.f32.gmra.mrb[0].mxu0 %v1064
      %v1205 = vpop.f32.mrb[0].mxu0
      %v1206 = vadd.f32 %v1020, %v1205
      %v1207 = vpop.f32.mrb[0].mxu0
      %1208 = vmatprep.mubr.f32.mxu0 0.0
      %1209 = vmatmul.mubr.f32.gmra.mrb[0].mxu0 %v1067
      %v1210 = vpop.f32.mrb[0].mxu0
      %v1211 = vadd.f32 %v1020, %v1210
      %v1212 = vpop.f32.mrb[0].mxu0
      %1213 = vdwg.mxu0
      %v1214 = vlaneseq
      %v1215 = vshrl.u32 %v1214, 7
      %v1216 = vsub.s32 1, %v1215
      %v1217 = vrot.slane %v1016, %v1216
      %v1218 = vmul.f32 %v1217, %v1136
      %v1219 = vmul.f32 %v1217, %v1141
      %v1220 = vmul.f32 %v1217, %v1146
      %v1221 = vmul.f32 %v1217, %v1151
      %v1222 = vmul.f32 %v1217, %v1156
      %v1223 = vmul.f32 %v1217, %v1161
      %v1224 = vmul.f32 %v1217, %v1166
      %v1225 = vmul.f32 %v1217, %v1171
      %v1226 = vmul.f32 %v1217, %v1176
      %v1227 = vmul.f32 %v1217, %v1181
      %v1228 = vmul.f32 %v1217, %v1186
      %v1229 = vmul.f32 %v1217, %v1191
      %v1230 = vmul.f32 %v1217, %v1196
      %v1231 = vmul.f32 %v1217, %v1201
      %v1232 = vmul.f32 %v1217, %v1206
      %v1233 = vmul.f32 %v1217, %v1211
      %v1234 = vtanh.pop %v1218
      %v1235 = vtanh.pop %v1219
      %v1236 = vtanh.pop %v1220
      %v1237 = vtanh.pop %v1221
      %v1238 = vtanh.pop %v1222
      %v1239 = vtanh.pop %v1223
      %v1240 = vtanh.pop %v1224
      %v1241 = vtanh.pop %v1225
      %v1242 = vtanh.pop %v1226
      %v1243 = vtanh.pop %v1227
      %v1244 = vtanh.pop %v1228
      %v1245 = vtanh.pop %v1229
      %v1246 = vtanh.pop %v1230
      %v1247 = vtanh.pop %v1231
      %v1248 = vtanh.pop %v1232
      %v1249 = vtanh.pop %v1233
      %v1250 = vlaneseq
      %v1251 = vshrl.u32 %v1250, 7
      %v1252 = vsub.s32 3, %v1251
      %v1253 = vrot.slane %v1016, %v1252
      %v1254 = vmul.f32 %v1253, %v1234
      %v1255 = vmul.f32 %v1253, %v1235
      %v1256 = vmul.f32 %v1253, %v1236
      %v1257 = vmul.f32 %v1253, %v1237
      %v1258 = vmul.f32 %v1253, %v1238
      %v1259 = vmul.f32 %v1253, %v1239
      %v1260 = vmul.f32 %v1253, %v1240
      %v1261 = vmul.f32 %v1253, %v1241
      %v1262 = vmul.f32 %v1253, %v1242
      %v1263 = vmul.f32 %v1253, %v1243
      %v1264 = vmul.f32 %v1253, %v1244
      %v1265 = vmul.f32 %v1253, %v1245
      %v1266 = vmul.f32 %v1253, %v1246
      %v1267 = vmul.f32 %v1253, %v1247
      %v1268 = vmul.f32 %v1253, %v1248
      %v1269 = vmul.f32 %v1253, %v1249
      %v1270 = vlaneseq
      %v1271 = vshrl.u32 %v1270, 7
      %v1272 = vsub.s32 2, %v1271
      %v1273 = vrot.slane %v1016, %v1272
      %v1274 = vadd.f32 %v1273, %v1254
      %v1275 = vadd.f32 %v1273, %v1255
      %v1276 = vadd.f32 %v1273, %v1256
      %v1277 = vadd.f32 %v1273, %v1257
      %v1278 = vadd.f32 %v1273, %v1258
      %v1279 = vadd.f32 %v1273, %v1259
      %v1280 = vadd.f32 %v1273, %v1260
      %v1281 = vadd.f32 %v1273, %v1261
      %v1282 = vadd.f32 %v1273, %v1262
      %v1283 = vadd.f32 %v1273, %v1263
      %v1284 = vadd.f32 %v1273, %v1264
      %v1285 = vadd.f32 %v1273, %v1265
      %v1286 = vadd.f32 %v1273, %v1266
      %v1287 = vadd.f32 %v1273, %v1267
      %v1288 = vadd.f32 %v1273, %v1268
      %v1289 = vadd.f32 %v1273, %v1269
      %v1290 = vmul.f32 %v1274, %v1136
      %v1291 = vmul.f32 %v1275, %v1141
      %v1292 = vmul.f32 %v1276, %v1146
      %v1293 = vmul.f32 %v1277, %v1151
      %v1294 = vmul.f32 %v1278, %v1156
      %v1295 = vmul.f32 %v1279, %v1161
      %v1296 = vmul.f32 %v1280, %v1166
      %v1297 = vmul.f32 %v1281, %v1171
      %v1298 = vmul.f32 %v1282, %v1176
      %v1299 = vmul.f32 %v1283, %v1181
      %v1300 = vmul.f32 %v1284, %v1186
      %v1301 = vmul.f32 %v1285, %v1191
      %v1302 = vmul.f32 %v1286, %v1196
      %v1303 = vmul.f32 %v1287, %v1201
      %v1304 = vmul.f32 %v1288, %v1206
      %v1305 = vmul.f32 %v1289, %v1211
      %v1306 = vld [vmem:[%s7] sm:$0xff]
      %v1307 = vld [vmem:[%s7 + $0x8] sm:$0xff]
      %v1308 = vld [vmem:[%s7 + $0x10] sm:$0xff]
      %v1309 = vld [vmem:[%s7 + $0x18] sm:$0xff]
      %v1310 = vld [vmem:[%s8] sm:$0x1]
      %v1312 = vlaneseq
      %v1313 = vshrl.u32 %v1312, 7
      %v1314 = vsub.s32 0, %v1313
      %v1315 = vrot.slane %v1310, %v1314
      %v1318 = vsel %vm726, %v1290, 0
      %v1321 = vsel %vm726, %v1291, 0
      %v1324 = vsel %vm726, %v1292, 0
      %v1327 = vsel %vm726, %v1293, 0
      %v1330 = vsel %vm726, %v1294, 0
      %v1333 = vsel %vm726, %v1295, 0
      %v1336 = vsel %vm726, %v1296, 0
      %v1339 = vsel %vm726, %v1297, 0
      %v1342 = vsel %vm726, %v1298, 0
      %v1345 = vsel %vm726, %v1299, 0
      %v1348 = vsel %vm726, %v1300, 0
      %v1351 = vsel %vm726, %v1301, 0
      %v1354 = vsel %vm726, %v1302, 0
      %v1357 = vsel %vm726, %v1303, 0
      %v1360 = vsel %vm726, %v1304, 0
      %v1363 = vsel %vm726, %v1305, 0
      %1365 = vmatprep.subr.mxu0 0.0
      %1366 = vmatpush1.msra.mxu0 %v1306
      %1367 = vmatprep.subr.mxu0 0.0
      %1368 = vmatpush1.msra.mxu0 %v1307
      %1369 = vmatprep.subr.mxu0 0.0
      %1370 = vmatpush1.msra.mxu0 %v1308
      %1371 = vmatprep.subr.mxu0 0.0
      %1372 = vmatpush1.msra.mxu0 %v1309
      %1373 = vmatprep.subr.mxu0 0.0
      %1374 = vmatpush1.msra.mxu0 0.0
      %1375 = vmatprep.subr.mxu0 0.0
      %1376 = vmatpush1.msra.mxu0 0.0
      %1377 = vmatprep.subr.mxu0 0.0
      %1378 = vmatpush1.msra.mxu0 0.0
      %1379 = vmatprep.subr.mxu0 0.0
      %1380 = vmatpush1.msra.mxu0 0.0
      %1381 = vmatprep.subr.mxu0 0.0
      %1382 = vmatpush1.msra.mxu0 0.0
      %1383 = vmatprep.subr.mxu0 0.0
      %1384 = vmatpush1.msra.mxu0 0.0
      %1385 = vmatprep.subr.mxu0 0.0
      %1386 = vmatpush1.msra.mxu0 0.0
      %1387 = vmatprep.subr.mxu0 0.0
      %1388 = vmatpush1.msra.mxu0 0.0
      %1389 = vmatprep.subr.mxu0 0.0
      %1390 = vmatpush1.msra.mxu0 0.0
      %1391 = vmatprep.subr.mxu0 0.0
      %1392 = vmatpush1.msra.mxu0 0.0
      %1393 = vmatprep.subr.mxu0 0.0
      %1394 = vmatpush1.msra.mxu0 0.0
      %1395 = vmatprep.subr.mxu0 0.0
      %1396 = vmatpush1.msra.mxu0 0.0
      %1397 = vmatprep.subr.mxu0 0.0
      %1398 = vmatpush1.msra.mxu0 0.0
      %1399 = vmatprep.subr.mxu0 0.0
      %1400 = vmatpush1.msra.mxu0 0.0
      %1401 = vmatprep.subr.mxu0 0.0
      %1402 = vmatpush1.msra.mxu0 0.0
      %1403 = vmatprep.subr.mxu0 0.0
      %1404 = vmatpush1.msra.mxu0 0.0
      %1405 = vmatprep.subr.mxu0 0.0
      %1406 = vmatpush1.msra.mxu0 0.0
      %1407 = vmatprep.subr.mxu0 0.0
      %1408 = vmatpush1.msra.mxu0 0.0
      %1409 = vmatprep.subr.mxu0 0.0
      %1410 = vmatpush1.msra.mxu0 0.0
      %1411 = vmatprep.subr.mxu0 0.0
      %1412 = vmatpush1.msra.mxu0 0.0
      %1413 = vmatprep.subr.mxu0 0.0
      %1414 = vmatpush1.msra.mxu0 0.0
      %1415 = vmatprep.subr.mxu0 0.0
      %1416 = vmatpush1.msra.mxu0 0.0
      %1417 = vmatprep.subr.mxu0 0.0
      %1418 = vmatpush1.msra.mxu0 0.0
      %1419 = vmatprep.subr.mxu0 0.0
      %1420 = vmatpush1.msra.mxu0 0.0
      %1421 = vmatprep.subr.mxu0 0.0
      %1422 = vmatpush1.msra.mxu0 0.0
      %1423 = vmatprep.subr.mxu0 0.0
      %1424 = vmatpush1.msra.mxu0 0.0
      %1425 = vmatprep.subr.mxu0 0.0
      %1426 = vmatpush1.msra.mxu0 0.0
      %1427 = vmatprep.subr.mxu0 0.0
      %1428 = vmatpush1.msra.mxu0 0.0
      %1429 = vmatprep.mubr.f32.mxu0 0.0
      %1430 = vmatmul.mubr.f32.gmra.mrb[0].mxu0 %v1318
      %v1431 = vpop.f32.mrb[0].mxu0
      %v1432 = vadd.f32 %v1315, %v1431
      %v1433 = vpop.f32.mrb[0].mxu0
      %1434 = vmatprep.mubr.f32.mxu0 0.0
      %1435 = vmatmul.mubr.f32.gmra.mrb[0].mxu0 %v1321
      %v1436 = vpop.f32.mrb[0].mxu0
      %v1437 = vadd.f32 %v1315, %v1436
      %v1438 = vpop.f32.mrb[0].mxu0
      %1439 = vmatprep.mubr.f32.mxu0 0.0
      %1440 = vmatmul.mubr.f32.gmra.mrb[0].mxu0 %v1324
      %v1441 = vpop.f32.mrb[0].mxu0
      %v1442 = vadd.f32 %v1315, %v1441
      %v1443 = vpop.f32.mrb[0].mxu0
      %1444 = vmatprep.mubr.f32.mxu0 0.0
      %1445 = vmatmul.mubr.f32.gmra.mrb[0].mxu0 %v1327
      %v1446 = vpop.f32.mrb[0].mxu0
      %v1447 = vadd.f32 %v1315, %v1446
      %v1448 = vpop.f32.mrb[0].mxu0
      %1449 = vmatprep.mubr.f32.mxu0 0.0
      %1450 = vmatmul.mubr.f32.gmra.mrb[0].mxu0 %v1330
      %v1451 = vpop.f32.mrb[0].mxu0
      %v1452 = vadd.f32 %v1315, %v1451
      %v1453 = vpop.f32.mrb[0].mxu0
      %1454 = vmatprep.mubr.f32.mxu0 0.0
      %1455 = vmatmul.mubr.f32.gmra.mrb[0].mxu0 %v1333
      %v1456 = vpop.f32.mrb[0].mxu0
      %v1457 = vadd.f32 %v1315, %v1456
      %v1458 = vpop.f32.mrb[0].mxu0
      %1459 = vmatprep.mubr.f32.mxu0 0.0
      %1460 = vmatmul.mubr.f32.gmra.mrb[0].mxu0 %v1336
      %v1461 = vpop.f32.mrb[0].mxu0
      %v1462 = vadd.f32 %v1315, %v1461
      %v1463 = vpop.f32.mrb[0].mxu0
      %1464 = vmatprep.mubr.f32.mxu0 0.0
      %1465 = vmatmul.mubr.f32.gmra.mrb[0].mxu0 %v1339
      %v1466 = vpop.f32.mrb[0].mxu0
      %v1467 = vadd.f32 %v1315, %v1466
      %v1468 = vpop.f32.mrb[0].mxu0
      %1469 = vmatprep.mubr.f32.mxu0 0.0
      %1470 = vmatmul.mubr.f32.gmra.mrb[0].mxu0 %v1342
      %v1471 = vpop.f32.mrb[0].mxu0
      %v1472 = vadd.f32 %v1315, %v1471
      %v1473 = vpop.f32.mrb[0].mxu0
      %1474 = vmatprep.mubr.f32.mxu0 0.0
      %1475 = vmatmul.mubr.f32.gmra.mrb[0].mxu0 %v1345
      %v1476 = vpop.f32.mrb[0].mxu0
      %v1477 = vadd.f32 %v1315, %v1476
      %v1478 = vpop.f32.mrb[0].mxu0
      %1479 = vmatprep.mubr.f32.mxu0 0.0
      %1480 = vmatmul.mubr.f32.gmra.mrb[0].mxu0 %v1348
      %v1481 = vpop.f32.mrb[0].mxu0
      %v1482 = vadd.f32 %v1315, %v1481
      %v1483 = vpop.f32.mrb[0].mxu0
      %1484 = vmatprep.mubr.f32.mxu0 0.0
      %1485 = vmatmul.mubr.f32.gmra.mrb[0].mxu0 %v1351
      %v1486 = vpop.f32.mrb[0].mxu0
      %v1487 = vadd.f32 %v1315, %v1486
      %v1488 = vpop.f32.mrb[0].mxu0
      %1489 = vmatprep.mubr.f32.mxu0 0.0
      %1490 = vmatmul.mubr.f32.gmra.mrb[0].mxu0 %v1354
      %v1491 = vpop.f32.mrb[0].mxu0
      %v1492 = vadd.f32 %v1315, %v1491
      %v1493 = vpop.f32.mrb[0].mxu0
      %1494 = vmatprep.mubr.f32.mxu0 0.0
      %1495 = vmatmul.mubr.f32.gmra.mrb[0].mxu0 %v1357
      %v1496 = vpop.f32.mrb[0].mxu0
      %v1497 = vadd.f32 %v1315, %v1496
      %v1498 = vpop.f32.mrb[0].mxu0
      %1499 = vmatprep.mubr.f32.mxu0 0.0
      %1500 = vmatmul.mubr.f32.gmra.mrb[0].mxu0 %v1360
      %v1501 = vpop.f32.mrb[0].mxu0
      %v1502 = vadd.f32 %v1315, %v1501
      %v1503 = vpop.f32.mrb[0].mxu0
      %1504 = vmatprep.mubr.f32.mxu0 0.0
      %1505 = vmatmul.mubr.f32.gmra.mrb[0].mxu0 %v1363
      %v1506 = vpop.f32.mrb[0].mxu0
      %v1507 = vadd.f32 %v1315, %v1506
      %v1508 = vpop.f32.mrb[0].mxu0
      %1509 = vdwg.mxu0
      %v1510 = vmul.f32 %v1432, 1.442695
      %v1511 = vpow.pop %v1510
      %v1512 = vmul.f32 %v1437, 1.442695
      %v1513 = vpow.pop %v1512
      %v1514 = vmul.f32 %v1442, 1.442695
      %v1515 = vpow.pop %v1514
      %v1516 = vmul.f32 %v1447, 1.442695
      %v1517 = vpow.pop %v1516
      %v1518 = vmul.f32 %v1452, 1.442695
      %v1519 = vpow.pop %v1518
      %v1520 = vmul.f32 %v1457, 1.442695
      %v1521 = vpow.pop %v1520
      %v1522 = vmul.f32 %v1462, 1.442695
      %v1523 = vpow.pop %v1522
      %v1524 = vmul.f32 %v1467, 1.442695
      %v1525 = vpow.pop %v1524
      %v1526 = vmul.f32 %v1472, 1.442695
      %v1527 = vpow.pop %v1526
      %v1528 = vmul.f32 %v1477, 1.442695
      %v1529 = vpow.pop %v1528
      %v1530 = vmul.f32 %v1482, 1.442695
      %v1531 = vpow.pop %v1530
      %v1532 = vmul.f32 %v1487, 1.442695
      %v1533 = vpow.pop %v1532
      %v1534 = vmul.f32 %v1492, 1.442695
      %v1535 = vpow.pop %v1534
      %v1536 = vmul.f32 %v1497, 1.442695
      %v1537 = vpow.pop %v1536
      %v1538 = vmul.f32 %v1502, 1.442695
      %v1539 = vpow.pop %v1538
      %v1540 = vmul.f32 %v1507, 1.442695
      %v1541 = vpow.pop %v1540
      %v1542 = vmul.f32 %v392, 0.4
      %v1543 = vmul.f32 %v393, 0.4
      %v1544 = vmul.f32 %v394, 0.4
      %v1545 = vmul.f32 %v395, 0.4
      %v1546 = vmul.f32 %v396, 0.4
      %v1547 = vmul.f32 %v397, 0.4
      %v1548 = vmul.f32 %v398, 0.4
      %v1549 = vmul.f32 %v399, 0.4
      %v1550 = vmul.f32 %v400, 0.4
      %v1551 = vmul.f32 %v401, 0.4
      %v1552 = vmul.f32 %v402, 0.4
      %v1553 = vmul.f32 %v403, 0.4
      %v1554 = vmul.f32 %v404, 0.4
      %v1555 = vmul.f32 %v405, 0.4
      %v1556 = vmul.f32 %v406, 0.4
      %v1557 = vmul.f32 %v407, 0.4
      %v1558 = vsub.f32 9.0, %v1542
      %v1559 = vsub.f32 9.0, %v1543
      %v1560 = vsub.f32 9.0, %v1544
      %v1561 = vsub.f32 9.0, %v1545
      %v1562 = vsub.f32 9.0, %v1546
      %v1563 = vsub.f32 9.0, %v1547
      %v1564 = vsub.f32 9.0, %v1548
      %v1565 = vsub.f32 9.0, %v1549
      %v1566 = vsub.f32 9.0, %v1550
      %v1567 = vsub.f32 9.0, %v1551
      %v1568 = vsub.f32 9.0, %v1552
      %v1569 = vsub.f32 9.0, %v1553
      %v1570 = vsub.f32 9.0, %v1554
      %v1571 = vsub.f32 9.0, %v1555
      %v1572 = vsub.f32 9.0, %v1556
      %v1573 = vsub.f32 9.0, %v1557
      %v1574 = vmul.f32 %v1558, 2.3025851
      %v1575 = vmul.f32 %v1559, 2.3025851
      %v1576 = vmul.f32 %v1560, 2.3025851
      %v1577 = vmul.f32 %v1561, 2.3025851
      %v1578 = vmul.f32 %v1562, 2.3025851
      %v1579 = vmul.f32 %v1563, 2.3025851
      %v1580 = vmul.f32 %v1564, 2.3025851
      %v1581 = vmul.f32 %v1565, 2.3025851
      %v1582 = vmul.f32 %v1566, 2.3025851
      %v1583 = vmul.f32 %v1567, 2.3025851
      %v1584 = vmul.f32 %v1568, 2.3025851
      %v1585 = vmul.f32 %v1569, 2.3025851
      %v1586 = vmul.f32 %v1570, 2.3025851
      %v1587 = vmul.f32 %v1571, 2.3025851
      %v1588 = vmul.f32 %v1572, 2.3025851
      %v1589 = vmul.f32 %v1573, 2.3025851
      %v1590 = vmul.f32 %v1574, 1.442695
      %v1591 = vpow.pop %v1590
      %v1592 = vmul.f32 %v1575, 1.442695
      %v1593 = vpow.pop %v1592
      %v1594 = vmul.f32 %v1576, 1.442695
      %v1595 = vpow.pop %v1594
      %v1596 = vmul.f32 %v1577, 1.442695
      %v1597 = vpow.pop %v1596
      %v1598 = vmul.f32 %v1578, 1.442695
      %v1599 = vpow.pop %v1598
      %v1600 = vmul.f32 %v1579, 1.442695
      %v1601 = vpow.pop %v1600
      %v1602 = vmul.f32 %v1580, 1.442695
      %v1603 = vpow.pop %v1602
      %v1604 = vmul.f32 %v1581, 1.442695
      %v1605 = vpow.pop %v1604
      %v1606 = vmul.f32 %v1582, 1.442695
      %v1607 = vpow.pop %v1606
      %v1608 = vmul.f32 %v1583, 1.442695
      %v1609 = vpow.pop %v1608
      %v1610 = vmul.f32 %v1584, 1.442695
      %v1611 = vpow.pop %v1610
      %v1612 = vmul.f32 %v1585, 1.442695
      %v1613 = vpow.pop %v1612
      %v1614 = vmul.f32 %v1586, 1.442695
      %v1615 = vpow.pop %v1614
      %v1616 = vmul.f32 %v1587, 1.442695
      %v1617 = vpow.pop %v1616
      %v1618 = vmul.f32 %v1588, 1.442695
      %v1619 = vpow.pop %v1618
      %v1620 = vmul.f32 %v1589, 1.442695
      %v1621 = vpow.pop %v1620
      %v1622 = vmul.f32 %v1591, 3.2143882e-07
      %v1623 = vmul.f32 %v1593, 3.2143882e-07
      %v1624 = vmul.f32 %v1595, 3.2143882e-07
      %v1625 = vmul.f32 %v1597, 3.2143882e-07
      %v1626 = vmul.f32 %v1599, 3.2143882e-07
      %v1627 = vmul.f32 %v1601, 3.2143882e-07
      %v1628 = vmul.f32 %v1603, 3.2143882e-07
      %v1629 = vmul.f32 %v1605, 3.2143882e-07
      %v1630 = vmul.f32 %v1607, 3.2143882e-07
      %v1631 = vmul.f32 %v1609, 3.2143882e-07
      %v1632 = vmul.f32 %v1611, 3.2143882e-07
      %v1633 = vmul.f32 %v1613, 3.2143882e-07
      %v1634 = vmul.f32 %v1615, 3.2143882e-07
      %v1635 = vmul.f32 %v1617, 3.2143882e-07
      %v1636 = vmul.f32 %v1619, 3.2143882e-07
      %v1637 = vmul.f32 %v1621, 3.2143882e-07
      %1654 = vrot.lane.b32.xlu0 %v408, 113
      %v1655 = vpop.permute.xlu0 %1654
      %1656 = vrot.lane.b32.xlu0 %v409, 113
      %v1657 = vpop.permute.xlu0 %1656
      %1658 = vrot.lane.b32.xlu0 %v410, 113
      %v1659 = vpop.permute.xlu0 %1658
      %1660 = vrot.lane.b32.xlu0 %v411, 113
      %v1661 = vpop.permute.xlu0 %1660
      %1662 = vrot.lane.b32.xlu0 %v412, 113
      %v1663 = vpop.permute.xlu0 %1662
      %1664 = vrot.lane.b32.xlu0 %v413, 113
      %v1665 = vpop.permute.xlu0 %1664
      %1666 = vrot.lane.b32.xlu0 %v414, 113
      %v1667 = vpop.permute.xlu0 %1666
      %1668 = vrot.lane.b32.xlu0 %v415, 113
      %v1669 = vpop.permute.xlu0 %1668
      %1670 = vrot.lane.b32.xlu0 %v416, 113
      %v1671 = vpop.permute.xlu0 %1670
      %1672 = vrot.lane.b32.xlu0 %v417, 113
      %v1673 = vpop.permute.xlu0 %1672
      %1674 = vrot.lane.b32.xlu0 %v418, 113
      %v1675 = vpop.permute.xlu0 %1674
      %1676 = vrot.lane.b32.xlu0 %v419, 113
      %v1677 = vpop.permute.xlu0 %1676
      %1678 = vrot.lane.b32.xlu0 %v420, 113
      %v1679 = vpop.permute.xlu0 %1678
      %1680 = vrot.lane.b32.xlu0 %v421, 113
      %v1681 = vpop.permute.xlu0 %1680
      %1682 = vrot.lane.b32.xlu0 %v422, 113
      %v1683 = vpop.permute.xlu0 %1682
      %1684 = vrot.lane.b32.xlu0 %v423, 113
      %v1685 = vpop.permute.xlu0 %1684
      %v1702 = vmul.f32 %v1622, %v1655
      %v1703 = vmul.f32 %v1623, %v1657
      %v1704 = vmul.f32 %v1624, %v1659
      %v1705 = vmul.f32 %v1625, %v1661
      %v1706 = vmul.f32 %v1626, %v1663
      %v1707 = vmul.f32 %v1627, %v1665
      %v1708 = vmul.f32 %v1628, %v1667
      %v1709 = vmul.f32 %v1629, %v1669
      %v1710 = vmul.f32 %v1630, %v1671
      %v1711 = vmul.f32 %v1631, %v1673
      %v1712 = vmul.f32 %v1632, %v1675
      %v1713 = vmul.f32 %v1633, %v1677
      %v1714 = vmul.f32 %v1634, %v1679
      %v1715 = vmul.f32 %v1635, %v1681
      %v1716 = vmul.f32 %v1636, %v1683
      %v1717 = vmul.f32 %v1637, %v1685
      %1719 = vset.pattern.permute.xlu0 0
      %1720 = vperm.xlu0 %1719, %v1702
      %v1721 = vpop.permute.xlu0 %1720
      %1724 = vset.pattern.permute.xlu0 0
      %1725 = vperm.xlu0 %1724, %v1703
      %v1726 = vpop.permute.xlu0 %1725
      %1729 = vset.pattern.permute.xlu0 0
      %1730 = vperm.xlu0 %1729, %v1704
      %v1731 = vpop.permute.xlu0 %1730
      %1734 = vset.pattern.permute.xlu0 0
      %1735 = vperm.xlu0 %1734, %v1705
      %v1736 = vpop.permute.xlu0 %1735
      %1739 = vset.pattern.permute.xlu0 0
      %1740 = vperm.xlu0 %1739, %v1706
      %v1741 = vpop.permute.xlu0 %1740
      %1744 = vset.pattern.permute.xlu0 0
      %1745 = vperm.xlu0 %1744, %v1707
      %v1746 = vpop.permute.xlu0 %1745
      %1749 = vset.pattern.permute.xlu0 0
      %1750 = vperm.xlu0 %1749, %v1708
      %v1751 = vpop.permute.xlu0 %1750
      %1754 = vset.pattern.permute.xlu0 0
      %1755 = vperm.xlu0 %1754, %v1709
      %v1756 = vpop.permute.xlu0 %1755
      %1759 = vset.pattern.permute.xlu0 0
      %1760 = vperm.xlu0 %1759, %v1710
      %v1761 = vpop.permute.xlu0 %1760
      %1764 = vset.pattern.permute.xlu0 0
      %1765 = vperm.xlu0 %1764, %v1711
      %v1766 = vpop.permute.xlu0 %1765
      %1769 = vset.pattern.permute.xlu0 0
      %1770 = vperm.xlu0 %1769, %v1712
      %v1771 = vpop.permute.xlu0 %1770
      %1774 = vset.pattern.permute.xlu0 0
      %1775 = vperm.xlu0 %1774, %v1713
      %v1776 = vpop.permute.xlu0 %1775
      %1779 = vset.pattern.permute.xlu0 0
      %1780 = vperm.xlu0 %1779, %v1714
      %v1781 = vpop.permute.xlu0 %1780
      %1784 = vset.pattern.permute.xlu0 0
      %1785 = vperm.xlu0 %1784, %v1715
      %v1786 = vpop.permute.xlu0 %1785
      %1789 = vset.pattern.permute.xlu0 0
      %1790 = vperm.xlu0 %1789, %v1716
      %v1791 = vpop.permute.xlu0 %1790
      %1794 = vset.pattern.permute.xlu0 0
      %1795 = vperm.xlu0 %1794, %v1717
      %v1796 = vpop.permute.xlu0 %1795
      %v1798 = vmul.f32 %v1721, %v1511
      %v1799 = vmul.f32 %v1726, %v1513
      %v1800 = vmul.f32 %v1731, %v1515
      %v1801 = vmul.f32 %v1736, %v1517
      %v1802 = vmul.f32 %v1741, %v1519
      %v1803 = vmul.f32 %v1746, %v1521
      %v1804 = vmul.f32 %v1751, %v1523
      %v1805 = vmul.f32 %v1756, %v1525
      %v1806 = vmul.f32 %v1761, %v1527
      %v1807 = vmul.f32 %v1766, %v1529
      %v1808 = vmul.f32 %v1771, %v1531
      %v1809 = vmul.f32 %v1776, %v1533
      %v1810 = vmul.f32 %v1781, %v1535
      %v1811 = vmul.f32 %v1786, %v1537
      %v1812 = vmul.f32 %v1791, %v1539
      %v1813 = vmul.f32 %v1796, %v1541
      %v1814 = vld [vmem:[%s9] sm:$0xff]
      %v1815 = vld [vmem:[%s9 + $0x8] sm:$0xff]
      %v1816 = vld [vmem:[%s9 + $0x10] sm:$0xff]
      %v1817 = vld [vmem:[%s9 + $0x18] sm:$0xff]
      %v1818 = vld [vmem:[%s9 + $0x20] sm:$0xff]
      %v1819 = vld [vmem:[%s9 + $0x28] sm:$0xff]
      %1820 = vset.pattern.permute.xlu0 15
      %1821 = vperm.xlu0 %1820, %v408
      %v1822 = vpop.permute.xlu0 %1821
      %1824 = vset.pattern.permute.xlu0 15
      %1825 = vperm.xlu0 %1824, %v409
      %v1826 = vpop.permute.xlu0 %1825
      %1828 = vset.pattern.permute.xlu0 15
      %1829 = vperm.xlu0 %1828, %v410
      %v1830 = vpop.permute.xlu0 %1829
      %1832 = vset.pattern.permute.xlu0 15
      %1833 = vperm.xlu0 %1832, %v411
      %v1834 = vpop.permute.xlu0 %1833
      %1836 = vset.pattern.permute.xlu0 15
      %1837 = vperm.xlu0 %1836, %v412
      %v1838 = vpop.permute.xlu0 %1837
      %1840 = vset.pattern.permute.xlu0 15
      %1841 = vperm.xlu0 %1840, %v413
      %v1842 = vpop.permute.xlu0 %1841
      %1844 = vset.pattern.permute.xlu0 15
      %1845 = vperm.xlu0 %1844, %v414
      %v1846 = vpop.permute.xlu0 %1845
      %1848 = vset.pattern.permute.xlu0 15
      %1849 = vperm.xlu0 %1848, %v415
      %v1850 = vpop.permute.xlu0 %1849
      %1852 = vset.pattern.permute.xlu0 15
      %1853 = vperm.xlu0 %1852, %v416
      %v1854 = vpop.permute.xlu0 %1853
      %1856 = vset.pattern.permute.xlu0 15
      %1857 = vperm.xlu0 %1856, %v417
      %v1858 = vpop.permute.xlu0 %1857
      %1860 = vset.pattern.permute.xlu0 15
      %1861 = vperm.xlu0 %1860, %v418
      %v1862 = vpop.permute.xlu0 %1861
      %1864 = vset.pattern.permute.xlu0 15
      %1865 = vperm.xlu0 %1864, %v419
      %v1866 = vpop.permute.xlu0 %1865
      %1868 = vset.pattern.permute.xlu0 15
      %1869 = vperm.xlu0 %1868, %v420
      %v1870 = vpop.permute.xlu0 %1869
      %1872 = vset.pattern.permute.xlu0 15
      %1873 = vperm.xlu0 %1872, %v421
      %v1874 = vpop.permute.xlu0 %1873
      %1876 = vset.pattern.permute.xlu0 15
      %1877 = vperm.xlu0 %1876, %v422
      %v1878 = vpop.permute.xlu0 %1877
      %1880 = vset.pattern.permute.xlu0 15
      %1881 = vperm.xlu0 %1880, %v423
      %v1882 = vpop.permute.xlu0 %1881
      %v1890 = vlaneseq
      %v1891 = vshrl.u32 %v1890, 7
      %v1892 = vsub.s32 0, %v1891
      %v1893 = vrot.slane %v1814, %v1892
      %v1894 = vlaneseq
      %v1895 = vshrl.u32 %v1894, 7
      %v1896 = vsub.s32 4, %v1895
      %v1897 = vrot.slane %v1814, %v1896
      %v1898 = vlaneseq
      %v1899 = vshrl.u32 %v1898, 7
      %v1900 = vsub.s32 0, %v1899
      %v1901 = vrot.slane %v1815, %v1900
      %v1902 = vlaneseq
      %v1903 = vshrl.u32 %v1902, 7
      %v1904 = vsub.s32 4, %v1903
      %v1905 = vrot.slane %v1815, %v1904
      %v1906 = vlaneseq
      %v1907 = vshrl.u32 %v1906, 7
      %v1908 = vsub.s32 0, %v1907
      %v1909 = vrot.slane %v1816, %v1908
      %v1910 = vlaneseq
      %v1911 = vshrl.u32 %v1910, 7
      %v1912 = vsub.s32 4, %v1911
      %v1913 = vrot.slane %v1816, %v1912
      %v1914 = vlaneseq
      %v1915 = vshrl.u32 %v1914, 7
      %v1916 = vsub.s32 0, %v1915
      %v1917 = vrot.slane %v1817, %v1916
      %v1918 = vlaneseq
      %v1919 = vshrl.u32 %v1918, 7
      %v1920 = vsub.s32 4, %v1919
      %v1921 = vrot.slane %v1817, %v1920
      %v1922 = vlaneseq
      %v1923 = vshrl.u32 %v1922, 7
      %v1924 = vsub.s32 0, %v1923
      %v1925 = vrot.slane %v1818, %v1924
      %v1926 = vlaneseq
      %v1927 = vshrl.u32 %v1926, 7
      %v1928 = vsub.s32 4, %v1927
      %v1929 = vrot.slane %v1818, %v1928
      %v1930 = vlaneseq
      %v1931 = vshrl.u32 %v1930, 7
      %v1932 = vsub.s32 0, %v1931
      %v1933 = vrot.slane %v1819, %v1932
      %v1934 = vlaneseq
      %v1935 = vshrl.u32 %v1934, 7
      %v1936 = vsub.s32 4, %v1935
      %v1937 = vrot.slane %v1819, %v1936
      %v1950 = vlaneseq
      %v1951 = vshrl.u32 %v1950, 7
      %v1952 = vsub.s32 0, %v1951
      %v1953 = vrot.slane %v1893, %v1952
      %v1954 = vlaneseq
      %v1955 = vshrl.u32 %v1954, 7
      %v1956 = vsub.s32 0, %v1955
      %v1957 = vrot.slane %v1897, %v1956
      %v1958 = vlaneseq
      %v1959 = vshrl.u32 %v1958, 7
      %v1960 = vsub.s32 0, %v1959
      %v1961 = vrot.slane %v1901, %v1960
      %v1962 = vlaneseq
      %v1963 = vshrl.u32 %v1962, 7
      %v1964 = vsub.s32 0, %v1963
      %v1965 = vrot.slane %v1905, %v1964
      %v1966 = vlaneseq
      %v1967 = vshrl.u32 %v1966, 7
      %v1968 = vsub.s32 0, %v1967
      %v1969 = vrot.slane %v1909, %v1968
      %v1970 = vlaneseq
      %v1971 = vshrl.u32 %v1970, 7
      %v1972 = vsub.s32 0, %v1971
      %v1973 = vrot.slane %v1913, %v1972
      %v1974 = vlaneseq
      %v1975 = vshrl.u32 %v1974, 7
      %v1976 = vsub.s32 0, %v1975
      %v1977 = vrot.slane %v1917, %v1976
      %v1978 = vlaneseq
      %v1979 = vshrl.u32 %v1978, 7
      %v1980 = vsub.s32 0, %v1979
      %v1981 = vrot.slane %v1921, %v1980
      %v1982 = vlaneseq
      %v1983 = vshrl.u32 %v1982, 7
      %v1984 = vsub.s32 0, %v1983
      %v1985 = vrot.slane %v1925, %v1984
      %v1986 = vlaneseq
      %v1987 = vshrl.u32 %v1986, 7
      %v1988 = vsub.s32 0, %v1987
      %v1989 = vrot.slane %v1929, %v1988
      %v1990 = vlaneseq
      %v1991 = vshrl.u32 %v1990, 7
      %v1992 = vsub.s32 0, %v1991
      %v1993 = vrot.slane %v1933, %v1992
      %v1994 = vlaneseq
      %v1995 = vshrl.u32 %v1994, 7
      %v1996 = vsub.s32 0, %v1995
      %v1997 = vrot.slane %v1937, %v1996
      %v1998 = vmul.f32 %v1822, %v1953
      %v1999 = vmul.f32 %v1822, %v1957
      %v2000 = vmul.f32 %v1822, %v1961
      %v2001 = vmul.f32 %v1822, %v1965
      %v2002 = vmul.f32 %v1822, %v1969
      %v2003 = vmul.f32 %v1822, %v1973
      %v2004 = vmul.f32 %v1822, %v1977
      %v2005 = vmul.f32 %v1822, %v1981
      %v2006 = vmul.f32 %v1822, %v1985
      %v2007 = vmul.f32 %v1822, %v1989
      %v2008 = vmul.f32 %v1822, %v1993
      %v2009 = vmul.f32 %v1822, %v1997
      %v2010 = vmul.f32 %v1826, %v1953
      %v2011 = vmul.f32 %v1826, %v1957
      %v2012 = vmul.f32 %v1826, %v1961
      %v2013 = vmul.f32 %v1826, %v1965
      %v2014 = vmul.f32 %v1826, %v1969
      %v2015 = vmul.f32 %v1826, %v1973
      %v2016 = vmul.f32 %v1826, %v1977
      %v2017 = vmul.f32 %v1826, %v1981
      %v2018 = vmul.f32 %v1826, %v1985
      %v2019 = vmul.f32 %v1826, %v1989
      %v2020 = vmul.f32 %v1826, %v1993
      %v2021 = vmul.f32 %v1826, %v1997
      %v2022 = vmul.f32 %v1830, %v1953
      %v2023 = vmul.f32 %v1830, %v1957
      %v2024 = vmul.f32 %v1830, %v1961
      %v2025 = vmul.f32 %v1830, %v1965
      %v2026 = vmul.f32 %v1830, %v1969
      %v2027 = vmul.f32 %v1830, %v1973
      %v2028 = vmul.f32 %v1830, %v1977
      %v2029 = vmul.f32 %v1830, %v1981
      %v2030 = vmul.f32 %v1830, %v1985
      %v2031 = vmul.f32 %v1830, %v1989
      %v2032 = vmul.f32 %v1830, %v1993
      %v2033 = vmul.f32 %v1830, %v1997
      %v2034 = vmul.f32 %v1834, %v1953
      %v2035 = vmul.f32 %v1834, %v1957
      %v2036 = vmul.f32 %v1834, %v1961
      %v2037 = vmul.f32 %v1834, %v1965
      %v2038 = vmul.f32 %v1834, %v1969
      %v2039 = vmul.f32 %v1834, %v1973
      %v2040 = vmul.f32 %v1834, %v1977
      %v2041 = vmul.f32 %v1834, %v1981
      %v2042 = vmul.f32 %v1834, %v1985
      %v2043 = vmul.f32 %v1834, %v1989
      %v2044 = vmul.f32 %v1834, %v1993
      %v2045 = vmul.f32 %v1834, %v1997
      %v2046 = vmul.f32 %v1838, %v1953
      %v2047 = vmul.f32 %v1838, %v1957
      %v2048 = vmul.f32 %v1838, %v1961
      %v2049 = vmul.f32 %v1838, %v1965
      %v2050 = vmul.f32 %v1838, %v1969
      %v2051 = vmul.f32 %v1838, %v1973
      %v2052 = vmul.f32 %v1838, %v1977
      %v2053 = vmul.f32 %v1838, %v1981
      %v2054 = vmul.f32 %v1838, %v1985
      %v2055 = vmul.f32 %v1838, %v1989
      %v2056 = vmul.f32 %v1838, %v1993
      %v2057 = vmul.f32 %v1838, %v1997
      %v2058 = vmul.f32 %v1842, %v1953
      %v2059 = vmul.f32 %v1842, %v1957
      %v2060 = vmul.f32 %v1842, %v1961
      %v2061 = vmul.f32 %v1842, %v1965
      %v2062 = vmul.f32 %v1842, %v1969
      %v2063 = vmul.f32 %v1842, %v1973
      %v2064 = vmul.f32 %v1842, %v1977
      %v2065 = vmul.f32 %v1842, %v1981
      %v2066 = vmul.f32 %v1842, %v1985
      %v2067 = vmul.f32 %v1842, %v1989
      %v2068 = vmul.f32 %v1842, %v1993
      %v2069 = vmul.f32 %v1842, %v1997
      %v2070 = vmul.f32 %v1846, %v1953
      %v2071 = vmul.f32 %v1846, %v1957
      %v2072 = vmul.f32 %v1846, %v1961
      %v2073 = vmul.f32 %v1846, %v1965
      %v2074 = vmul.f32 %v1846, %v1969
      %v2075 = vmul.f32 %v1846, %v1973
      %v2076 = vmul.f32 %v1846, %v1977
      %v2077 = vmul.f32 %v1846, %v1981
      %v2078 = vmul.f32 %v1846, %v1985
      %v2079 = vmul.f32 %v1846, %v1989
      %v2080 = vmul.f32 %v1846, %v1993
      %v2081 = vmul.f32 %v1846, %v1997
      %v2082 = vmul.f32 %v1850, %v1953
      %v2083 = vmul.f32 %v1850, %v1957
      %v2084 = vmul.f32 %v1850, %v1961
      %v2085 = vmul.f32 %v1850, %v1965
      %v2086 = vmul.f32 %v1850, %v1969
      %v2087 = vmul.f32 %v1850, %v1973
      %v2088 = vmul.f32 %v1850, %v1977
      %v2089 = vmul.f32 %v1850, %v1981
      %v2090 = vmul.f32 %v1850, %v1985
      %v2091 = vmul.f32 %v1850, %v1989
      %v2092 = vmul.f32 %v1850, %v1993
      %v2093 = vmul.f32 %v1850, %v1997
      %v2094 = vmul.f32 %v1854, %v1953
      %v2095 = vmul.f32 %v1854, %v1957
      %v2096 = vmul.f32 %v1854, %v1961
      %v2097 = vmul.f32 %v1854, %v1965
      %v2098 = vmul.f32 %v1854, %v1969
      %v2099 = vmul.f32 %v1854, %v1973
      %v2100 = vmul.f32 %v1854, %v1977
      %v2101 = vmul.f32 %v1854, %v1981
      %v2102 = vmul.f32 %v1854, %v1985
      %v2103 = vmul.f32 %v1854, %v1989
      %v2104 = vmul.f32 %v1854, %v1993
      %v2105 = vmul.f32 %v1854, %v1997
      %v2106 = vmul.f32 %v1858, %v1953
      %v2107 = vmul.f32 %v1858, %v1957
      %v2108 = vmul.f32 %v1858, %v1961
      %v2109 = vmul.f32 %v1858, %v1965
      %v2110 = vmul.f32 %v1858, %v1969
      %v2111 = vmul.f32 %v1858, %v1973
      %v2112 = vmul.f32 %v1858, %v1977
      %v2113 = vmul.f32 %v1858, %v1981
      %v2114 = vmul.f32 %v1858, %v1985
      %v2115 = vmul.f32 %v1858, %v1989
      %v2116 = vmul.f32 %v1858, %v1993
      %v2117 = vmul.f32 %v1858, %v1997
      %v2118 = vmul.f32 %v1862, %v1953
      %v2119 = vmul.f32 %v1862, %v1957
      %v2120 = vmul.f32 %v1862, %v1961
      %v2121 = vmul.f32 %v1862, %v1965
      %v2122 = vmul.f32 %v1862, %v1969
      %v2123 = vmul.f32 %v1862, %v1973
      %v2124 = vmul.f32 %v1862, %v1977
      %v2125 = vmul.f32 %v1862, %v1981
      %v2126 = vmul.f32 %v1862, %v1985
      %v2127 = vmul.f32 %v1862, %v1989
      %v2128 = vmul.f32 %v1862, %v1993
      %v2129 = vmul.f32 %v1862, %v1997
      %v2130 = vmul.f32 %v1866, %v1953
      %v2131 = vmul.f32 %v1866, %v1957
      %v2132 = vmul.f32 %v1866, %v1961
      %v2133 = vmul.f32 %v1866, %v1965
      %v2134 = vmul.f32 %v1866, %v1969
      %v2135 = vmul.f32 %v1866, %v1973
      %v2136 = vmul.f32 %v1866, %v1977
      %v2137 = vmul.f32 %v1866, %v1981
      %v2138 = vmul.f32 %v1866, %v1985
      %v2139 = vmul.f32 %v1866, %v1989
      %v2140 = vmul.f32 %v1866, %v1993
      %v2141 = vmul.f32 %v1866, %v1997
      %v2142 = vmul.f32 %v1870, %v1953
      %v2143 = vmul.f32 %v1870, %v1957
      %v2144 = vmul.f32 %v1870, %v1961
      %v2145 = vmul.f32 %v1870, %v1965
      %v2146 = vmul.f32 %v1870, %v1969
      %v2147 = vmul.f32 %v1870, %v1973
      %v2148 = vmul.f32 %v1870, %v1977
      %v2149 = vmul.f32 %v1870, %v1981
      %v2150 = vmul.f32 %v1870, %v1985
      %v2151 = vmul.f32 %v1870, %v1989
      %v2152 = vmul.f32 %v1870, %v1993
      %v2153 = vmul.f32 %v1870, %v1997
      %v2154 = vmul.f32 %v1874, %v1953
      %v2155 = vmul.f32 %v1874, %v1957
      %v2156 = vmul.f32 %v1874, %v1961
      %v2157 = vmul.f32 %v1874, %v1965
      %v2158 = vmul.f32 %v1874, %v1969
      %v2159 = vmul.f32 %v1874, %v1973
      %v2160 = vmul.f32 %v1874, %v1977
      %v2161 = vmul.f32 %v1874, %v1981
      %v2162 = vmul.f32 %v1874, %v1985
      %v2163 = vmul.f32 %v1874, %v1989
      %v2164 = vmul.f32 %v1874, %v1993
      %v2165 = vmul.f32 %v1874, %v1997
      %v2166 = vmul.f32 %v1878, %v1953
      %v2167 = vmul.f32 %v1878, %v1957
      %v2168 = vmul.f32 %v1878, %v1961
      %v2169 = vmul.f32 %v1878, %v1965
      %v2170 = vmul.f32 %v1878, %v1969
      %v2171 = vmul.f32 %v1878, %v1973
      %v2172 = vmul.f32 %v1878, %v1977
      %v2173 = vmul.f32 %v1878, %v1981
      %v2174 = vmul.f32 %v1878, %v1985
      %v2175 = vmul.f32 %v1878, %v1989
      %v2176 = vmul.f32 %v1878, %v1993
      %v2177 = vmul.f32 %v1878, %v1997
      %v2178 = vmul.f32 %v1882, %v1953
      %v2179 = vmul.f32 %v1882, %v1957
      %v2180 = vmul.f32 %v1882, %v1961
      %v2181 = vmul.f32 %v1882, %v1965
      %v2182 = vmul.f32 %v1882, %v1969
      %v2183 = vmul.f32 %v1882, %v1973
      %v2184 = vmul.f32 %v1882, %v1977
      %v2185 = vmul.f32 %v1882, %v1981
      %v2186 = vmul.f32 %v1882, %v1985
      %v2187 = vmul.f32 %v1882, %v1989
      %v2188 = vmul.f32 %v1882, %v1993
      %v2189 = vmul.f32 %v1882, %v1997
      %v2190 = vlaneseq
      %v2191 = vshrl.u32 %v2190, 7
      %v2192 = vsub.s32 1, %v2191
      %v2193 = vrot.slane %v1814, %v2192
      %v2194 = vlaneseq
      %v2195 = vshrl.u32 %v2194, 7
      %v2196 = vsub.s32 5, %v2195
      %v2197 = vrot.slane %v1814, %v2196
      %v2198 = vlaneseq
      %v2199 = vshrl.u32 %v2198, 7
      %v2200 = vsub.s32 1, %v2199
      %v2201 = vrot.slane %v1815, %v2200
      %v2202 = vlaneseq
      %v2203 = vshrl.u32 %v2202, 7
      %v2204 = vsub.s32 5, %v2203
      %v2205 = vrot.slane %v1815, %v2204
      %v2206 = vlaneseq
      %v2207 = vshrl.u32 %v2206, 7
      %v2208 = vsub.s32 1, %v2207
      %v2209 = vrot.slane %v1816, %v2208
      %v2210 = vlaneseq
      %v2211 = vshrl.u32 %v2210, 7
      %v2212 = vsub.s32 5, %v2211
      %v2213 = vrot.slane %v1816, %v2212
      %v2214 = vlaneseq
      %v2215 = vshrl.u32 %v2214, 7
      %v2216 = vsub.s32 1, %v2215
      %v2217 = vrot.slane %v1817, %v2216
      %v2218 = vlaneseq
      %v2219 = vshrl.u32 %v2218, 7
      %v2220 = vsub.s32 5, %v2219
      %v2221 = vrot.slane %v1817, %v2220
      %v2222 = vlaneseq
      %v2223 = vshrl.u32 %v2222, 7
      %v2224 = vsub.s32 1, %v2223
      %v2225 = vrot.slane %v1818, %v2224
      %v2226 = vlaneseq
      %v2227 = vshrl.u32 %v2226, 7
      %v2228 = vsub.s32 5, %v2227
      %v2229 = vrot.slane %v1818, %v2228
      %v2230 = vlaneseq
      %v2231 = vshrl.u32 %v2230, 7
      %v2232 = vsub.s32 1, %v2231
      %v2233 = vrot.slane %v1819, %v2232
      %v2234 = vlaneseq
      %v2235 = vshrl.u32 %v2234, 7
      %v2236 = vsub.s32 5, %v2235
      %v2237 = vrot.slane %v1819, %v2236
      %v2250 = vlaneseq
      %v2251 = vshrl.u32 %v2250, 7
      %v2252 = vsub.s32 1, %v2251
      %v2253 = vrot.slane %v2193, %v2252
      %v2254 = vlaneseq
      %v2255 = vshrl.u32 %v2254, 7
      %v2256 = vsub.s32 1, %v2255
      %v2257 = vrot.slane %v2197, %v2256
      %v2258 = vlaneseq
      %v2259 = vshrl.u32 %v2258, 7
      %v2260 = vsub.s32 1, %v2259
      %v2261 = vrot.slane %v2201, %v2260
      %v2262 = vlaneseq
      %v2263 = vshrl.u32 %v2262, 7
      %v2264 = vsub.s32 1, %v2263
      %v2265 = vrot.slane %v2205, %v2264
      %v2266 = vlaneseq
      %v2267 = vshrl.u32 %v2266, 7
      %v2268 = vsub.s32 1, %v2267
      %v2269 = vrot.slane %v2209, %v2268
      %v2270 = vlaneseq
      %v2271 = vshrl.u32 %v2270, 7
      %v2272 = vsub.s32 1, %v2271
      %v2273 = vrot.slane %v2213, %v2272
      %v2274 = vlaneseq
      %v2275 = vshrl.u32 %v2274, 7
      %v2276 = vsub.s32 1, %v2275
      %v2277 = vrot.slane %v2217, %v2276
      %v2278 = vlaneseq
      %v2279 = vshrl.u32 %v2278, 7
      %v2280 = vsub.s32 1, %v2279
      %v2281 = vrot.slane %v2221, %v2280
      %v2282 = vlaneseq
      %v2283 = vshrl.u32 %v2282, 7
      %v2284 = vsub.s32 1, %v2283
      %v2285 = vrot.slane %v2225, %v2284
      %v2286 = vlaneseq
      %v2287 = vshrl.u32 %v2286, 7
      %v2288 = vsub.s32 1, %v2287
      %v2289 = vrot.slane %v2229, %v2288
      %v2290 = vlaneseq
      %v2291 = vshrl.u32 %v2290, 7
      %v2292 = vsub.s32 1, %v2291
      %v2293 = vrot.slane %v2233, %v2292
      %v2294 = vlaneseq
      %v2295 = vshrl.u32 %v2294, 7
      %v2296 = vsub.s32 1, %v2295
      %v2297 = vrot.slane %v2237, %v2296
      %v2298 = vsub.f32 %v1998, %v2253
      %v2299 = vsub.f32 %v1999, %v2257
      %v2300 = vsub.f32 %v2000, %v2261
      %v2301 = vsub.f32 %v2001, %v2265
      %v2302 = vsub.f32 %v2002, %v2269
      %v2303 = vsub.f32 %v2003, %v2273
      %v2304 = vsub.f32 %v2004, %v2277
      %v2305 = vsub.f32 %v2005, %v2281
      %v2306 = vsub.f32 %v2006, %v2285
      %v2307 = vsub.f32 %v2007, %v2289
      %v2308 = vsub.f32 %v2008, %v2293
      %v2309 = vsub.f32 %v2009, %v2297
      %v2310 = vsub.f32 %v2010, %v2253
      %v2311 = vsub.f32 %v2011, %v2257
      %v2312 = vsub.f32 %v2012, %v2261
      %v2313 = vsub.f32 %v2013, %v2265
      %v2314 = vsub.f32 %v2014, %v2269
      %v2315 = vsub.f32 %v2015, %v2273
      %v2316 = vsub.f32 %v2016, %v2277
      %v2317 = vsub.f32 %v2017, %v2281
      %v2318 = vsub.f32 %v2018, %v2285
      %v2319 = vsub.f32 %v2019, %v2289
      %v2320 = vsub.f32 %v2020, %v2293
      %v2321 = vsub.f32 %v2021, %v2297
      %v2322 = vsub.f32 %v2022, %v2253
      %v2323 = vsub.f32 %v2023, %v2257
      %v2324 = vsub.f32 %v2024, %v2261
      %v2325 = vsub.f32 %v2025, %v2265
      %v2326 = vsub.f32 %v2026, %v2269
      %v2327 = vsub.f32 %v2027, %v2273
      %v2328 = vsub.f32 %v2028, %v2277
      %v2329 = vsub.f32 %v2029, %v2281
      %v2330 = vsub.f32 %v2030, %v2285
      %v2331 = vsub.f32 %v2031, %v2289
      %v2332 = vsub.f32 %v2032, %v2293
      %v2333 = vsub.f32 %v2033, %v2297
      %v2334 = vsub.f32 %v2034, %v2253
      %v2335 = vsub.f32 %v2035, %v2257
      %v2336 = vsub.f32 %v2036, %v2261
      %v2337 = vsub.f32 %v2037, %v2265
      %v2338 = vsub.f32 %v2038, %v2269
      %v2339 = vsub.f32 %v2039, %v2273
      %v2340 = vsub.f32 %v2040, %v2277
      %v2341 = vsub.f32 %v2041, %v2281
      %v2342 = vsub.f32 %v2042, %v2285
      %v2343 = vsub.f32 %v2043, %v2289
      %v2344 = vsub.f32 %v2044, %v2293
      %v2345 = vsub.f32 %v2045, %v2297
      %v2346 = vsub.f32 %v2046, %v2253
      %v2347 = vsub.f32 %v2047, %v2257
      %v2348 = vsub.f32 %v2048, %v2261
      %v2349 = vsub.f32 %v2049, %v2265
      %v2350 = vsub.f32 %v2050, %v2269
      %v2351 = vsub.f32 %v2051, %v2273
      %v2352 = vsub.f32 %v2052, %v2277
      %v2353 = vsub.f32 %v2053, %v2281
      %v2354 = vsub.f32 %v2054, %v2285
      %v2355 = vsub.f32 %v2055, %v2289
      %v2356 = vsub.f32 %v2056, %v2293
      %v2357 = vsub.f32 %v2057, %v2297
      %v2358 = vsub.f32 %v2058, %v2253
      %v2359 = vsub.f32 %v2059, %v2257
      %v2360 = vsub.f32 %v2060, %v2261
      %v2361 = vsub.f32 %v2061, %v2265
      %v2362 = vsub.f32 %v2062, %v2269
      %v2363 = vsub.f32 %v2063, %v2273
      %v2364 = vsub.f32 %v2064, %v2277
      %v2365 = vsub.f32 %v2065, %v2281
      %v2366 = vsub.f32 %v2066, %v2285
      %v2367 = vsub.f32 %v2067, %v2289
      %v2368 = vsub.f32 %v2068, %v2293
      %v2369 = vsub.f32 %v2069, %v2297
      %v2370 = vsub.f32 %v2070, %v2253
      %v2371 = vsub.f32 %v2071, %v2257
      %v2372 = vsub.f32 %v2072, %v2261
      %v2373 = vsub.f32 %v2073, %v2265
      %v2374 = vsub.f32 %v2074, %v2269
      %v2375 = vsub.f32 %v2075, %v2273
      %v2376 = vsub.f32 %v2076, %v2277
      %v2377 = vsub.f32 %v2077, %v2281
      %v2378 = vsub.f32 %v2078, %v2285
      %v2379 = vsub.f32 %v2079, %v2289
      %v2380 = vsub.f32 %v2080, %v2293
      %v2381 = vsub.f32 %v2081, %v2297
      %v2382 = vsub.f32 %v2082, %v2253
      %v2383 = vsub.f32 %v2083, %v2257
      %v2384 = vsub.f32 %v2084, %v2261
      %v2385 = vsub.f32 %v2085, %v2265
      %v2386 = vsub.f32 %v2086, %v2269
      %v2387 = vsub.f32 %v2087, %v2273
      %v2388 = vsub.f32 %v2088, %v2277
      %v2389 = vsub.f32 %v2089, %v2281
      %v2390 = vsub.f32 %v2090, %v2285
      %v2391 = vsub.f32 %v2091, %v2289
      %v2392 = vsub.f32 %v2092, %v2293
      %v2393 = vsub.f32 %v2093, %v2297
      %v2394 = vsub.f32 %v2094, %v2253
      %v2395 = vsub.f32 %v2095, %v2257
      %v2396 = vsub.f32 %v2096, %v2261
      %v2397 = vsub.f32 %v2097, %v2265
      %v2398 = vsub.f32 %v2098, %v2269
      %v2399 = vsub.f32 %v2099, %v2273
      %v2400 = vsub.f32 %v2100, %v2277
      %v2401 = vsub.f32 %v2101, %v2281
      %v2402 = vsub.f32 %v2102, %v2285
      %v2403 = vsub.f32 %v2103, %v2289
      %v2404 = vsub.f32 %v2104, %v2293
      %v2405 = vsub.f32 %v2105, %v2297
      %v2406 = vsub.f32 %v2106, %v2253
      %v2407 = vsub.f32 %v2107, %v2257
      %v2408 = vsub.f32 %v2108, %v2261
      %v2409 = vsub.f32 %v2109, %v2265
      %v2410 = vsub.f32 %v2110, %v2269
      %v2411 = vsub.f32 %v2111, %v2273
      %v2412 = vsub.f32 %v2112, %v2277
      %v2413 = vsub.f32 %v2113, %v2281
      %v2414 = vsub.f32 %v2114, %v2285
      %v2415 = vsub.f32 %v2115, %v2289
      %v2416 = vsub.f32 %v2116, %v2293
      %v2417 = vsub.f32 %v2117, %v2297
      %v2418 = vsub.f32 %v2118, %v2253
      %v2419 = vsub.f32 %v2119, %v2257
      %v2420 = vsub.f32 %v2120, %v2261
      %v2421 = vsub.f32 %v2121, %v2265
      %v2422 = vsub.f32 %v2122, %v2269
      %v2423 = vsub.f32 %v2123, %v2273
      %v2424 = vsub.f32 %v2124, %v2277
      %v2425 = vsub.f32 %v2125, %v2281
      %v2426 = vsub.f32 %v2126, %v2285
      %v2427 = vsub.f32 %v2127, %v2289
      %v2428 = vsub.f32 %v2128, %v2293
      %v2429 = vsub.f32 %v2129, %v2297
      %v2430 = vsub.f32 %v2130, %v2253
      %v2431 = vsub.f32 %v2131, %v2257
      %v2432 = vsub.f32 %v2132, %v2261
      %v2433 = vsub.f32 %v2133, %v2265
      %v2434 = vsub.f32 %v2134, %v2269
      %v2435 = vsub.f32 %v2135, %v2273
      %v2436 = vsub.f32 %v2136, %v2277
      %v2437 = vsub.f32 %v2137, %v2281
      %v2438 = vsub.f32 %v2138, %v2285
      %v2439 = vsub.f32 %v2139, %v2289
      %v2440 = vsub.f32 %v2140, %v2293
      %v2441 = vsub.f32 %v2141, %v2297
      %v2442 = vsub.f32 %v2142, %v2253
      %v2443 = vsub.f32 %v2143, %v2257
      %v2444 = vsub.f32 %v2144, %v2261
      %v2445 = vsub.f32 %v2145, %v2265
      %v2446 = vsub.f32 %v2146, %v2269
      %v2447 = vsub.f32 %v2147, %v2273
      %v2448 = vsub.f32 %v2148, %v2277
      %v2449 = vsub.f32 %v2149, %v2281
      %v2450 = vsub.f32 %v2150, %v2285
      %v2451 = vsub.f32 %v2151, %v2289
      %v2452 = vsub.f32 %v2152, %v2293
      %v2453 = vsub.f32 %v2153, %v2297
      %v2454 = vsub.f32 %v2154, %v2253
      %v2455 = vsub.f32 %v2155, %v2257
      %v2456 = vsub.f32 %v2156, %v2261
      %v2457 = vsub.f32 %v2157, %v2265
      %v2458 = vsub.f32 %v2158, %v2269
      %v2459 = vsub.f32 %v2159, %v2273
      %v2460 = vsub.f32 %v2160, %v2277
      %v2461 = vsub.f32 %v2161, %v2281
      %v2462 = vsub.f32 %v2162, %v2285
      %v2463 = vsub.f32 %v2163, %v2289
      %v2464 = vsub.f32 %v2164, %v2293
      %v2465 = vsub.f32 %v2165, %v2297
      %v2466 = vsub.f32 %v2166, %v2253
      %v2467 = vsub.f32 %v2167, %v2257
      %v2468 = vsub.f32 %v2168, %v2261
      %v2469 = vsub.f32 %v2169, %v2265
      %v2470 = vsub.f32 %v2170, %v2269
      %v2471 = vsub.f32 %v2171, %v2273
      %v2472 = vsub.f32 %v2172, %v2277
      %v2473 = vsub.f32 %v2173, %v2281
      %v2474 = vsub.f32 %v2174, %v2285
      %v2475 = vsub.f32 %v2175, %v2289
      %v2476 = vsub.f32 %v2176, %v2293
      %v2477 = vsub.f32 %v2177, %v2297
      %v2478 = vsub.f32 %v2178, %v2253
      %v2479 = vsub.f32 %v2179, %v2257
      %v2480 = vsub.f32 %v2180, %v2261
      %v2481 = vsub.f32 %v2181, %v2265
      %v2482 = vsub.f32 %v2182, %v2269
      %v2483 = vsub.f32 %v2183, %v2273
      %v2484 = vsub.f32 %v2184, %v2277
      %v2485 = vsub.f32 %v2185, %v2281
      %v2486 = vsub.f32 %v2186, %v2285
      %v2487 = vsub.f32 %v2187, %v2289
      %v2488 = vsub.f32 %v2188, %v2293
      %v2489 = vsub.f32 %v2189, %v2297
      %v2490 = vand.u32 2147483647, %v2298
      %v2491 = vand.u32 2147483647, %v2299
      %v2492 = vand.u32 2147483647, %v2300
      %v2493 = vand.u32 2147483647, %v2301
      %v2494 = vand.u32 2147483647, %v2302
      %v2495 = vand.u32 2147483647, %v2303
      %v2496 = vand.u32 2147483647, %v2304
      %v2497 = vand.u32 2147483647, %v2305
      %v2498 = vand.u32 2147483647, %v2306
      %v2499 = vand.u32 2147483647, %v2307
      %v2500 = vand.u32 2147483647, %v2308
      %v2501 = vand.u32 2147483647, %v2309
      %v2502 = vand.u32 2147483647, %v2310
      %v2503 = vand.u32 2147483647, %v2311
      %v2504 = vand.u32 2147483647, %v2312
      %v2505 = vand.u32 2147483647, %v2313
      %v2506 = vand.u32 2147483647, %v2314
      %v2507 = vand.u32 2147483647, %v2315
      %v2508 = vand.u32 2147483647, %v2316
      %v2509 = vand.u32 2147483647, %v2317
      %v2510 = vand.u32 2147483647, %v2318
      %v2511 = vand.u32 2147483647, %v2319
      %v2512 = vand.u32 2147483647, %v2320
      %v2513 = vand.u32 2147483647, %v2321
      %v2514 = vand.u32 2147483647, %v2322
      %v2515 = vand.u32 2147483647, %v2323
      %v2516 = vand.u32 2147483647, %v2324
      %v2517 = vand.u32 2147483647, %v2325
      %v2518 = vand.u32 2147483647, %v2326
      %v2519 = vand.u32 2147483647, %v2327
      %v2520 = vand.u32 2147483647, %v2328
      %v2521 = vand.u32 2147483647, %v2329
      %v2522 = vand.u32 2147483647, %v2330
      %v2523 = vand.u32 2147483647, %v2331
      %v2524 = vand.u32 2147483647, %v2332
      %v2525 = vand.u32 2147483647, %v2333
      %v2526 = vand.u32 2147483647, %v2334
      %v2527 = vand.u32 2147483647, %v2335
      %v2528 = vand.u32 2147483647, %v2336
      %v2529 = vand.u32 2147483647, %v2337
      %v2530 = vand.u32 2147483647, %v2338
      %v2531 = vand.u32 2147483647, %v2339
      %v2532 = vand.u32 2147483647, %v2340
      %v2533 = vand.u32 2147483647, %v2341
      %v2534 = vand.u32 2147483647, %v2342
      %v2535 = vand.u32 2147483647, %v2343
      %v2536 = vand.u32 2147483647, %v2344
      %v2537 = vand.u32 2147483647, %v2345
      %v2538 = vand.u32 2147483647, %v2346
      %v2539 = vand.u32 2147483647, %v2347
      %v2540 = vand.u32 2147483647, %v2348
      %v2541 = vand.u32 2147483647, %v2349
      %v2542 = vand.u32 2147483647, %v2350
      %v2543 = vand.u32 2147483647, %v2351
      %v2544 = vand.u32 2147483647, %v2352
      %v2545 = vand.u32 2147483647, %v2353
      %v2546 = vand.u32 2147483647, %v2354
      %v2547 = vand.u32 2147483647, %v2355
      %v2548 = vand.u32 2147483647, %v2356
      %v2549 = vand.u32 2147483647, %v2357
      %v2550 = vand.u32 2147483647, %v2358
      %v2551 = vand.u32 2147483647, %v2359
      %v2552 = vand.u32 2147483647, %v2360
      %v2553 = vand.u32 2147483647, %v2361
      %v2554 = vand.u32 2147483647, %v2362
      %v2555 = vand.u32 2147483647, %v2363
      %v2556 = vand.u32 2147483647, %v2364
      %v2557 = vand.u32 2147483647, %v2365
      %v2558 = vand.u32 2147483647, %v2366
      %v2559 = vand.u32 2147483647, %v2367
      %v2560 = vand.u32 2147483647, %v2368
      %v2561 = vand.u32 2147483647, %v2369
      %v2562 = vand.u32 2147483647, %v2370
      %v2563 = vand.u32 2147483647, %v2371
      %v2564 = vand.u32 2147483647, %v2372
      %v2565 = vand.u32 2147483647, %v2373
      %v2566 = vand.u32 2147483647, %v2374
      %v2567 = vand.u32 2147483647, %v2375
      %v2568 = vand.u32 2147483647, %v2376
      %v2569 = vand.u32 2147483647, %v2377
      %v2570 = vand.u32 2147483647, %v2378
      %v2571 = vand.u32 2147483647, %v2379
      %v2572 = vand.u32 2147483647, %v2380
      %v2573 = vand.u32 2147483647, %v2381
      %v2574 = vand.u32 2147483647, %v2382
      %v2575 = vand.u32 2147483647, %v2383
      %v2576 = vand.u32 2147483647, %v2384
      %v2577 = vand.u32 2147483647, %v2385
      %v2578 = vand.u32 2147483647, %v2386
      %v2579 = vand.u32 2147483647, %v2387
      %v2580 = vand.u32 2147483647, %v2388
      %v2581 = vand.u32 2147483647, %v2389
      %v2582 = vand.u32 2147483647, %v2390
      %v2583 = vand.u32 2147483647, %v2391
      %v2584 = vand.u32 2147483647, %v2392
      %v2585 = vand.u32 2147483647, %v2393
      %v2586 = vand.u32 2147483647, %v2394
      %v2587 = vand.u32 2147483647, %v2395
      %v2588 = vand.u32 2147483647, %v2396
      %v2589 = vand.u32 2147483647, %v2397
      %v2590 = vand.u32 2147483647, %v2398
      %v2591 = vand.u32 2147483647, %v2399
      %v2592 = vand.u32 2147483647, %v2400
      %v2593 = vand.u32 2147483647, %v2401
      %v2594 = vand.u32 2147483647, %v2402
      %v2595 = vand.u32 2147483647, %v2403
      %v2596 = vand.u32 2147483647, %v2404
      %v2597 = vand.u32 2147483647, %v2405
      %v2598 = vand.u32 2147483647, %v2406
      %v2599 = vand.u32 2147483647, %v2407
      %v2600 = vand.u32 2147483647, %v2408
      %v2601 = vand.u32 2147483647, %v2409
      %v2602 = vand.u32 2147483647, %v2410
      %v2603 = vand.u32 2147483647, %v2411
      %v2604 = vand.u32 2147483647, %v2412
      %v2605 = vand.u32 2147483647, %v2413
      %v2606 = vand.u32 2147483647, %v2414
      %v2607 = vand.u32 2147483647, %v2415
      %v2608 = vand.u32 2147483647, %v2416
      %v2609 = vand.u32 2147483647, %v2417
      %v2610 = vand.u32 2147483647, %v2418
      %v2611 = vand.u32 2147483647, %v2419
      %v2612 = vand.u32 2147483647, %v2420
      %v2613 = vand.u32 2147483647, %v2421
      %v2614 = vand.u32 2147483647, %v2422
      %v2615 = vand.u32 2147483647, %v2423
      %v2616 = vand.u32 2147483647, %v2424
      %v2617 = vand.u32 2147483647, %v2425
      %v2618 = vand.u32 2147483647, %v2426
      %v2619 = vand.u32 2147483647, %v2427
      %v2620 = vand.u32 2147483647, %v2428
      %v2621 = vand.u32 2147483647, %v2429
      %v2622 = vand.u32 2147483647, %v2430
      %v2623 = vand.u32 2147483647, %v2431
      %v2624 = vand.u32 2147483647, %v2432
      %v2625 = vand.u32 2147483647, %v2433
      %v2626 = vand.u32 2147483647, %v2434
      %v2627 = vand.u32 2147483647, %v2435
      %v2628 = vand.u32 2147483647, %v2436
      %v2629 = vand.u32 2147483647, %v2437
      %v2630 = vand.u32 2147483647, %v2438
      %v2631 = vand.u32 2147483647, %v2439
      %v2632 = vand.u32 2147483647, %v2440
      %v2633 = vand.u32 2147483647, %v2441
      %v2634 = vand.u32 2147483647, %v2442
      %v2635 = vand.u32 2147483647, %v2443
      %v2636 = vand.u32 2147483647, %v2444
      %v2637 = vand.u32 2147483647, %v2445
      %v2638 = vand.u32 2147483647, %v2446
      %v2639 = vand.u32 2147483647, %v2447
      %v2640 = vand.u32 2147483647, %v2448
      %v2641 = vand.u32 2147483647, %v2449
      %v2642 = vand.u32 2147483647, %v2450
      %v2643 = vand.u32 2147483647, %v2451
      %v2644 = vand.u32 2147483647, %v2452
      %v2645 = vand.u32 2147483647, %v2453
      %v2646 = vand.u32 2147483647, %v2454
      %v2647 = vand.u32 2147483647, %v2455
      %v2648 = vand.u32 2147483647, %v2456
      %v2649 = vand.u32 2147483647, %v2457
      %v2650 = vand.u32 2147483647, %v2458
      %v2651 = vand.u32 2147483647, %v2459
      %v2652 = vand.u32 2147483647, %v2460
      %v2653 = vand.u32 2147483647, %v2461
      %v2654 = vand.u32 2147483647, %v2462
      %v2655 = vand.u32 2147483647, %v2463
      %v2656 = vand.u32 2147483647, %v2464
      %v2657 = vand.u32 2147483647, %v2465
      %v2658 = vand.u32 2147483647, %v2466
      %v2659 = vand.u32 2147483647, %v2467
      %v2660 = vand.u32 2147483647, %v2468
      %v2661 = vand.u32 2147483647, %v2469
      %v2662 = vand.u32 2147483647, %v2470
      %v2663 = vand.u32 2147483647, %v2471
      %v2664 = vand.u32 2147483647, %v2472
      %v2665 = vand.u32 2147483647, %v2473
      %v2666 = vand.u32 2147483647, %v2474
      %v2667 = vand.u32 2147483647, %v2475
      %v2668 = vand.u32 2147483647, %v2476
      %v2669 = vand.u32 2147483647, %v2477
      %v2670 = vand.u32 2147483647, %v2478
      %v2671 = vand.u32 2147483647, %v2479
      %v2672 = vand.u32 2147483647, %v2480
      %v2673 = vand.u32 2147483647, %v2481
      %v2674 = vand.u32 2147483647, %v2482
      %v2675 = vand.u32 2147483647, %v2483
      %v2676 = vand.u32 2147483647, %v2484
      %v2677 = vand.u32 2147483647, %v2485
      %v2678 = vand.u32 2147483647, %v2486
      %v2679 = vand.u32 2147483647, %v2487
      %v2680 = vand.u32 2147483647, %v2488
      %v2681 = vand.u32 2147483647, %v2489
      %v2682 = vmax.f32 %v2490, 1e-30
      %v2683 = vmax.f32 %v2491, 1e-30
      %v2684 = vmax.f32 %v2492, 1e-30
      %v2685 = vmax.f32 %v2493, 1e-30
      %v2686 = vmax.f32 %v2494, 1e-30
      %v2687 = vmax.f32 %v2495, 1e-30
      %v2688 = vmax.f32 %v2496, 1e-30
      %v2689 = vmax.f32 %v2497, 1e-30
      %v2690 = vmax.f32 %v2498, 1e-30
      %v2691 = vmax.f32 %v2499, 1e-30
      %v2692 = vmax.f32 %v2500, 1e-30
      %v2693 = vmax.f32 %v2501, 1e-30
      %v2694 = vmax.f32 %v2502, 1e-30
      %v2695 = vmax.f32 %v2503, 1e-30
      %v2696 = vmax.f32 %v2504, 1e-30
      %v2697 = vmax.f32 %v2505, 1e-30
      %v2698 = vmax.f32 %v2506, 1e-30
      %v2699 = vmax.f32 %v2507, 1e-30
      %v2700 = vmax.f32 %v2508, 1e-30
      %v2701 = vmax.f32 %v2509, 1e-30
      %v2702 = vmax.f32 %v2510, 1e-30
      %v2703 = vmax.f32 %v2511, 1e-30
      %v2704 = vmax.f32 %v2512, 1e-30
      %v2705 = vmax.f32 %v2513, 1e-30
      %v2706 = vmax.f32 %v2514, 1e-30
      %v2707 = vmax.f32 %v2515, 1e-30
      %v2708 = vmax.f32 %v2516, 1e-30
      %v2709 = vmax.f32 %v2517, 1e-30
      %v2710 = vmax.f32 %v2518, 1e-30
      %v2711 = vmax.f32 %v2519, 1e-30
      %v2712 = vmax.f32 %v2520, 1e-30
      %v2713 = vmax.f32 %v2521, 1e-30
      %v2714 = vmax.f32 %v2522, 1e-30
      %v2715 = vmax.f32 %v2523, 1e-30
      %v2716 = vmax.f32 %v2524, 1e-30
      %v2717 = vmax.f32 %v2525, 1e-30
      %v2718 = vmax.f32 %v2526, 1e-30
      %v2719 = vmax.f32 %v2527, 1e-30
      %v2720 = vmax.f32 %v2528, 1e-30
      %v2721 = vmax.f32 %v2529, 1e-30
      %v2722 = vmax.f32 %v2530, 1e-30
      %v2723 = vmax.f32 %v2531, 1e-30
      %v2724 = vmax.f32 %v2532, 1e-30
      %v2725 = vmax.f32 %v2533, 1e-30
      %v2726 = vmax.f32 %v2534, 1e-30
      %v2727 = vmax.f32 %v2535, 1e-30
      %v2728 = vmax.f32 %v2536, 1e-30
      %v2729 = vmax.f32 %v2537, 1e-30
      %v2730 = vmax.f32 %v2538, 1e-30
      %v2731 = vmax.f32 %v2539, 1e-30
      %v2732 = vmax.f32 %v2540, 1e-30
      %v2733 = vmax.f32 %v2541, 1e-30
      %v2734 = vmax.f32 %v2542, 1e-30
      %v2735 = vmax.f32 %v2543, 1e-30
      %v2736 = vmax.f32 %v2544, 1e-30
      %v2737 = vmax.f32 %v2545, 1e-30
      %v2738 = vmax.f32 %v2546, 1e-30
      %v2739 = vmax.f32 %v2547, 1e-30
      %v2740 = vmax.f32 %v2548, 1e-30
      %v2741 = vmax.f32 %v2549, 1e-30
      %v2742 = vmax.f32 %v2550, 1e-30
      %v2743 = vmax.f32 %v2551, 1e-30
      %v2744 = vmax.f32 %v2552, 1e-30
      %v2745 = vmax.f32 %v2553, 1e-30
      %v2746 = vmax.f32 %v2554, 1e-30
      %v2747 = vmax.f32 %v2555, 1e-30
      %v2748 = vmax.f32 %v2556, 1e-30
      %v2749 = vmax.f32 %v2557, 1e-30
      %v2750 = vmax.f32 %v2558, 1e-30
      %v2751 = vmax.f32 %v2559, 1e-30
      %v2752 = vmax.f32 %v2560, 1e-30
      %v2753 = vmax.f32 %v2561, 1e-30
      %v2754 = vmax.f32 %v2562, 1e-30
      %v2755 = vmax.f32 %v2563, 1e-30
      %v2756 = vmax.f32 %v2564, 1e-30
      %v2757 = vmax.f32 %v2565, 1e-30
      %v2758 = vmax.f32 %v2566, 1e-30
      %v2759 = vmax.f32 %v2567, 1e-30
      %v2760 = vmax.f32 %v2568, 1e-30
      %v2761 = vmax.f32 %v2569, 1e-30
      %v2762 = vmax.f32 %v2570, 1e-30
      %v2763 = vmax.f32 %v2571, 1e-30
      %v2764 = vmax.f32 %v2572, 1e-30
      %v2765 = vmax.f32 %v2573, 1e-30
      %v2766 = vmax.f32 %v2574, 1e-30
      %v2767 = vmax.f32 %v2575, 1e-30
      %v2768 = vmax.f32 %v2576, 1e-30
      %v2769 = vmax.f32 %v2577, 1e-30
      %v2770 = vmax.f32 %v2578, 1e-30
      %v2771 = vmax.f32 %v2579, 1e-30
      %v2772 = vmax.f32 %v2580, 1e-30
      %v2773 = vmax.f32 %v2581, 1e-30
      %v2774 = vmax.f32 %v2582, 1e-30
      %v2775 = vmax.f32 %v2583, 1e-30
      %v2776 = vmax.f32 %v2584, 1e-30
      %v2777 = vmax.f32 %v2585, 1e-30
      %v2778 = vmax.f32 %v2586, 1e-30
      %v2779 = vmax.f32 %v2587, 1e-30
      %v2780 = vmax.f32 %v2588, 1e-30
      %v2781 = vmax.f32 %v2589, 1e-30
      %v2782 = vmax.f32 %v2590, 1e-30
      %v2783 = vmax.f32 %v2591, 1e-30
      %v2784 = vmax.f32 %v2592, 1e-30
      %v2785 = vmax.f32 %v2593, 1e-30
      %v2786 = vmax.f32 %v2594, 1e-30
      %v2787 = vmax.f32 %v2595, 1e-30
      %v2788 = vmax.f32 %v2596, 1e-30
      %v2789 = vmax.f32 %v2597, 1e-30
      %v2790 = vmax.f32 %v2598, 1e-30
      %v2791 = vmax.f32 %v2599, 1e-30
      %v2792 = vmax.f32 %v2600, 1e-30
      %v2793 = vmax.f32 %v2601, 1e-30
      %v2794 = vmax.f32 %v2602, 1e-30
      %v2795 = vmax.f32 %v2603, 1e-30
      %v2796 = vmax.f32 %v2604, 1e-30
      %v2797 = vmax.f32 %v2605, 1e-30
      %v2798 = vmax.f32 %v2606, 1e-30
      %v2799 = vmax.f32 %v2607, 1e-30
      %v2800 = vmax.f32 %v2608, 1e-30
      %v2801 = vmax.f32 %v2609, 1e-30
      %v2802 = vmax.f32 %v2610, 1e-30
      %v2803 = vmax.f32 %v2611, 1e-30
      %v2804 = vmax.f32 %v2612, 1e-30
      %v2805 = vmax.f32 %v2613, 1e-30
      %v2806 = vmax.f32 %v2614, 1e-30
      %v2807 = vmax.f32 %v2615, 1e-30
      %v2808 = vmax.f32 %v2616, 1e-30
      %v2809 = vmax.f32 %v2617, 1e-30
      %v2810 = vmax.f32 %v2618, 1e-30
      %v2811 = vmax.f32 %v2619, 1e-30
      %v2812 = vmax.f32 %v2620, 1e-30
      %v2813 = vmax.f32 %v2621, 1e-30
      %v2814 = vmax.f32 %v2622, 1e-30
      %v2815 = vmax.f32 %v2623, 1e-30
      %v2816 = vmax.f32 %v2624, 1e-30
      %v2817 = vmax.f32 %v2625, 1e-30
      %v2818 = vmax.f32 %v2626, 1e-30
      %v2819 = vmax.f32 %v2627, 1e-30
      %v2820 = vmax.f32 %v2628, 1e-30
      %v2821 = vmax.f32 %v2629, 1e-30
      %v2822 = vmax.f32 %v2630, 1e-30
      %v2823 = vmax.f32 %v2631, 1e-30
      %v2824 = vmax.f32 %v2632, 1e-30
      %v2825 = vmax.f32 %v2633, 1e-30
      %v2826 = vmax.f32 %v2634, 1e-30
      %v2827 = vmax.f32 %v2635, 1e-30
      %v2828 = vmax.f32 %v2636, 1e-30
      %v2829 = vmax.f32 %v2637, 1e-30
      %v2830 = vmax.f32 %v2638, 1e-30
      %v2831 = vmax.f32 %v2639, 1e-30
      %v2832 = vmax.f32 %v2640, 1e-30
      %v2833 = vmax.f32 %v2641, 1e-30
      %v2834 = vmax.f32 %v2642, 1e-30
      %v2835 = vmax.f32 %v2643, 1e-30
      %v2836 = vmax.f32 %v2644, 1e-30
      %v2837 = vmax.f32 %v2645, 1e-30
      %v2838 = vmax.f32 %v2646, 1e-30
      %v2839 = vmax.f32 %v2647, 1e-30
      %v2840 = vmax.f32 %v2648, 1e-30
      %v2841 = vmax.f32 %v2649, 1e-30
      %v2842 = vmax.f32 %v2650, 1e-30
      %v2843 = vmax.f32 %v2651, 1e-30
      %v2844 = vmax.f32 %v2652, 1e-30
      %v2845 = vmax.f32 %v2653, 1e-30
      %v2846 = vmax.f32 %v2654, 1e-30
      %v2847 = vmax.f32 %v2655, 1e-30
      %v2848 = vmax.f32 %v2656, 1e-30
      %v2849 = vmax.f32 %v2657, 1e-30
      %v2850 = vmax.f32 %v2658, 1e-30
      %v2851 = vmax.f32 %v2659, 1e-30
      %v2852 = vmax.f32 %v2660, 1e-30
      %v2853 = vmax.f32 %v2661, 1e-30
      %v2854 = vmax.f32 %v2662, 1e-30
      %v2855 = vmax.f32 %v2663, 1e-30
      %v2856 = vmax.f32 %v2664, 1e-30
      %v2857 = vmax.f32 %v2665, 1e-30
      %v2858 = vmax.f32 %v2666, 1e-30
      %v2859 = vmax.f32 %v2667, 1e-30
      %v2860 = vmax.f32 %v2668, 1e-30
      %v2861 = vmax.f32 %v2669, 1e-30
      %v2862 = vmax.f32 %v2670, 1e-30
      %v2863 = vmax.f32 %v2671, 1e-30
      %v2864 = vmax.f32 %v2672, 1e-30
      %v2865 = vmax.f32 %v2673, 1e-30
      %v2866 = vmax.f32 %v2674, 1e-30
      %v2867 = vmax.f32 %v2675, 1e-30
      %v2868 = vmax.f32 %v2676, 1e-30
      %v2869 = vmax.f32 %v2677, 1e-30
      %v2870 = vmax.f32 %v2678, 1e-30
      %v2871 = vmax.f32 %v2679, 1e-30
      %v2872 = vmax.f32 %v2680, 1e-30
      %v2873 = vmax.f32 %v2681, 1e-30
      %v2874 = vlog2.pop %v2682
      %v2875 = vmul.f32 %v2874, 0.6931472
      %v2876 = vlog2.pop %v2683
      %v2877 = vmul.f32 %v2876, 0.6931472
      %v2878 = vlog2.pop %v2684
      %v2879 = vmul.f32 %v2878, 0.6931472
      %v2880 = vlog2.pop %v2685
      %v2881 = vmul.f32 %v2880, 0.6931472
      %v2882 = vlog2.pop %v2686
      %v2883 = vmul.f32 %v2882, 0.6931472
      %v2884 = vlog2.pop %v2687
      %v2885 = vmul.f32 %v2884, 0.6931472
      %v2886 = vlog2.pop %v2688
      %v2887 = vmul.f32 %v2886, 0.6931472
      %v2888 = vlog2.pop %v2689
      %v2889 = vmul.f32 %v2888, 0.6931472
      %v2890 = vlog2.pop %v2690
      %v2891 = vmul.f32 %v2890, 0.6931472
      %v2892 = vlog2.pop %v2691
      %v2893 = vmul.f32 %v2892, 0.6931472
      %v2894 = vlog2.pop %v2692
      %v2895 = vmul.f32 %v2894, 0.6931472
      %v2896 = vlog2.pop %v2693
      %v2897 = vmul.f32 %v2896, 0.6931472
      %v2898 = vlog2.pop %v2694
      %v2899 = vmul.f32 %v2898, 0.6931472
      %v2900 = vlog2.pop %v2695
      %v2901 = vmul.f32 %v2900, 0.6931472
      %v2902 = vlog2.pop %v2696
      %v2903 = vmul.f32 %v2902, 0.6931472
      %v2904 = vlog2.pop %v2697
      %v2905 = vmul.f32 %v2904, 0.6931472
      %v2906 = vlog2.pop %v2698
      %v2907 = vmul.f32 %v2906, 0.6931472
      %v2908 = vlog2.pop %v2699
      %v2909 = vmul.f32 %v2908, 0.6931472
      %v2910 = vlog2.pop %v2700
      %v2911 = vmul.f32 %v2910, 0.6931472
      %v2912 = vlog2.pop %v2701
      %v2913 = vmul.f32 %v2912, 0.6931472
      %v2914 = vlog2.pop %v2702
      %v2915 = vmul.f32 %v2914, 0.6931472
      %v2916 = vlog2.pop %v2703
      %v2917 = vmul.f32 %v2916, 0.6931472
      %v2918 = vlog2.pop %v2704
      %v2919 = vmul.f32 %v2918, 0.6931472
      %v2920 = vlog2.pop %v2705
      %v2921 = vmul.f32 %v2920, 0.6931472
      %v2922 = vlog2.pop %v2706
      %v2923 = vmul.f32 %v2922, 0.6931472
      %v2924 = vlog2.pop %v2707
      %v2925 = vmul.f32 %v2924, 0.6931472
      %v2926 = vlog2.pop %v2708
      %v2927 = vmul.f32 %v2926, 0.6931472
      %v2928 = vlog2.pop %v2709
      %v2929 = vmul.f32 %v2928, 0.6931472
      %v2930 = vlog2.pop %v2710
      %v2931 = vmul.f32 %v2930, 0.6931472
      %v2932 = vlog2.pop %v2711
      %v2933 = vmul.f32 %v2932, 0.6931472
      %v2934 = vlog2.pop %v2712
      %v2935 = vmul.f32 %v2934, 0.6931472
      %v2936 = vlog2.pop %v2713
      %v2937 = vmul.f32 %v2936, 0.6931472
      %v2938 = vlog2.pop %v2714
      %v2939 = vmul.f32 %v2938, 0.6931472
      %v2940 = vlog2.pop %v2715
      %v2941 = vmul.f32 %v2940, 0.6931472
      %v2942 = vlog2.pop %v2716
      %v2943 = vmul.f32 %v2942, 0.6931472
      %v2944 = vlog2.pop %v2717
      %v2945 = vmul.f32 %v2944, 0.6931472
      %v2946 = vlog2.pop %v2718
      %v2947 = vmul.f32 %v2946, 0.6931472
      %v2948 = vlog2.pop %v2719
      %v2949 = vmul.f32 %v2948, 0.6931472
      %v2950 = vlog2.pop %v2720
      %v2951 = vmul.f32 %v2950, 0.6931472
      %v2952 = vlog2.pop %v2721
      %v2953 = vmul.f32 %v2952, 0.6931472
      %v2954 = vlog2.pop %v2722
      %v2955 = vmul.f32 %v2954, 0.6931472
      %v2956 = vlog2.pop %v2723
      %v2957 = vmul.f32 %v2956, 0.6931472
      %v2958 = vlog2.pop %v2724
      %v2959 = vmul.f32 %v2958, 0.6931472
      %v2960 = vlog2.pop %v2725
      %v2961 = vmul.f32 %v2960, 0.6931472
      %v2962 = vlog2.pop %v2726
      %v2963 = vmul.f32 %v2962, 0.6931472
      %v2964 = vlog2.pop %v2727
      %v2965 = vmul.f32 %v2964, 0.6931472
      %v2966 = vlog2.pop %v2728
      %v2967 = vmul.f32 %v2966, 0.6931472
      %v2968 = vlog2.pop %v2729
      %v2969 = vmul.f32 %v2968, 0.6931472
      %v2970 = vlog2.pop %v2730
      %v2971 = vmul.f32 %v2970, 0.6931472
      %v2972 = vlog2.pop %v2731
      %v2973 = vmul.f32 %v2972, 0.6931472
      %v2974 = vlog2.pop %v2732
      %v2975 = vmul.f32 %v2974, 0.6931472
      %v2976 = vlog2.pop %v2733
      %v2977 = vmul.f32 %v2976, 0.6931472
      %v2978 = vlog2.pop %v2734
      %v2979 = vmul.f32 %v2978, 0.6931472
      %v2980 = vlog2.pop %v2735
      %v2981 = vmul.f32 %v2980, 0.6931472
      %v2982 = vlog2.pop %v2736
      %v2983 = vmul.f32 %v2982, 0.6931472
      %v2984 = vlog2.pop %v2737
      %v2985 = vmul.f32 %v2984, 0.6931472
      %v2986 = vlog2.pop %v2738
      %v2987 = vmul.f32 %v2986, 0.6931472
      %v2988 = vlog2.pop %v2739
      %v2989 = vmul.f32 %v2988, 0.6931472
      %v2990 = vlog2.pop %v2740
      %v2991 = vmul.f32 %v2990, 0.6931472
      %v2992 = vlog2.pop %v2741
      %v2993 = vmul.f32 %v2992, 0.6931472
      %v2994 = vlog2.pop %v2742
      %v2995 = vmul.f32 %v2994, 0.6931472
      %v2996 = vlog2.pop %v2743
      %v2997 = vmul.f32 %v2996, 0.6931472
      %v2998 = vlog2.pop %v2744
      %v2999 = vmul.f32 %v2998, 0.6931472
      %v3000 = vlog2.pop %v2745
      %v3001 = vmul.f32 %v3000, 0.6931472
      %v3002 = vlog2.pop %v2746
      %v3003 = vmul.f32 %v3002, 0.6931472
      %v3004 = vlog2.pop %v2747
      %v3005 = vmul.f32 %v3004, 0.6931472
      %v3006 = vlog2.pop %v2748
      %v3007 = vmul.f32 %v3006, 0.6931472
      %v3008 = vlog2.pop %v2749
      %v3009 = vmul.f32 %v3008, 0.6931472
      %v3010 = vlog2.pop %v2750
      %v3011 = vmul.f32 %v3010, 0.6931472
      %v3012 = vlog2.pop %v2751
      %v3013 = vmul.f32 %v3012, 0.6931472
      %v3014 = vlog2.pop %v2752
      %v3015 = vmul.f32 %v3014, 0.6931472
      %v3016 = vlog2.pop %v2753
      %v3017 = vmul.f32 %v3016, 0.6931472
      %v3018 = vlog2.pop %v2754
      %v3019 = vmul.f32 %v3018, 0.6931472
      %v3020 = vlog2.pop %v2755
      %v3021 = vmul.f32 %v3020, 0.6931472
      %v3022 = vlog2.pop %v2756
      %v3023 = vmul.f32 %v3022, 0.6931472
      %v3024 = vlog2.pop %v2757
      %v3025 = vmul.f32 %v3024, 0.6931472
      %v3026 = vlog2.pop %v2758
      %v3027 = vmul.f32 %v3026, 0.6931472
      %v3028 = vlog2.pop %v2759
      %v3029 = vmul.f32 %v3028, 0.6931472
      %v3030 = vlog2.pop %v2760
      %v3031 = vmul.f32 %v3030, 0.6931472
      %v3032 = vlog2.pop %v2761
      %v3033 = vmul.f32 %v3032, 0.6931472
      %v3034 = vlog2.pop %v2762
      %v3035 = vmul.f32 %v3034, 0.6931472
      %v3036 = vlog2.pop %v2763
      %v3037 = vmul.f32 %v3036, 0.6931472
      %v3038 = vlog2.pop %v2764
      %v3039 = vmul.f32 %v3038, 0.6931472
      %v3040 = vlog2.pop %v2765
      %v3041 = vmul.f32 %v3040, 0.6931472
      %v3042 = vlog2.pop %v2766
      %v3043 = vmul.f32 %v3042, 0.6931472
      %v3044 = vlog2.pop %v2767
      %v3045 = vmul.f32 %v3044, 0.6931472
      %v3046 = vlog2.pop %v2768
      %v3047 = vmul.f32 %v3046, 0.6931472
      %v3048 = vlog2.pop %v2769
      %v3049 = vmul.f32 %v3048, 0.6931472
      %v3050 = vlog2.pop %v2770
      %v3051 = vmul.f32 %v3050, 0.6931472
      %v3052 = vlog2.pop %v2771
      %v3053 = vmul.f32 %v3052, 0.6931472
      %v3054 = vlog2.pop %v2772
      %v3055 = vmul.f32 %v3054, 0.6931472
      %v3056 = vlog2.pop %v2773
      %v3057 = vmul.f32 %v3056, 0.6931472
      %v3058 = vlog2.pop %v2774
      %v3059 = vmul.f32 %v3058, 0.6931472
      %v3060 = vlog2.pop %v2775
      %v3061 = vmul.f32 %v3060, 0.6931472
      %v3062 = vlog2.pop %v2776
      %v3063 = vmul.f32 %v3062, 0.6931472
      %v3064 = vlog2.pop %v2777
      %v3065 = vmul.f32 %v3064, 0.6931472
      %v3066 = vlog2.pop %v2778
      %v3067 = vmul.f32 %v3066, 0.6931472
      %v3068 = vlog2.pop %v2779
      %v3069 = vmul.f32 %v3068, 0.6931472
      %v3070 = vlog2.pop %v2780
      %v3071 = vmul.f32 %v3070, 0.6931472
      %v3072 = vlog2.pop %v2781
      %v3073 = vmul.f32 %v3072, 0.6931472
      %v3074 = vlog2.pop %v2782
      %v3075 = vmul.f32 %v3074, 0.6931472
      %v3076 = vlog2.pop %v2783
      %v3077 = vmul.f32 %v3076, 0.6931472
      %v3078 = vlog2.pop %v2784
      %v3079 = vmul.f32 %v3078, 0.6931472
      %v3080 = vlog2.pop %v2785
      %v3081 = vmul.f32 %v3080, 0.6931472
      %v3082 = vlog2.pop %v2786
      %v3083 = vmul.f32 %v3082, 0.6931472
      %v3084 = vlog2.pop %v2787
      %v3085 = vmul.f32 %v3084, 0.6931472
      %v3086 = vlog2.pop %v2788
      %v3087 = vmul.f32 %v3086, 0.6931472
      %v3088 = vlog2.pop %v2789
      %v3089 = vmul.f32 %v3088, 0.6931472
      %v3090 = vlog2.pop %v2790
      %v3091 = vmul.f32 %v3090, 0.6931472
      %v3092 = vlog2.pop %v2791
      %v3093 = vmul.f32 %v3092, 0.6931472
      %v3094 = vlog2.pop %v2792
      %v3095 = vmul.f32 %v3094, 0.6931472
      %v3096 = vlog2.pop %v2793
      %v3097 = vmul.f32 %v3096, 0.6931472
      %v3098 = vlog2.pop %v2794
      %v3099 = vmul.f32 %v3098, 0.6931472
      %v3100 = vlog2.pop %v2795
      %v3101 = vmul.f32 %v3100, 0.6931472
      %v3102 = vlog2.pop %v2796
      %v3103 = vmul.f32 %v3102, 0.6931472
      %v3104 = vlog2.pop %v2797
      %v3105 = vmul.f32 %v3104, 0.6931472
      %v3106 = vlog2.pop %v2798
      %v3107 = vmul.f32 %v3106, 0.6931472
      %v3108 = vlog2.pop %v2799
      %v3109 = vmul.f32 %v3108, 0.6931472
      %v3110 = vlog2.pop %v2800
      %v3111 = vmul.f32 %v3110, 0.6931472
      %v3112 = vlog2.pop %v2801
      %v3113 = vmul.f32 %v3112, 0.6931472
      %v3114 = vlog2.pop %v2802
      %v3115 = vmul.f32 %v3114, 0.6931472
      %v3116 = vlog2.pop %v2803
      %v3117 = vmul.f32 %v3116, 0.6931472
      %v3118 = vlog2.pop %v2804
      %v3119 = vmul.f32 %v3118, 0.6931472
      %v3120 = vlog2.pop %v2805
      %v3121 = vmul.f32 %v3120, 0.6931472
      %v3122 = vlog2.pop %v2806
      %v3123 = vmul.f32 %v3122, 0.6931472
      %v3124 = vlog2.pop %v2807
      %v3125 = vmul.f32 %v3124, 0.6931472
      %v3126 = vlog2.pop %v2808
      %v3127 = vmul.f32 %v3126, 0.6931472
      %v3128 = vlog2.pop %v2809
      %v3129 = vmul.f32 %v3128, 0.6931472
      %v3130 = vlog2.pop %v2810
      %v3131 = vmul.f32 %v3130, 0.6931472
      %v3132 = vlog2.pop %v2811
      %v3133 = vmul.f32 %v3132, 0.6931472
      %v3134 = vlog2.pop %v2812
      %v3135 = vmul.f32 %v3134, 0.6931472
      %v3136 = vlog2.pop %v2813
      %v3137 = vmul.f32 %v3136, 0.6931472
      %v3138 = vlog2.pop %v2814
      %v3139 = vmul.f32 %v3138, 0.6931472
      %v3140 = vlog2.pop %v2815
      %v3141 = vmul.f32 %v3140, 0.6931472
      %v3142 = vlog2.pop %v2816
      %v3143 = vmul.f32 %v3142, 0.6931472
      %v3144 = vlog2.pop %v2817
      %v3145 = vmul.f32 %v3144, 0.6931472
      %v3146 = vlog2.pop %v2818
      %v3147 = vmul.f32 %v3146, 0.6931472
      %v3148 = vlog2.pop %v2819
      %v3149 = vmul.f32 %v3148, 0.6931472
      %v3150 = vlog2.pop %v2820
      %v3151 = vmul.f32 %v3150, 0.6931472
      %v3152 = vlog2.pop %v2821
      %v3153 = vmul.f32 %v3152, 0.6931472
      %v3154 = vlog2.pop %v2822
      %v3155 = vmul.f32 %v3154, 0.6931472
      %v3156 = vlog2.pop %v2823
      %v3157 = vmul.f32 %v3156, 0.6931472
      %v3158 = vlog2.pop %v2824
      %v3159 = vmul.f32 %v3158, 0.6931472
      %v3160 = vlog2.pop %v2825
      %v3161 = vmul.f32 %v3160, 0.6931472
      %v3162 = vlog2.pop %v2826
      %v3163 = vmul.f32 %v3162, 0.6931472
      %v3164 = vlog2.pop %v2827
      %v3165 = vmul.f32 %v3164, 0.6931472
      %v3166 = vlog2.pop %v2828
      %v3167 = vmul.f32 %v3166, 0.6931472
      %v3168 = vlog2.pop %v2829
      %v3169 = vmul.f32 %v3168, 0.6931472
      %v3170 = vlog2.pop %v2830
      %v3171 = vmul.f32 %v3170, 0.6931472
      %v3172 = vlog2.pop %v2831
      %v3173 = vmul.f32 %v3172, 0.6931472
      %v3174 = vlog2.pop %v2832
      %v3175 = vmul.f32 %v3174, 0.6931472
      %v3176 = vlog2.pop %v2833
      %v3177 = vmul.f32 %v3176, 0.6931472
      %v3178 = vlog2.pop %v2834
      %v3179 = vmul.f32 %v3178, 0.6931472
      %v3180 = vlog2.pop %v2835
      %v3181 = vmul.f32 %v3180, 0.6931472
      %v3182 = vlog2.pop %v2836
      %v3183 = vmul.f32 %v3182, 0.6931472
      %v3184 = vlog2.pop %v2837
      %v3185 = vmul.f32 %v3184, 0.6931472
      %v3186 = vlog2.pop %v2838
      %v3187 = vmul.f32 %v3186, 0.6931472
      %v3188 = vlog2.pop %v2839
      %v3189 = vmul.f32 %v3188, 0.6931472
      %v3190 = vlog2.pop %v2840
      %v3191 = vmul.f32 %v3190, 0.6931472
      %v3192 = vlog2.pop %v2841
      %v3193 = vmul.f32 %v3192, 0.6931472
      %v3194 = vlog2.pop %v2842
      %v3195 = vmul.f32 %v3194, 0.6931472
      %v3196 = vlog2.pop %v2843
      %v3197 = vmul.f32 %v3196, 0.6931472
      %v3198 = vlog2.pop %v2844
      %v3199 = vmul.f32 %v3198, 0.6931472
      %v3200 = vlog2.pop %v2845
      %v3201 = vmul.f32 %v3200, 0.6931472
      %v3202 = vlog2.pop %v2846
      %v3203 = vmul.f32 %v3202, 0.6931472
      %v3204 = vlog2.pop %v2847
      %v3205 = vmul.f32 %v3204, 0.6931472
      %v3206 = vlog2.pop %v2848
      %v3207 = vmul.f32 %v3206, 0.6931472
      %v3208 = vlog2.pop %v2849
      %v3209 = vmul.f32 %v3208, 0.6931472
      %v3210 = vlog2.pop %v2850
      %v3211 = vmul.f32 %v3210, 0.6931472
      %v3212 = vlog2.pop %v2851
      %v3213 = vmul.f32 %v3212, 0.6931472
      %v3214 = vlog2.pop %v2852
      %v3215 = vmul.f32 %v3214, 0.6931472
      %v3216 = vlog2.pop %v2853
      %v3217 = vmul.f32 %v3216, 0.6931472
      %v3218 = vlog2.pop %v2854
      %v3219 = vmul.f32 %v3218, 0.6931472
      %v3220 = vlog2.pop %v2855
      %v3221 = vmul.f32 %v3220, 0.6931472
      %v3222 = vlog2.pop %v2856
      %v3223 = vmul.f32 %v3222, 0.6931472
      %v3224 = vlog2.pop %v2857
      %v3225 = vmul.f32 %v3224, 0.6931472
      %v3226 = vlog2.pop %v2858
      %v3227 = vmul.f32 %v3226, 0.6931472
      %v3228 = vlog2.pop %v2859
      %v3229 = vmul.f32 %v3228, 0.6931472
      %v3230 = vlog2.pop %v2860
      %v3231 = vmul.f32 %v3230, 0.6931472
      %v3232 = vlog2.pop %v2861
      %v3233 = vmul.f32 %v3232, 0.6931472
      %v3234 = vlog2.pop %v2862
      %v3235 = vmul.f32 %v3234, 0.6931472
      %v3236 = vlog2.pop %v2863
      %v3237 = vmul.f32 %v3236, 0.6931472
      %v3238 = vlog2.pop %v2864
      %v3239 = vmul.f32 %v3238, 0.6931472
      %v3240 = vlog2.pop %v2865
      %v3241 = vmul.f32 %v3240, 0.6931472
      %v3242 = vlog2.pop %v2866
      %v3243 = vmul.f32 %v3242, 0.6931472
      %v3244 = vlog2.pop %v2867
      %v3245 = vmul.f32 %v3244, 0.6931472
      %v3246 = vlog2.pop %v2868
      %v3247 = vmul.f32 %v3246, 0.6931472
      %v3248 = vlog2.pop %v2869
      %v3249 = vmul.f32 %v3248, 0.6931472
      %v3250 = vlog2.pop %v2870
      %v3251 = vmul.f32 %v3250, 0.6931472
      %v3252 = vlog2.pop %v2871
      %v3253 = vmul.f32 %v3252, 0.6931472
      %v3254 = vlog2.pop %v2872
      %v3255 = vmul.f32 %v3254, 0.6931472
      %v3256 = vlog2.pop %v2873
      %v3257 = vmul.f32 %v3256, 0.6931472
      %v3258 = vlaneseq
      %v3259 = vshrl.u32 %v3258, 7
      %v3260 = vsub.s32 2, %v3259
      %v3261 = vrot.slane %v1814, %v3260
      %v3262 = vlaneseq
      %v3263 = vshrl.u32 %v3262, 7
      %v3264 = vsub.s32 6, %v3263
      %v3265 = vrot.slane %v1814, %v3264
      %v3266 = vlaneseq
      %v3267 = vshrl.u32 %v3266, 7
      %v3268 = vsub.s32 2, %v3267
      %v3269 = vrot.slane %v1815, %v3268
      %v3270 = vlaneseq
      %v3271 = vshrl.u32 %v3270, 7
      %v3272 = vsub.s32 6, %v3271
      %v3273 = vrot.slane %v1815, %v3272
      %v3274 = vlaneseq
      %v3275 = vshrl.u32 %v3274, 7
      %v3276 = vsub.s32 2, %v3275
      %v3277 = vrot.slane %v1816, %v3276
      %v3278 = vlaneseq
      %v3279 = vshrl.u32 %v3278, 7
      %v3280 = vsub.s32 6, %v3279
      %v3281 = vrot.slane %v1816, %v3280
      %v3282 = vlaneseq
      %v3283 = vshrl.u32 %v3282, 7
      %v3284 = vsub.s32 2, %v3283
      %v3285 = vrot.slane %v1817, %v3284
      %v3286 = vlaneseq
      %v3287 = vshrl.u32 %v3286, 7
      %v3288 = vsub.s32 6, %v3287
      %v3289 = vrot.slane %v1817, %v3288
      %v3290 = vlaneseq
      %v3291 = vshrl.u32 %v3290, 7
      %v3292 = vsub.s32 2, %v3291
      %v3293 = vrot.slane %v1818, %v3292
      %v3294 = vlaneseq
      %v3295 = vshrl.u32 %v3294, 7
      %v3296 = vsub.s32 6, %v3295
      %v3297 = vrot.slane %v1818, %v3296
      %v3298 = vlaneseq
      %v3299 = vshrl.u32 %v3298, 7
      %v3300 = vsub.s32 2, %v3299
      %v3301 = vrot.slane %v1819, %v3300
      %v3302 = vlaneseq
      %v3303 = vshrl.u32 %v3302, 7
      %v3304 = vsub.s32 6, %v3303
      %v3305 = vrot.slane %v1819, %v3304
      %v3318 = vlaneseq
      %v3319 = vshrl.u32 %v3318, 7
      %v3320 = vsub.s32 2, %v3319
      %v3321 = vrot.slane %v3261, %v3320
      %v3322 = vlaneseq
      %v3323 = vshrl.u32 %v3322, 7
      %v3324 = vsub.s32 2, %v3323
      %v3325 = vrot.slane %v3265, %v3324
      %v3326 = vlaneseq
      %v3327 = vshrl.u32 %v3326, 7
      %v3328 = vsub.s32 2, %v3327
      %v3329 = vrot.slane %v3269, %v3328
      %v3330 = vlaneseq
      %v3331 = vshrl.u32 %v3330, 7
      %v3332 = vsub.s32 2, %v3331
      %v3333 = vrot.slane %v3273, %v3332
      %v3334 = vlaneseq
      %v3335 = vshrl.u32 %v3334, 7
      %v3336 = vsub.s32 2, %v3335
      %v3337 = vrot.slane %v3277, %v3336
      %v3338 = vlaneseq
      %v3339 = vshrl.u32 %v3338, 7
      %v3340 = vsub.s32 2, %v3339
      %v3341 = vrot.slane %v3281, %v3340
      %v3342 = vlaneseq
      %v3343 = vshrl.u32 %v3342, 7
      %v3344 = vsub.s32 2, %v3343
      %v3345 = vrot.slane %v3285, %v3344
      %v3346 = vlaneseq
      %v3347 = vshrl.u32 %v3346, 7
      %v3348 = vsub.s32 2, %v3347
      %v3349 = vrot.slane %v3289, %v3348
      %v3350 = vlaneseq
      %v3351 = vshrl.u32 %v3350, 7
      %v3352 = vsub.s32 2, %v3351
      %v3353 = vrot.slane %v3293, %v3352
      %v3354 = vlaneseq
      %v3355 = vshrl.u32 %v3354, 7
      %v3356 = vsub.s32 2, %v3355
      %v3357 = vrot.slane %v3297, %v3356
      %v3358 = vlaneseq
      %v3359 = vshrl.u32 %v3358, 7
      %v3360 = vsub.s32 2, %v3359
      %v3361 = vrot.slane %v3301, %v3360
      %v3362 = vlaneseq
      %v3363 = vshrl.u32 %v3362, 7
      %v3364 = vsub.s32 2, %v3363
      %v3365 = vrot.slane %v3305, %v3364
      %v3366 = vmul.f32 %v3321, %v2875
      %v3367 = vmul.f32 %v3325, %v2877
      %v3368 = vmul.f32 %v3329, %v2879
      %v3369 = vmul.f32 %v3333, %v2881
      %v3370 = vmul.f32 %v3337, %v2883
      %v3371 = vmul.f32 %v3341, %v2885
      %v3372 = vmul.f32 %v3345, %v2887
      %v3373 = vmul.f32 %v3349, %v2889
      %v3374 = vmul.f32 %v3353, %v2891
      %v3375 = vmul.f32 %v3357, %v2893
      %v3376 = vmul.f32 %v3361, %v2895
      %v3377 = vmul.f32 %v3365, %v2897
      %v3378 = vmul.f32 %v3321, %v2899
      %v3379 = vmul.f32 %v3325, %v2901
      %v3380 = vmul.f32 %v3329, %v2903
      %v3381 = vmul.f32 %v3333, %v2905
      %v3382 = vmul.f32 %v3337, %v2907
      %v3383 = vmul.f32 %v3341, %v2909
      %v3384 = vmul.f32 %v3345, %v2911
      %v3385 = vmul.f32 %v3349, %v2913
      %v3386 = vmul.f32 %v3353, %v2915
      %v3387 = vmul.f32 %v3357, %v2917
      %v3388 = vmul.f32 %v3361, %v2919
      %v3389 = vmul.f32 %v3365, %v2921
      %v3390 = vmul.f32 %v3321, %v2923
      %v3391 = vmul.f32 %v3325, %v2925
      %v3392 = vmul.f32 %v3329, %v2927
      %v3393 = vmul.f32 %v3333, %v2929
      %v3394 = vmul.f32 %v3337, %v2931
      %v3395 = vmul.f32 %v3341, %v2933
      %v3396 = vmul.f32 %v3345, %v2935
      %v3397 = vmul.f32 %v3349, %v2937
      %v3398 = vmul.f32 %v3353, %v2939
      %v3399 = vmul.f32 %v3357, %v2941
      %v3400 = vmul.f32 %v3361, %v2943
      %v3401 = vmul.f32 %v3365, %v2945
      %v3402 = vmul.f32 %v3321, %v2947
      %v3403 = vmul.f32 %v3325, %v2949
      %v3404 = vmul.f32 %v3329, %v2951
      %v3405 = vmul.f32 %v3333, %v2953
      %v3406 = vmul.f32 %v3337, %v2955
      %v3407 = vmul.f32 %v3341, %v2957
      %v3408 = vmul.f32 %v3345, %v2959
      %v3409 = vmul.f32 %v3349, %v2961
      %v3410 = vmul.f32 %v3353, %v2963
      %v3411 = vmul.f32 %v3357, %v2965
      %v3412 = vmul.f32 %v3361, %v2967
      %v3413 = vmul.f32 %v3365, %v2969
      %v3414 = vmul.f32 %v3321, %v2971
      %v3415 = vmul.f32 %v3325, %v2973
      %v3416 = vmul.f32 %v3329, %v2975
      %v3417 = vmul.f32 %v3333, %v2977
      %v3418 = vmul.f32 %v3337, %v2979
      %v3419 = vmul.f32 %v3341, %v2981
      %v3420 = vmul.f32 %v3345, %v2983
      %v3421 = vmul.f32 %v3349, %v2985
      %v3422 = vmul.f32 %v3353, %v2987
      %v3423 = vmul.f32 %v3357, %v2989
      %v3424 = vmul.f32 %v3361, %v2991
      %v3425 = vmul.f32 %v3365, %v2993
      %v3426 = vmul.f32 %v3321, %v2995
      %v3427 = vmul.f32 %v3325, %v2997
      %v3428 = vmul.f32 %v3329, %v2999
      %v3429 = vmul.f32 %v3333, %v3001
      %v3430 = vmul.f32 %v3337, %v3003
      %v3431 = vmul.f32 %v3341, %v3005
      %v3432 = vmul.f32 %v3345, %v3007
      %v3433 = vmul.f32 %v3349, %v3009
      %v3434 = vmul.f32 %v3353, %v3011
      %v3435 = vmul.f32 %v3357, %v3013
      %v3436 = vmul.f32 %v3361, %v3015
      %v3437 = vmul.f32 %v3365, %v3017
      %v3438 = vmul.f32 %v3321, %v3019
      %v3439 = vmul.f32 %v3325, %v3021
      %v3440 = vmul.f32 %v3329, %v3023
      %v3441 = vmul.f32 %v3333, %v3025
      %v3442 = vmul.f32 %v3337, %v3027
      %v3443 = vmul.f32 %v3341, %v3029
      %v3444 = vmul.f32 %v3345, %v3031
      %v3445 = vmul.f32 %v3349, %v3033
      %v3446 = vmul.f32 %v3353, %v3035
      %v3447 = vmul.f32 %v3357, %v3037
      %v3448 = vmul.f32 %v3361, %v3039
      %v3449 = vmul.f32 %v3365, %v3041
      %v3450 = vmul.f32 %v3321, %v3043
      %v3451 = vmul.f32 %v3325, %v3045
      %v3452 = vmul.f32 %v3329, %v3047
      %v3453 = vmul.f32 %v3333, %v3049
      %v3454 = vmul.f32 %v3337, %v3051
      %v3455 = vmul.f32 %v3341, %v3053
      %v3456 = vmul.f32 %v3345, %v3055
      %v3457 = vmul.f32 %v3349, %v3057
      %v3458 = vmul.f32 %v3353, %v3059
      %v3459 = vmul.f32 %v3357, %v3061
      %v3460 = vmul.f32 %v3361, %v3063
      %v3461 = vmul.f32 %v3365, %v3065
      %v3462 = vmul.f32 %v3321, %v3067
      %v3463 = vmul.f32 %v3325, %v3069
      %v3464 = vmul.f32 %v3329, %v3071
      %v3465 = vmul.f32 %v3333, %v3073
      %v3466 = vmul.f32 %v3337, %v3075
      %v3467 = vmul.f32 %v3341, %v3077
      %v3468 = vmul.f32 %v3345, %v3079
      %v3469 = vmul.f32 %v3349, %v3081
      %v3470 = vmul.f32 %v3353, %v3083
      %v3471 = vmul.f32 %v3357, %v3085
      %v3472 = vmul.f32 %v3361, %v3087
      %v3473 = vmul.f32 %v3365, %v3089
      %v3474 = vmul.f32 %v3321, %v3091
      %v3475 = vmul.f32 %v3325, %v3093
      %v3476 = vmul.f32 %v3329, %v3095
      %v3477 = vmul.f32 %v3333, %v3097
      %v3478 = vmul.f32 %v3337, %v3099
      %v3479 = vmul.f32 %v3341, %v3101
      %v3480 = vmul.f32 %v3345, %v3103
      %v3481 = vmul.f32 %v3349, %v3105
      %v3482 = vmul.f32 %v3353, %v3107
      %v3483 = vmul.f32 %v3357, %v3109
      %v3484 = vmul.f32 %v3361, %v3111
      %v3485 = vmul.f32 %v3365, %v3113
      %v3486 = vmul.f32 %v3321, %v3115
      %v3487 = vmul.f32 %v3325, %v3117
      %v3488 = vmul.f32 %v3329, %v3119
      %v3489 = vmul.f32 %v3333, %v3121
      %v3490 = vmul.f32 %v3337, %v3123
      %v3491 = vmul.f32 %v3341, %v3125
      %v3492 = vmul.f32 %v3345, %v3127
      %v3493 = vmul.f32 %v3349, %v3129
      %v3494 = vmul.f32 %v3353, %v3131
      %v3495 = vmul.f32 %v3357, %v3133
      %v3496 = vmul.f32 %v3361, %v3135
      %v3497 = vmul.f32 %v3365, %v3137
      %v3498 = vmul.f32 %v3321, %v3139
      %v3499 = vmul.f32 %v3325, %v3141
      %v3500 = vmul.f32 %v3329, %v3143
      %v3501 = vmul.f32 %v3333, %v3145
      %v3502 = vmul.f32 %v3337, %v3147
      %v3503 = vmul.f32 %v3341, %v3149
      %v3504 = vmul.f32 %v3345, %v3151
      %v3505 = vmul.f32 %v3349, %v3153
      %v3506 = vmul.f32 %v3353, %v3155
      %v3507 = vmul.f32 %v3357, %v3157
      %v3508 = vmul.f32 %v3361, %v3159
      %v3509 = vmul.f32 %v3365, %v3161
      %v3510 = vmul.f32 %v3321, %v3163
      %v3511 = vmul.f32 %v3325, %v3165
      %v3512 = vmul.f32 %v3329, %v3167
      %v3513 = vmul.f32 %v3333, %v3169
      %v3514 = vmul.f32 %v3337, %v3171
      %v3515 = vmul.f32 %v3341, %v3173
      %v3516 = vmul.f32 %v3345, %v3175
      %v3517 = vmul.f32 %v3349, %v3177
      %v3518 = vmul.f32 %v3353, %v3179
      %v3519 = vmul.f32 %v3357, %v3181
      %v3520 = vmul.f32 %v3361, %v3183
      %v3521 = vmul.f32 %v3365, %v3185
      %v3522 = vmul.f32 %v3321, %v3187
      %v3523 = vmul.f32 %v3325, %v3189
      %v3524 = vmul.f32 %v3329, %v3191
      %v3525 = vmul.f32 %v3333, %v3193
      %v3526 = vmul.f32 %v3337, %v3195
      %v3527 = vmul.f32 %v3341, %v3197
      %v3528 = vmul.f32 %v3345, %v3199
      %v3529 = vmul.f32 %v3349, %v3201
      %v3530 = vmul.f32 %v3353, %v3203
      %v3531 = vmul.f32 %v3357, %v3205
      %v3532 = vmul.f32 %v3361, %v3207
      %v3533 = vmul.f32 %v3365, %v3209
      %v3534 = vmul.f32 %v3321, %v3211
      %v3535 = vmul.f32 %v3325, %v3213
      %v3536 = vmul.f32 %v3329, %v3215
      %v3537 = vmul.f32 %v3333, %v3217
      %v3538 = vmul.f32 %v3337, %v3219
      %v3539 = vmul.f32 %v3341, %v3221
      %v3540 = vmul.f32 %v3345, %v3223
      %v3541 = vmul.f32 %v3349, %v3225
      %v3542 = vmul.f32 %v3353, %v3227
      %v3543 = vmul.f32 %v3357, %v3229
      %v3544 = vmul.f32 %v3361, %v3231
      %v3545 = vmul.f32 %v3365, %v3233
      %v3546 = vmul.f32 %v3321, %v3235
      %v3547 = vmul.f32 %v3325, %v3237
      %v3548 = vmul.f32 %v3329, %v3239
      %v3549 = vmul.f32 %v3333, %v3241
      %v3550 = vmul.f32 %v3337, %v3243
      %v3551 = vmul.f32 %v3341, %v3245
      %v3552 = vmul.f32 %v3345, %v3247
      %v3553 = vmul.f32 %v3349, %v3249
      %v3554 = vmul.f32 %v3353, %v3251
      %v3555 = vmul.f32 %v3357, %v3253
      %v3556 = vmul.f32 %v3361, %v3255
      %v3557 = vmul.f32 %v3365, %v3257
      %v3558 = vmul.f32 %v3366, 1.442695
      %v3559 = vpow.pop %v3558
      %v3560 = vmul.f32 %v3367, 1.442695
      %v3561 = vpow.pop %v3560
      %v3562 = vmul.f32 %v3368, 1.442695
      %v3563 = vpow.pop %v3562
      %v3564 = vmul.f32 %v3369, 1.442695
      %v3565 = vpow.pop %v3564
      %v3566 = vmul.f32 %v3370, 1.442695
      %v3567 = vpow.pop %v3566
      %v3568 = vmul.f32 %v3371, 1.442695
      %v3569 = vpow.pop %v3568
      %v3570 = vmul.f32 %v3372, 1.442695
      %v3571 = vpow.pop %v3570
      %v3572 = vmul.f32 %v3373, 1.442695
      %v3573 = vpow.pop %v3572
      %v3574 = vmul.f32 %v3374, 1.442695
      %v3575 = vpow.pop %v3574
      %v3576 = vmul.f32 %v3375, 1.442695
      %v3577 = vpow.pop %v3576
      %v3578 = vmul.f32 %v3376, 1.442695
      %v3579 = vpow.pop %v3578
      %v3580 = vmul.f32 %v3377, 1.442695
      %v3581 = vpow.pop %v3580
      %v3582 = vmul.f32 %v3378, 1.442695
      %v3583 = vpow.pop %v3582
      %v3584 = vmul.f32 %v3379, 1.442695
      %v3585 = vpow.pop %v3584
      %v3586 = vmul.f32 %v3380, 1.442695
      %v3587 = vpow.pop %v3586
      %v3588 = vmul.f32 %v3381, 1.442695
      %v3589 = vpow.pop %v3588
      %v3590 = vmul.f32 %v3382, 1.442695
      %v3591 = vpow.pop %v3590
      %v3592 = vmul.f32 %v3383, 1.442695
      %v3593 = vpow.pop %v3592
      %v3594 = vmul.f32 %v3384, 1.442695
      %v3595 = vpow.pop %v3594
      %v3596 = vmul.f32 %v3385, 1.442695
      %v3597 = vpow.pop %v3596
      %v3598 = vmul.f32 %v3386, 1.442695
      %v3599 = vpow.pop %v3598
      %v3600 = vmul.f32 %v3387, 1.442695
      %v3601 = vpow.pop %v3600
      %v3602 = vmul.f32 %v3388, 1.442695
      %v3603 = vpow.pop %v3602
      %v3604 = vmul.f32 %v3389, 1.442695
      %v3605 = vpow.pop %v3604
      %v3606 = vmul.f32 %v3390, 1.442695
      %v3607 = vpow.pop %v3606
      %v3608 = vmul.f32 %v3391, 1.442695
      %v3609 = vpow.pop %v3608
      %v3610 = vmul.f32 %v3392, 1.442695
      %v3611 = vpow.pop %v3610
      %v3612 = vmul.f32 %v3393, 1.442695
      %v3613 = vpow.pop %v3612
      %v3614 = vmul.f32 %v3394, 1.442695
      %v3615 = vpow.pop %v3614
      %v3616 = vmul.f32 %v3395, 1.442695
      %v3617 = vpow.pop %v3616
      %v3618 = vmul.f32 %v3396, 1.442695
      %v3619 = vpow.pop %v3618
      %v3620 = vmul.f32 %v3397, 1.442695
      %v3621 = vpow.pop %v3620
      %v3622 = vmul.f32 %v3398, 1.442695
      %v3623 = vpow.pop %v3622
      %v3624 = vmul.f32 %v3399, 1.442695
      %v3625 = vpow.pop %v3624
      %v3626 = vmul.f32 %v3400, 1.442695
      %v3627 = vpow.pop %v3626
      %v3628 = vmul.f32 %v3401, 1.442695
      %v3629 = vpow.pop %v3628
      %v3630 = vmul.f32 %v3402, 1.442695
      %v3631 = vpow.pop %v3630
      %v3632 = vmul.f32 %v3403, 1.442695
      %v3633 = vpow.pop %v3632
      %v3634 = vmul.f32 %v3404, 1.442695
      %v3635 = vpow.pop %v3634
      %v3636 = vmul.f32 %v3405, 1.442695
      %v3637 = vpow.pop %v3636
      %v3638 = vmul.f32 %v3406, 1.442695
      %v3639 = vpow.pop %v3638
      %v3640 = vmul.f32 %v3407, 1.442695
      %v3641 = vpow.pop %v3640
      %v3642 = vmul.f32 %v3408, 1.442695
      %v3643 = vpow.pop %v3642
      %v3644 = vmul.f32 %v3409, 1.442695
      %v3645 = vpow.pop %v3644
      %v3646 = vmul.f32 %v3410, 1.442695
      %v3647 = vpow.pop %v3646
      %v3648 = vmul.f32 %v3411, 1.442695
      %v3649 = vpow.pop %v3648
      %v3650 = vmul.f32 %v3412, 1.442695
      %v3651 = vpow.pop %v3650
      %v3652 = vmul.f32 %v3413, 1.442695
      %v3653 = vpow.pop %v3652
      %v3654 = vmul.f32 %v3414, 1.442695
      %v3655 = vpow.pop %v3654
      %v3656 = vmul.f32 %v3415, 1.442695
      %v3657 = vpow.pop %v3656
      %v3658 = vmul.f32 %v3416, 1.442695
      %v3659 = vpow.pop %v3658
      %v3660 = vmul.f32 %v3417, 1.442695
      %v3661 = vpow.pop %v3660
      %v3662 = vmul.f32 %v3418, 1.442695
      %v3663 = vpow.pop %v3662
      %v3664 = vmul.f32 %v3419, 1.442695
      %v3665 = vpow.pop %v3664
      %v3666 = vmul.f32 %v3420, 1.442695
      %v3667 = vpow.pop %v3666
      %v3668 = vmul.f32 %v3421, 1.442695
      %v3669 = vpow.pop %v3668
      %v3670 = vmul.f32 %v3422, 1.442695
      %v3671 = vpow.pop %v3670
      %v3672 = vmul.f32 %v3423, 1.442695
      %v3673 = vpow.pop %v3672
      %v3674 = vmul.f32 %v3424, 1.442695
      %v3675 = vpow.pop %v3674
      %v3676 = vmul.f32 %v3425, 1.442695
      %v3677 = vpow.pop %v3676
      %v3678 = vmul.f32 %v3426, 1.442695
      %v3679 = vpow.pop %v3678
      %v3680 = vmul.f32 %v3427, 1.442695
      %v3681 = vpow.pop %v3680
      %v3682 = vmul.f32 %v3428, 1.442695
      %v3683 = vpow.pop %v3682
      %v3684 = vmul.f32 %v3429, 1.442695
      %v3685 = vpow.pop %v3684
      %v3686 = vmul.f32 %v3430, 1.442695
      %v3687 = vpow.pop %v3686
      %v3688 = vmul.f32 %v3431, 1.442695
      %v3689 = vpow.pop %v3688
      %v3690 = vmul.f32 %v3432, 1.442695
      %v3691 = vpow.pop %v3690
      %v3692 = vmul.f32 %v3433, 1.442695
      %v3693 = vpow.pop %v3692
      %v3694 = vmul.f32 %v3434, 1.442695
      %v3695 = vpow.pop %v3694
      %v3696 = vmul.f32 %v3435, 1.442695
      %v3697 = vpow.pop %v3696
      %v3698 = vmul.f32 %v3436, 1.442695
      %v3699 = vpow.pop %v3698
      %v3700 = vmul.f32 %v3437, 1.442695
      %v3701 = vpow.pop %v3700
      %v3702 = vmul.f32 %v3438, 1.442695
      %v3703 = vpow.pop %v3702
      %v3704 = vmul.f32 %v3439, 1.442695
      %v3705 = vpow.pop %v3704
      %v3706 = vmul.f32 %v3440, 1.442695
      %v3707 = vpow.pop %v3706
      %v3708 = vmul.f32 %v3441, 1.442695
      %v3709 = vpow.pop %v3708
      %v3710 = vmul.f32 %v3442, 1.442695
      %v3711 = vpow.pop %v3710
      %v3712 = vmul.f32 %v3443, 1.442695
      %v3713 = vpow.pop %v3712
      %v3714 = vmul.f32 %v3444, 1.442695
      %v3715 = vpow.pop %v3714
      %v3716 = vmul.f32 %v3445, 1.442695
      %v3717 = vpow.pop %v3716
      %v3718 = vmul.f32 %v3446, 1.442695
      %v3719 = vpow.pop %v3718
      %v3720 = vmul.f32 %v3447, 1.442695
      %v3721 = vpow.pop %v3720
      %v3722 = vmul.f32 %v3448, 1.442695
      %v3723 = vpow.pop %v3722
      %v3724 = vmul.f32 %v3449, 1.442695
      %v3725 = vpow.pop %v3724
      %v3726 = vmul.f32 %v3450, 1.442695
      %v3727 = vpow.pop %v3726
      %v3728 = vmul.f32 %v3451, 1.442695
      %v3729 = vpow.pop %v3728
      %v3730 = vmul.f32 %v3452, 1.442695
      %v3731 = vpow.pop %v3730
      %v3732 = vmul.f32 %v3453, 1.442695
      %v3733 = vpow.pop %v3732
      %v3734 = vmul.f32 %v3454, 1.442695
      %v3735 = vpow.pop %v3734
      %v3736 = vmul.f32 %v3455, 1.442695
      %v3737 = vpow.pop %v3736
      %v3738 = vmul.f32 %v3456, 1.442695
      %v3739 = vpow.pop %v3738
      %v3740 = vmul.f32 %v3457, 1.442695
      %v3741 = vpow.pop %v3740
      %v3742 = vmul.f32 %v3458, 1.442695
      %v3743 = vpow.pop %v3742
      %v3744 = vmul.f32 %v3459, 1.442695
      %v3745 = vpow.pop %v3744
      %v3746 = vmul.f32 %v3460, 1.442695
      %v3747 = vpow.pop %v3746
      %v3748 = vmul.f32 %v3461, 1.442695
      %v3749 = vpow.pop %v3748
      %v3750 = vmul.f32 %v3462, 1.442695
      %v3751 = vpow.pop %v3750
      %v3752 = vmul.f32 %v3463, 1.442695
      %v3753 = vpow.pop %v3752
      %v3754 = vmul.f32 %v3464, 1.442695
      %v3755 = vpow.pop %v3754
      %v3756 = vmul.f32 %v3465, 1.442695
      %v3757 = vpow.pop %v3756
      %v3758 = vmul.f32 %v3466, 1.442695
      %v3759 = vpow.pop %v3758
      %v3760 = vmul.f32 %v3467, 1.442695
      %v3761 = vpow.pop %v3760
      %v3762 = vmul.f32 %v3468, 1.442695
      %v3763 = vpow.pop %v3762
      %v3764 = vmul.f32 %v3469, 1.442695
      %v3765 = vpow.pop %v3764
      %v3766 = vmul.f32 %v3470, 1.442695
      %v3767 = vpow.pop %v3766
      %v3768 = vmul.f32 %v3471, 1.442695
      %v3769 = vpow.pop %v3768
      %v3770 = vmul.f32 %v3472, 1.442695
      %v3771 = vpow.pop %v3770
      %v3772 = vmul.f32 %v3473, 1.442695
      %v3773 = vpow.pop %v3772
      %v3774 = vmul.f32 %v3474, 1.442695
      %v3775 = vpow.pop %v3774
      %v3776 = vmul.f32 %v3475, 1.442695
      %v3777 = vpow.pop %v3776
      %v3778 = vmul.f32 %v3476, 1.442695
      %v3779 = vpow.pop %v3778
      %v3780 = vmul.f32 %v3477, 1.442695
      %v3781 = vpow.pop %v3780
      %v3782 = vmul.f32 %v3478, 1.442695
      %v3783 = vpow.pop %v3782
      %v3784 = vmul.f32 %v3479, 1.442695
      %v3785 = vpow.pop %v3784
      %v3786 = vmul.f32 %v3480, 1.442695
      %v3787 = vpow.pop %v3786
      %v3788 = vmul.f32 %v3481, 1.442695
      %v3789 = vpow.pop %v3788
      %v3790 = vmul.f32 %v3482, 1.442695
      %v3791 = vpow.pop %v3790
      %v3792 = vmul.f32 %v3483, 1.442695
      %v3793 = vpow.pop %v3792
      %v3794 = vmul.f32 %v3484, 1.442695
      %v3795 = vpow.pop %v3794
      %v3796 = vmul.f32 %v3485, 1.442695
      %v3797 = vpow.pop %v3796
      %v3798 = vmul.f32 %v3486, 1.442695
      %v3799 = vpow.pop %v3798
      %v3800 = vmul.f32 %v3487, 1.442695
      %v3801 = vpow.pop %v3800
      %v3802 = vmul.f32 %v3488, 1.442695
      %v3803 = vpow.pop %v3802
      %v3804 = vmul.f32 %v3489, 1.442695
      %v3805 = vpow.pop %v3804
      %v3806 = vmul.f32 %v3490, 1.442695
      %v3807 = vpow.pop %v3806
      %v3808 = vmul.f32 %v3491, 1.442695
      %v3809 = vpow.pop %v3808
      %v3810 = vmul.f32 %v3492, 1.442695
      %v3811 = vpow.pop %v3810
      %v3812 = vmul.f32 %v3493, 1.442695
      %v3813 = vpow.pop %v3812
      %v3814 = vmul.f32 %v3494, 1.442695
      %v3815 = vpow.pop %v3814
      %v3816 = vmul.f32 %v3495, 1.442695
      %v3817 = vpow.pop %v3816
      %v3818 = vmul.f32 %v3496, 1.442695
      %v3819 = vpow.pop %v3818
      %v3820 = vmul.f32 %v3497, 1.442695
      %v3821 = vpow.pop %v3820
      %v3822 = vmul.f32 %v3498, 1.442695
      %v3823 = vpow.pop %v3822
      %v3824 = vmul.f32 %v3499, 1.442695
      %v3825 = vpow.pop %v3824
      %v3826 = vmul.f32 %v3500, 1.442695
      %v3827 = vpow.pop %v3826
      %v3828 = vmul.f32 %v3501, 1.442695
      %v3829 = vpow.pop %v3828
      %v3830 = vmul.f32 %v3502, 1.442695
      %v3831 = vpow.pop %v3830
      %v3832 = vmul.f32 %v3503, 1.442695
      %v3833 = vpow.pop %v3832
      %v3834 = vmul.f32 %v3504, 1.442695
      %v3835 = vpow.pop %v3834
      %v3836 = vmul.f32 %v3505, 1.442695
      %v3837 = vpow.pop %v3836
      %v3838 = vmul.f32 %v3506, 1.442695
      %v3839 = vpow.pop %v3838
      %v3840 = vmul.f32 %v3507, 1.442695
      %v3841 = vpow.pop %v3840
      %v3842 = vmul.f32 %v3508, 1.442695
      %v3843 = vpow.pop %v3842
      %v3844 = vmul.f32 %v3509, 1.442695
      %v3845 = vpow.pop %v3844
      %v3846 = vmul.f32 %v3510, 1.442695
      %v3847 = vpow.pop %v3846
      %v3848 = vmul.f32 %v3511, 1.442695
      %v3849 = vpow.pop %v3848
      %v3850 = vmul.f32 %v3512, 1.442695
      %v3851 = vpow.pop %v3850
      %v3852 = vmul.f32 %v3513, 1.442695
      %v3853 = vpow.pop %v3852
      %v3854 = vmul.f32 %v3514, 1.442695
      %v3855 = vpow.pop %v3854
      %v3856 = vmul.f32 %v3515, 1.442695
      %v3857 = vpow.pop %v3856
      %v3858 = vmul.f32 %v3516, 1.442695
      %v3859 = vpow.pop %v3858
      %v3860 = vmul.f32 %v3517, 1.442695
      %v3861 = vpow.pop %v3860
      %v3862 = vmul.f32 %v3518, 1.442695
      %v3863 = vpow.pop %v3862
      %v3864 = vmul.f32 %v3519, 1.442695
      %v3865 = vpow.pop %v3864
      %v3866 = vmul.f32 %v3520, 1.442695
      %v3867 = vpow.pop %v3866
      %v3868 = vmul.f32 %v3521, 1.442695
      %v3869 = vpow.pop %v3868
      %v3870 = vmul.f32 %v3522, 1.442695
      %v3871 = vpow.pop %v3870
      %v3872 = vmul.f32 %v3523, 1.442695
      %v3873 = vpow.pop %v3872
      %v3874 = vmul.f32 %v3524, 1.442695
      %v3875 = vpow.pop %v3874
      %v3876 = vmul.f32 %v3525, 1.442695
      %v3877 = vpow.pop %v3876
      %v3878 = vmul.f32 %v3526, 1.442695
      %v3879 = vpow.pop %v3878
      %v3880 = vmul.f32 %v3527, 1.442695
      %v3881 = vpow.pop %v3880
      %v3882 = vmul.f32 %v3528, 1.442695
      %v3883 = vpow.pop %v3882
      %v3884 = vmul.f32 %v3529, 1.442695
      %v3885 = vpow.pop %v3884
      %v3886 = vmul.f32 %v3530, 1.442695
      %v3887 = vpow.pop %v3886
      %v3888 = vmul.f32 %v3531, 1.442695
      %v3889 = vpow.pop %v3888
      %v3890 = vmul.f32 %v3532, 1.442695
      %v3891 = vpow.pop %v3890
      %v3892 = vmul.f32 %v3533, 1.442695
      %v3893 = vpow.pop %v3892
      %v3894 = vmul.f32 %v3534, 1.442695
      %v3895 = vpow.pop %v3894
      %v3896 = vmul.f32 %v3535, 1.442695
      %v3897 = vpow.pop %v3896
      %v3898 = vmul.f32 %v3536, 1.442695
      %v3899 = vpow.pop %v3898
      %v3900 = vmul.f32 %v3537, 1.442695
      %v3901 = vpow.pop %v3900
      %v3902 = vmul.f32 %v3538, 1.442695
      %v3903 = vpow.pop %v3902
      %v3904 = vmul.f32 %v3539, 1.442695
      %v3905 = vpow.pop %v3904
      %v3906 = vmul.f32 %v3540, 1.442695
      %v3907 = vpow.pop %v3906
      %v3908 = vmul.f32 %v3541, 1.442695
      %v3909 = vpow.pop %v3908
      %v3910 = vmul.f32 %v3542, 1.442695
      %v3911 = vpow.pop %v3910
      %v3912 = vmul.f32 %v3543, 1.442695
      %v3913 = vpow.pop %v3912
      %v3914 = vmul.f32 %v3544, 1.442695
      %v3915 = vpow.pop %v3914
      %v3916 = vmul.f32 %v3545, 1.442695
      %v3917 = vpow.pop %v3916
      %v3918 = vmul.f32 %v3546, 1.442695
      %v3919 = vpow.pop %v3918
      %v3920 = vmul.f32 %v3547, 1.442695
      %v3921 = vpow.pop %v3920
      %v3922 = vmul.f32 %v3548, 1.442695
      %v3923 = vpow.pop %v3922
      %v3924 = vmul.f32 %v3549, 1.442695
      %v3925 = vpow.pop %v3924
      %v3926 = vmul.f32 %v3550, 1.442695
      %v3927 = vpow.pop %v3926
      %v3928 = vmul.f32 %v3551, 1.442695
      %v3929 = vpow.pop %v3928
      %v3930 = vmul.f32 %v3552, 1.442695
      %v3931 = vpow.pop %v3930
      %v3932 = vmul.f32 %v3553, 1.442695
      %v3933 = vpow.pop %v3932
      %v3934 = vmul.f32 %v3554, 1.442695
      %v3935 = vpow.pop %v3934
      %v3936 = vmul.f32 %v3555, 1.442695
      %v3937 = vpow.pop %v3936
      %v3938 = vmul.f32 %v3556, 1.442695
      %v3939 = vpow.pop %v3938
      %v3940 = vmul.f32 %v3557, 1.442695
      %v3941 = vpow.pop %v3940
      %v3942 = vsub.f32 0.0, %v3559
      %v3943 = vsub.f32 0.0, %v3561
      %v3944 = vsub.f32 0.0, %v3563
      %v3945 = vsub.f32 0.0, %v3565
      %v3946 = vsub.f32 0.0, %v3567
      %v3947 = vsub.f32 0.0, %v3569
      %v3948 = vsub.f32 0.0, %v3571
      %v3949 = vsub.f32 0.0, %v3573
      %v3950 = vsub.f32 0.0, %v3575
      %v3951 = vsub.f32 0.0, %v3577
      %v3952 = vsub.f32 0.0, %v3579
      %v3953 = vsub.f32 0.0, %v3581
      %v3954 = vsub.f32 0.0, %v3583
      %v3955 = vsub.f32 0.0, %v3585
      %v3956 = vsub.f32 0.0, %v3587
      %v3957 = vsub.f32 0.0, %v3589
      %v3958 = vsub.f32 0.0, %v3591
      %v3959 = vsub.f32 0.0, %v3593
      %v3960 = vsub.f32 0.0, %v3595
      %v3961 = vsub.f32 0.0, %v3597
      %v3962 = vsub.f32 0.0, %v3599
      %v3963 = vsub.f32 0.0, %v3601
      %v3964 = vsub.f32 0.0, %v3603
      %v3965 = vsub.f32 0.0, %v3605
      %v3966 = vsub.f32 0.0, %v3607
      %v3967 = vsub.f32 0.0, %v3609
      %v3968 = vsub.f32 0.0, %v3611
      %v3969 = vsub.f32 0.0, %v3613
      %v3970 = vsub.f32 0.0, %v3615
      %v3971 = vsub.f32 0.0, %v3617
      %v3972 = vsub.f32 0.0, %v3619
      %v3973 = vsub.f32 0.0, %v3621
      %v3974 = vsub.f32 0.0, %v3623
      %v3975 = vsub.f32 0.0, %v3625
      %v3976 = vsub.f32 0.0, %v3627
      %v3977 = vsub.f32 0.0, %v3629
      %v3978 = vsub.f32 0.0, %v3631
      %v3979 = vsub.f32 0.0, %v3633
      %v3980 = vsub.f32 0.0, %v3635
      %v3981 = vsub.f32 0.0, %v3637
      %v3982 = vsub.f32 0.0, %v3639
      %v3983 = vsub.f32 0.0, %v3641
      %v3984 = vsub.f32 0.0, %v3643
      %v3985 = vsub.f32 0.0, %v3645
      %v3986 = vsub.f32 0.0, %v3647
      %v3987 = vsub.f32 0.0, %v3649
      %v3988 = vsub.f32 0.0, %v3651
      %v3989 = vsub.f32 0.0, %v3653
      %v3990 = vsub.f32 0.0, %v3655
      %v3991 = vsub.f32 0.0, %v3657
      %v3992 = vsub.f32 0.0, %v3659
      %v3993 = vsub.f32 0.0, %v3661
      %v3994 = vsub.f32 0.0, %v3663
      %v3995 = vsub.f32 0.0, %v3665
      %v3996 = vsub.f32 0.0, %v3667
      %v3997 = vsub.f32 0.0, %v3669
      %v3998 = vsub.f32 0.0, %v3671
      %v3999 = vsub.f32 0.0, %v3673
      %v4000 = vsub.f32 0.0, %v3675
      %v4001 = vsub.f32 0.0, %v3677
      %v4002 = vsub.f32 0.0, %v3679
      %v4003 = vsub.f32 0.0, %v3681
      %v4004 = vsub.f32 0.0, %v3683
      %v4005 = vsub.f32 0.0, %v3685
      %v4006 = vsub.f32 0.0, %v3687
      %v4007 = vsub.f32 0.0, %v3689
      %v4008 = vsub.f32 0.0, %v3691
      %v4009 = vsub.f32 0.0, %v3693
      %v4010 = vsub.f32 0.0, %v3695
      %v4011 = vsub.f32 0.0, %v3697
      %v4012 = vsub.f32 0.0, %v3699
      %v4013 = vsub.f32 0.0, %v3701
      %v4014 = vsub.f32 0.0, %v3703
      %v4015 = vsub.f32 0.0, %v3705
      %v4016 = vsub.f32 0.0, %v3707
      %v4017 = vsub.f32 0.0, %v3709
      %v4018 = vsub.f32 0.0, %v3711
      %v4019 = vsub.f32 0.0, %v3713
      %v4020 = vsub.f32 0.0, %v3715
      %v4021 = vsub.f32 0.0, %v3717
      %v4022 = vsub.f32 0.0, %v3719
      %v4023 = vsub.f32 0.0, %v3721
      %v4024 = vsub.f32 0.0, %v3723
      %v4025 = vsub.f32 0.0, %v3725
      %v4026 = vsub.f32 0.0, %v3727
      %v4027 = vsub.f32 0.0, %v3729
      %v4028 = vsub.f32 0.0, %v3731
      %v4029 = vsub.f32 0.0, %v3733
      %v4030 = vsub.f32 0.0, %v3735
      %v4031 = vsub.f32 0.0, %v3737
      %v4032 = vsub.f32 0.0, %v3739
      %v4033 = vsub.f32 0.0, %v3741
      %v4034 = vsub.f32 0.0, %v3743
      %v4035 = vsub.f32 0.0, %v3745
      %v4036 = vsub.f32 0.0, %v3747
      %v4037 = vsub.f32 0.0, %v3749
      %v4038 = vsub.f32 0.0, %v3751
      %v4039 = vsub.f32 0.0, %v3753
      %v4040 = vsub.f32 0.0, %v3755
      %v4041 = vsub.f32 0.0, %v3757
      %v4042 = vsub.f32 0.0, %v3759
      %v4043 = vsub.f32 0.0, %v3761
      %v4044 = vsub.f32 0.0, %v3763
      %v4045 = vsub.f32 0.0, %v3765
      %v4046 = vsub.f32 0.0, %v3767
      %v4047 = vsub.f32 0.0, %v3769
      %v4048 = vsub.f32 0.0, %v3771
      %v4049 = vsub.f32 0.0, %v3773
      %v4050 = vsub.f32 0.0, %v3775
      %v4051 = vsub.f32 0.0, %v3777
      %v4052 = vsub.f32 0.0, %v3779
      %v4053 = vsub.f32 0.0, %v3781
      %v4054 = vsub.f32 0.0, %v3783
      %v4055 = vsub.f32 0.0, %v3785
      %v4056 = vsub.f32 0.0, %v3787
      %v4057 = vsub.f32 0.0, %v3789
      %v4058 = vsub.f32 0.0, %v3791
      %v4059 = vsub.f32 0.0, %v3793
      %v4060 = vsub.f32 0.0, %v3795
      %v4061 = vsub.f32 0.0, %v3797
      %v4062 = vsub.f32 0.0, %v3799
      %v4063 = vsub.f32 0.0, %v3801
      %v4064 = vsub.f32 0.0, %v3803
      %v4065 = vsub.f32 0.0, %v3805
      %v4066 = vsub.f32 0.0, %v3807
      %v4067 = vsub.f32 0.0, %v3809
      %v4068 = vsub.f32 0.0, %v3811
      %v4069 = vsub.f32 0.0, %v3813
      %v4070 = vsub.f32 0.0, %v3815
      %v4071 = vsub.f32 0.0, %v3817
      %v4072 = vsub.f32 0.0, %v3819
      %v4073 = vsub.f32 0.0, %v3821
      %v4074 = vsub.f32 0.0, %v3823
      %v4075 = vsub.f32 0.0, %v3825
      %v4076 = vsub.f32 0.0, %v3827
      %v4077 = vsub.f32 0.0, %v3829
      %v4078 = vsub.f32 0.0, %v3831
      %v4079 = vsub.f32 0.0, %v3833
      %v4080 = vsub.f32 0.0, %v3835
      %v4081 = vsub.f32 0.0, %v3837
      %v4082 = vsub.f32 0.0, %v3839
      %v4083 = vsub.f32 0.0, %v3841
      %v4084 = vsub.f32 0.0, %v3843
      %v4085 = vsub.f32 0.0, %v3845
      %v4086 = vsub.f32 0.0, %v3847
      %v4087 = vsub.f32 0.0, %v3849
      %v4088 = vsub.f32 0.0, %v3851
      %v4089 = vsub.f32 0.0, %v3853
      %v4090 = vsub.f32 0.0, %v3855
      %v4091 = vsub.f32 0.0, %v3857
      %v4092 = vsub.f32 0.0, %v3859
      %v4093 = vsub.f32 0.0, %v3861
      %v4094 = vsub.f32 0.0, %v3863
      %v4095 = vsub.f32 0.0, %v3865
      %v4096 = vsub.f32 0.0, %v3867
      %v4097 = vsub.f32 0.0, %v3869
      %v4098 = vsub.f32 0.0, %v3871
      %v4099 = vsub.f32 0.0, %v3873
      %v4100 = vsub.f32 0.0, %v3875
      %v4101 = vsub.f32 0.0, %v3877
      %v4102 = vsub.f32 0.0, %v3879
      %v4103 = vsub.f32 0.0, %v3881
      %v4104 = vsub.f32 0.0, %v3883
      %v4105 = vsub.f32 0.0, %v3885
      %v4106 = vsub.f32 0.0, %v3887
      %v4107 = vsub.f32 0.0, %v3889
      %v4108 = vsub.f32 0.0, %v3891
      %v4109 = vsub.f32 0.0, %v3893
      %v4110 = vsub.f32 0.0, %v3895
      %v4111 = vsub.f32 0.0, %v3897
      %v4112 = vsub.f32 0.0, %v3899
      %v4113 = vsub.f32 0.0, %v3901
      %v4114 = vsub.f32 0.0, %v3903
      %v4115 = vsub.f32 0.0, %v3905
      %v4116 = vsub.f32 0.0, %v3907
      %v4117 = vsub.f32 0.0, %v3909
      %v4118 = vsub.f32 0.0, %v3911
      %v4119 = vsub.f32 0.0, %v3913
      %v4120 = vsub.f32 0.0, %v3915
      %v4121 = vsub.f32 0.0, %v3917
      %v4122 = vsub.f32 0.0, %v3919
      %v4123 = vsub.f32 0.0, %v3921
      %v4124 = vsub.f32 0.0, %v3923
      %v4125 = vsub.f32 0.0, %v3925
      %v4126 = vsub.f32 0.0, %v3927
      %v4127 = vsub.f32 0.0, %v3929
      %v4128 = vsub.f32 0.0, %v3931
      %v4129 = vsub.f32 0.0, %v3933
      %v4130 = vsub.f32 0.0, %v3935
      %v4131 = vsub.f32 0.0, %v3937
      %v4132 = vsub.f32 0.0, %v3939
      %v4133 = vsub.f32 0.0, %v3941
      %v4134 = vmul.f32 %v3942, 1.442695
      %v4135 = vpow.pop %v4134
      %v4136 = vmul.f32 %v3943, 1.442695
      %v4137 = vpow.pop %v4136
      %v4138 = vmul.f32 %v3944, 1.442695
      %v4139 = vpow.pop %v4138
      %v4140 = vmul.f32 %v3945, 1.442695
      %v4141 = vpow.pop %v4140
      %v4142 = vmul.f32 %v3946, 1.442695
      %v4143 = vpow.pop %v4142
      %v4144 = vmul.f32 %v3947, 1.442695
      %v4145 = vpow.pop %v4144
      %v4146 = vmul.f32 %v3948, 1.442695
      %v4147 = vpow.pop %v4146
      %v4148 = vmul.f32 %v3949, 1.442695
      %v4149 = vpow.pop %v4148
      %v4150 = vmul.f32 %v3950, 1.442695
      %v4151 = vpow.pop %v4150
      %v4152 = vmul.f32 %v3951, 1.442695
      %v4153 = vpow.pop %v4152
      %v4154 = vmul.f32 %v3952, 1.442695
      %v4155 = vpow.pop %v4154
      %v4156 = vmul.f32 %v3953, 1.442695
      %v4157 = vpow.pop %v4156
      %v4158 = vmul.f32 %v3954, 1.442695
      %v4159 = vpow.pop %v4158
      %v4160 = vmul.f32 %v3955, 1.442695
      %v4161 = vpow.pop %v4160
      %v4162 = vmul.f32 %v3956, 1.442695
      %v4163 = vpow.pop %v4162
      %v4164 = vmul.f32 %v3957, 1.442695
      %v4165 = vpow.pop %v4164
      %v4166 = vmul.f32 %v3958, 1.442695
      %v4167 = vpow.pop %v4166
      %v4168 = vmul.f32 %v3959, 1.442695
      %v4169 = vpow.pop %v4168
      %v4170 = vmul.f32 %v3960, 1.442695
      %v4171 = vpow.pop %v4170
      %v4172 = vmul.f32 %v3961, 1.442695
      %v4173 = vpow.pop %v4172
      %v4174 = vmul.f32 %v3962, 1.442695
      %v4175 = vpow.pop %v4174
      %v4176 = vmul.f32 %v3963, 1.442695
      %v4177 = vpow.pop %v4176
      %v4178 = vmul.f32 %v3964, 1.442695
      %v4179 = vpow.pop %v4178
      %v4180 = vmul.f32 %v3965, 1.442695
      %v4181 = vpow.pop %v4180
      %v4182 = vmul.f32 %v3966, 1.442695
      %v4183 = vpow.pop %v4182
      %v4184 = vmul.f32 %v3967, 1.442695
      %v4185 = vpow.pop %v4184
      %v4186 = vmul.f32 %v3968, 1.442695
      %v4187 = vpow.pop %v4186
      %v4188 = vmul.f32 %v3969, 1.442695
      %v4189 = vpow.pop %v4188
      %v4190 = vmul.f32 %v3970, 1.442695
      %v4191 = vpow.pop %v4190
      %v4192 = vmul.f32 %v3971, 1.442695
      %v4193 = vpow.pop %v4192
      %v4194 = vmul.f32 %v3972, 1.442695
      %v4195 = vpow.pop %v4194
      %v4196 = vmul.f32 %v3973, 1.442695
      %v4197 = vpow.pop %v4196
      %v4198 = vmul.f32 %v3974, 1.442695
      %v4199 = vpow.pop %v4198
      %v4200 = vmul.f32 %v3975, 1.442695
      %v4201 = vpow.pop %v4200
      %v4202 = vmul.f32 %v3976, 1.442695
      %v4203 = vpow.pop %v4202
      %v4204 = vmul.f32 %v3977, 1.442695
      %v4205 = vpow.pop %v4204
      %v4206 = vmul.f32 %v3978, 1.442695
      %v4207 = vpow.pop %v4206
      %v4208 = vmul.f32 %v3979, 1.442695
      %v4209 = vpow.pop %v4208
      %v4210 = vmul.f32 %v3980, 1.442695
      %v4211 = vpow.pop %v4210
      %v4212 = vmul.f32 %v3981, 1.442695
      %v4213 = vpow.pop %v4212
      %v4214 = vmul.f32 %v3982, 1.442695
      %v4215 = vpow.pop %v4214
      %v4216 = vmul.f32 %v3983, 1.442695
      %v4217 = vpow.pop %v4216
      %v4218 = vmul.f32 %v3984, 1.442695
      %v4219 = vpow.pop %v4218
      %v4220 = vmul.f32 %v3985, 1.442695
      %v4221 = vpow.pop %v4220
      %v4222 = vmul.f32 %v3986, 1.442695
      %v4223 = vpow.pop %v4222
      %v4224 = vmul.f32 %v3987, 1.442695
      %v4225 = vpow.pop %v4224
      %v4226 = vmul.f32 %v3988, 1.442695
      %v4227 = vpow.pop %v4226
      %v4228 = vmul.f32 %v3989, 1.442695
      %v4229 = vpow.pop %v4228
      %v4230 = vmul.f32 %v3990, 1.442695
      %v4231 = vpow.pop %v4230
      %v4232 = vmul.f32 %v3991, 1.442695
      %v4233 = vpow.pop %v4232
      %v4234 = vmul.f32 %v3992, 1.442695
      %v4235 = vpow.pop %v4234
      %v4236 = vmul.f32 %v3993, 1.442695
      %v4237 = vpow.pop %v4236
      %v4238 = vmul.f32 %v3994, 1.442695
      %v4239 = vpow.pop %v4238
      %v4240 = vmul.f32 %v3995, 1.442695
      %v4241 = vpow.pop %v4240
      %v4242 = vmul.f32 %v3996, 1.442695
      %v4243 = vpow.pop %v4242
      %v4244 = vmul.f32 %v3997, 1.442695
      %v4245 = vpow.pop %v4244
      %v4246 = vmul.f32 %v3998, 1.442695
      %v4247 = vpow.pop %v4246
      %v4248 = vmul.f32 %v3999, 1.442695
      %v4249 = vpow.pop %v4248
      %v4250 = vmul.f32 %v4000, 1.442695
      %v4251 = vpow.pop %v4250
      %v4252 = vmul.f32 %v4001, 1.442695
      %v4253 = vpow.pop %v4252
      %v4254 = vmul.f32 %v4002, 1.442695
      %v4255 = vpow.pop %v4254
      %v4256 = vmul.f32 %v4003, 1.442695
      %v4257 = vpow.pop %v4256
      %v4258 = vmul.f32 %v4004, 1.442695
      %v4259 = vpow.pop %v4258
      %v4260 = vmul.f32 %v4005, 1.442695
      %v4261 = vpow.pop %v4260
      %v4262 = vmul.f32 %v4006, 1.442695
      %v4263 = vpow.pop %v4262
      %v4264 = vmul.f32 %v4007, 1.442695
      %v4265 = vpow.pop %v4264
      %v4266 = vmul.f32 %v4008, 1.442695
      %v4267 = vpow.pop %v4266
      %v4268 = vmul.f32 %v4009, 1.442695
      %v4269 = vpow.pop %v4268
      %v4270 = vmul.f32 %v4010, 1.442695
      %v4271 = vpow.pop %v4270
      %v4272 = vmul.f32 %v4011, 1.442695
      %v4273 = vpow.pop %v4272
      %v4274 = vmul.f32 %v4012, 1.442695
      %v4275 = vpow.pop %v4274
      %v4276 = vmul.f32 %v4013, 1.442695
      %v4277 = vpow.pop %v4276
      %v4278 = vmul.f32 %v4014, 1.442695
      %v4279 = vpow.pop %v4278
      %v4280 = vmul.f32 %v4015, 1.442695
      %v4281 = vpow.pop %v4280
      %v4282 = vmul.f32 %v4016, 1.442695
      %v4283 = vpow.pop %v4282
      %v4284 = vmul.f32 %v4017, 1.442695
      %v4285 = vpow.pop %v4284
      %v4286 = vmul.f32 %v4018, 1.442695
      %v4287 = vpow.pop %v4286
      %v4288 = vmul.f32 %v4019, 1.442695
      %v4289 = vpow.pop %v4288
      %v4290 = vmul.f32 %v4020, 1.442695
      %v4291 = vpow.pop %v4290
      %v4292 = vmul.f32 %v4021, 1.442695
      %v4293 = vpow.pop %v4292
      %v4294 = vmul.f32 %v4022, 1.442695
      %v4295 = vpow.pop %v4294
      %v4296 = vmul.f32 %v4023, 1.442695
      %v4297 = vpow.pop %v4296
      %v4298 = vmul.f32 %v4024, 1.442695
      %v4299 = vpow.pop %v4298
      %v4300 = vmul.f32 %v4025, 1.442695
      %v4301 = vpow.pop %v4300
      %v4302 = vmul.f32 %v4026, 1.442695
      %v4303 = vpow.pop %v4302
      %v4304 = vmul.f32 %v4027, 1.442695
      %v4305 = vpow.pop %v4304
      %v4306 = vmul.f32 %v4028, 1.442695
      %v4307 = vpow.pop %v4306
      %v4308 = vmul.f32 %v4029, 1.442695
      %v4309 = vpow.pop %v4308
      %v4310 = vmul.f32 %v4030, 1.442695
      %v4311 = vpow.pop %v4310
      %v4312 = vmul.f32 %v4031, 1.442695
      %v4313 = vpow.pop %v4312
      %v4314 = vmul.f32 %v4032, 1.442695
      %v4315 = vpow.pop %v4314
      %v4316 = vmul.f32 %v4033, 1.442695
      %v4317 = vpow.pop %v4316
      %v4318 = vmul.f32 %v4034, 1.442695
      %v4319 = vpow.pop %v4318
      %v4320 = vmul.f32 %v4035, 1.442695
      %v4321 = vpow.pop %v4320
      %v4322 = vmul.f32 %v4036, 1.442695
      %v4323 = vpow.pop %v4322
      %v4324 = vmul.f32 %v4037, 1.442695
      %v4325 = vpow.pop %v4324
      %v4326 = vmul.f32 %v4038, 1.442695
      %v4327 = vpow.pop %v4326
      %v4328 = vmul.f32 %v4039, 1.442695
      %v4329 = vpow.pop %v4328
      %v4330 = vmul.f32 %v4040, 1.442695
      %v4331 = vpow.pop %v4330
      %v4332 = vmul.f32 %v4041, 1.442695
      %v4333 = vpow.pop %v4332
      %v4334 = vmul.f32 %v4042, 1.442695
      %v4335 = vpow.pop %v4334
      %v4336 = vmul.f32 %v4043, 1.442695
      %v4337 = vpow.pop %v4336
      %v4338 = vmul.f32 %v4044, 1.442695
      %v4339 = vpow.pop %v4338
      %v4340 = vmul.f32 %v4045, 1.442695
      %v4341 = vpow.pop %v4340
      %v4342 = vmul.f32 %v4046, 1.442695
      %v4343 = vpow.pop %v4342
      %v4344 = vmul.f32 %v4047, 1.442695
      %v4345 = vpow.pop %v4344
      %v4346 = vmul.f32 %v4048, 1.442695
      %v4347 = vpow.pop %v4346
      %v4348 = vmul.f32 %v4049, 1.442695
      %v4349 = vpow.pop %v4348
      %v4350 = vmul.f32 %v4050, 1.442695
      %v4351 = vpow.pop %v4350
      %v4352 = vmul.f32 %v4051, 1.442695
      %v4353 = vpow.pop %v4352
      %v4354 = vmul.f32 %v4052, 1.442695
      %v4355 = vpow.pop %v4354
      %v4356 = vmul.f32 %v4053, 1.442695
      %v4357 = vpow.pop %v4356
      %v4358 = vmul.f32 %v4054, 1.442695
      %v4359 = vpow.pop %v4358
      %v4360 = vmul.f32 %v4055, 1.442695
      %v4361 = vpow.pop %v4360
      %v4362 = vmul.f32 %v4056, 1.442695
      %v4363 = vpow.pop %v4362
      %v4364 = vmul.f32 %v4057, 1.442695
      %v4365 = vpow.pop %v4364
      %v4366 = vmul.f32 %v4058, 1.442695
      %v4367 = vpow.pop %v4366
      %v4368 = vmul.f32 %v4059, 1.442695
      %v4369 = vpow.pop %v4368
      %v4370 = vmul.f32 %v4060, 1.442695
      %v4371 = vpow.pop %v4370
      %v4372 = vmul.f32 %v4061, 1.442695
      %v4373 = vpow.pop %v4372
      %v4374 = vmul.f32 %v4062, 1.442695
      %v4375 = vpow.pop %v4374
      %v4376 = vmul.f32 %v4063, 1.442695
      %v4377 = vpow.pop %v4376
      %v4378 = vmul.f32 %v4064, 1.442695
      %v4379 = vpow.pop %v4378
      %v4380 = vmul.f32 %v4065, 1.442695
      %v4381 = vpow.pop %v4380
      %v4382 = vmul.f32 %v4066, 1.442695
      %v4383 = vpow.pop %v4382
      %v4384 = vmul.f32 %v4067, 1.442695
      %v4385 = vpow.pop %v4384
      %v4386 = vmul.f32 %v4068, 1.442695
      %v4387 = vpow.pop %v4386
      %v4388 = vmul.f32 %v4069, 1.442695
      %v4389 = vpow.pop %v4388
      %v4390 = vmul.f32 %v4070, 1.442695
      %v4391 = vpow.pop %v4390
      %v4392 = vmul.f32 %v4071, 1.442695
      %v4393 = vpow.pop %v4392
      %v4394 = vmul.f32 %v4072, 1.442695
      %v4395 = vpow.pop %v4394
      %v4396 = vmul.f32 %v4073, 1.442695
      %v4397 = vpow.pop %v4396
      %v4398 = vmul.f32 %v4074, 1.442695
      %v4399 = vpow.pop %v4398
      %v4400 = vmul.f32 %v4075, 1.442695
      %v4401 = vpow.pop %v4400
      %v4402 = vmul.f32 %v4076, 1.442695
      %v4403 = vpow.pop %v4402
      %v4404 = vmul.f32 %v4077, 1.442695
      %v4405 = vpow.pop %v4404
      %v4406 = vmul.f32 %v4078, 1.442695
      %v4407 = vpow.pop %v4406
      %v4408 = vmul.f32 %v4079, 1.442695
      %v4409 = vpow.pop %v4408
      %v4410 = vmul.f32 %v4080, 1.442695
      %v4411 = vpow.pop %v4410
      %v4412 = vmul.f32 %v4081, 1.442695
      %v4413 = vpow.pop %v4412
      %v4414 = vmul.f32 %v4082, 1.442695
      %v4415 = vpow.pop %v4414
      %v4416 = vmul.f32 %v4083, 1.442695
      %v4417 = vpow.pop %v4416
      %v4418 = vmul.f32 %v4084, 1.442695
      %v4419 = vpow.pop %v4418
      %v4420 = vmul.f32 %v4085, 1.442695
      %v4421 = vpow.pop %v4420
      %v4422 = vmul.f32 %v4086, 1.442695
      %v4423 = vpow.pop %v4422
      %v4424 = vmul.f32 %v4087, 1.442695
      %v4425 = vpow.pop %v4424
      %v4426 = vmul.f32 %v4088, 1.442695
      %v4427 = vpow.pop %v4426
      %v4428 = vmul.f32 %v4089, 1.442695
      %v4429 = vpow.pop %v4428
      %v4430 = vmul.f32 %v4090, 1.442695
      %v4431 = vpow.pop %v4430
      %v4432 = vmul.f32 %v4091, 1.442695
      %v4433 = vpow.pop %v4432
      %v4434 = vmul.f32 %v4092, 1.442695
      %v4435 = vpow.pop %v4434
      %v4436 = vmul.f32 %v4093, 1.442695
      %v4437 = vpow.pop %v4436
      %v4438 = vmul.f32 %v4094, 1.442695
      %v4439 = vpow.pop %v4438
      %v4440 = vmul.f32 %v4095, 1.442695
      %v4441 = vpow.pop %v4440
      %v4442 = vmul.f32 %v4096, 1.442695
      %v4443 = vpow.pop %v4442
      %v4444 = vmul.f32 %v4097, 1.442695
      %v4445 = vpow.pop %v4444
      %v4446 = vmul.f32 %v4098, 1.442695
      %v4447 = vpow.pop %v4446
      %v4448 = vmul.f32 %v4099, 1.442695
      %v4449 = vpow.pop %v4448
      %v4450 = vmul.f32 %v4100, 1.442695
      %v4451 = vpow.pop %v4450
      %v4452 = vmul.f32 %v4101, 1.442695
      %v4453 = vpow.pop %v4452
      %v4454 = vmul.f32 %v4102, 1.442695
      %v4455 = vpow.pop %v4454
      %v4456 = vmul.f32 %v4103, 1.442695
      %v4457 = vpow.pop %v4456
      %v4458 = vmul.f32 %v4104, 1.442695
      %v4459 = vpow.pop %v4458
      %v4460 = vmul.f32 %v4105, 1.442695
      %v4461 = vpow.pop %v4460
      %v4462 = vmul.f32 %v4106, 1.442695
      %v4463 = vpow.pop %v4462
      %v4464 = vmul.f32 %v4107, 1.442695
      %v4465 = vpow.pop %v4464
      %v4466 = vmul.f32 %v4108, 1.442695
      %v4467 = vpow.pop %v4466
      %v4468 = vmul.f32 %v4109, 1.442695
      %v4469 = vpow.pop %v4468
      %v4470 = vmul.f32 %v4110, 1.442695
      %v4471 = vpow.pop %v4470
      %v4472 = vmul.f32 %v4111, 1.442695
      %v4473 = vpow.pop %v4472
      %v4474 = vmul.f32 %v4112, 1.442695
      %v4475 = vpow.pop %v4474
      %v4476 = vmul.f32 %v4113, 1.442695
      %v4477 = vpow.pop %v4476
      %v4478 = vmul.f32 %v4114, 1.442695
      %v4479 = vpow.pop %v4478
      %v4480 = vmul.f32 %v4115, 1.442695
      %v4481 = vpow.pop %v4480
      %v4482 = vmul.f32 %v4116, 1.442695
      %v4483 = vpow.pop %v4482
      %v4484 = vmul.f32 %v4117, 1.442695
      %v4485 = vpow.pop %v4484
      %v4486 = vmul.f32 %v4118, 1.442695
      %v4487 = vpow.pop %v4486
      %v4488 = vmul.f32 %v4119, 1.442695
      %v4489 = vpow.pop %v4488
      %v4490 = vmul.f32 %v4120, 1.442695
      %v4491 = vpow.pop %v4490
      %v4492 = vmul.f32 %v4121, 1.442695
      %v4493 = vpow.pop %v4492
      %v4494 = vmul.f32 %v4122, 1.442695
      %v4495 = vpow.pop %v4494
      %v4496 = vmul.f32 %v4123, 1.442695
      %v4497 = vpow.pop %v4496
      %v4498 = vmul.f32 %v4124, 1.442695
      %v4499 = vpow.pop %v4498
      %v4500 = vmul.f32 %v4125, 1.442695
      %v4501 = vpow.pop %v4500
      %v4502 = vmul.f32 %v4126, 1.442695
      %v4503 = vpow.pop %v4502
      %v4504 = vmul.f32 %v4127, 1.442695
      %v4505 = vpow.pop %v4504
      %v4506 = vmul.f32 %v4128, 1.442695
      %v4507 = vpow.pop %v4506
      %v4508 = vmul.f32 %v4129, 1.442695
      %v4509 = vpow.pop %v4508
      %v4510 = vmul.f32 %v4130, 1.442695
      %v4511 = vpow.pop %v4510
      %v4512 = vmul.f32 %v4131, 1.442695
      %v4513 = vpow.pop %v4512
      %v4514 = vmul.f32 %v4132, 1.442695
      %v4515 = vpow.pop %v4514
      %v4516 = vmul.f32 %v4133, 1.442695
      %v4517 = vpow.pop %v4516
      %v4518 = vlaneseq
      %v4519 = vshrl.u32 %v4518, 7
      %v4520 = vsub.s32 3, %v4519
      %v4521 = vrot.slane %v1814, %v4520
      %v4522 = vlaneseq
      %v4523 = vshrl.u32 %v4522, 7
      %v4524 = vsub.s32 7, %v4523
      %v4525 = vrot.slane %v1814, %v4524
      %v4526 = vlaneseq
      %v4527 = vshrl.u32 %v4526, 7
      %v4528 = vsub.s32 3, %v4527
      %v4529 = vrot.slane %v1815, %v4528
      %v4530 = vlaneseq
      %v4531 = vshrl.u32 %v4530, 7
      %v4532 = vsub.s32 7, %v4531
      %v4533 = vrot.slane %v1815, %v4532
      %v4534 = vlaneseq
      %v4535 = vshrl.u32 %v4534, 7
      %v4536 = vsub.s32 3, %v4535
      %v4537 = vrot.slane %v1816, %v4536
      %v4538 = vlaneseq
      %v4539 = vshrl.u32 %v4538, 7
      %v4540 = vsub.s32 7, %v4539
      %v4541 = vrot.slane %v1816, %v4540
      %v4542 = vlaneseq
      %v4543 = vshrl.u32 %v4542, 7
      %v4544 = vsub.s32 3, %v4543
      %v4545 = vrot.slane %v1817, %v4544
      %v4546 = vlaneseq
      %v4547 = vshrl.u32 %v4546, 7
      %v4548 = vsub.s32 7, %v4547
      %v4549 = vrot.slane %v1817, %v4548
      %v4550 = vlaneseq
      %v4551 = vshrl.u32 %v4550, 7
      %v4552 = vsub.s32 3, %v4551
      %v4553 = vrot.slane %v1818, %v4552
      %v4554 = vlaneseq
      %v4555 = vshrl.u32 %v4554, 7
      %v4556 = vsub.s32 7, %v4555
      %v4557 = vrot.slane %v1818, %v4556
      %v4558 = vlaneseq
      %v4559 = vshrl.u32 %v4558, 7
      %v4560 = vsub.s32 3, %v4559
      %v4561 = vrot.slane %v1819, %v4560
      %v4562 = vlaneseq
      %v4563 = vshrl.u32 %v4562, 7
      %v4564 = vsub.s32 7, %v4563
      %v4565 = vrot.slane %v1819, %v4564
      %v4578 = vlaneseq
      %v4579 = vshrl.u32 %v4578, 7
      %v4580 = vsub.s32 3, %v4579
      %v4581 = vrot.slane %v4521, %v4580
      %v4582 = vlaneseq
      %v4583 = vshrl.u32 %v4582, 7
      %v4584 = vsub.s32 3, %v4583
      %v4585 = vrot.slane %v4525, %v4584
      %v4586 = vlaneseq
      %v4587 = vshrl.u32 %v4586, 7
      %v4588 = vsub.s32 3, %v4587
      %v4589 = vrot.slane %v4529, %v4588
      %v4590 = vlaneseq
      %v4591 = vshrl.u32 %v4590, 7
      %v4592 = vsub.s32 3, %v4591
      %v4593 = vrot.slane %v4533, %v4592
      %v4594 = vlaneseq
      %v4595 = vshrl.u32 %v4594, 7
      %v4596 = vsub.s32 3, %v4595
      %v4597 = vrot.slane %v4537, %v4596
      %v4598 = vlaneseq
      %v4599 = vshrl.u32 %v4598, 7
      %v4600 = vsub.s32 3, %v4599
      %v4601 = vrot.slane %v4541, %v4600
      %v4602 = vlaneseq
      %v4603 = vshrl.u32 %v4602, 7
      %v4604 = vsub.s32 3, %v4603
      %v4605 = vrot.slane %v4545, %v4604
      %v4606 = vlaneseq
      %v4607 = vshrl.u32 %v4606, 7
      %v4608 = vsub.s32 3, %v4607
      %v4609 = vrot.slane %v4549, %v4608
      %v4610 = vlaneseq
      %v4611 = vshrl.u32 %v4610, 7
      %v4612 = vsub.s32 3, %v4611
      %v4613 = vrot.slane %v4553, %v4612
      %v4614 = vlaneseq
      %v4615 = vshrl.u32 %v4614, 7
      %v4616 = vsub.s32 3, %v4615
      %v4617 = vrot.slane %v4557, %v4616
      %v4618 = vlaneseq
      %v4619 = vshrl.u32 %v4618, 7
      %v4620 = vsub.s32 3, %v4619
      %v4621 = vrot.slane %v4561, %v4620
      %v4622 = vlaneseq
      %v4623 = vshrl.u32 %v4622, 7
      %v4624 = vsub.s32 3, %v4623
      %v4625 = vrot.slane %v4565, %v4624
      %v4626 = vmul.f32 %v4581, %v4135
      %v4627 = vmul.f32 %v4585, %v4137
      %v4628 = vmul.f32 %v4589, %v4139
      %v4629 = vmul.f32 %v4593, %v4141
      %v4630 = vmul.f32 %v4597, %v4143
      %v4631 = vmul.f32 %v4601, %v4145
      %v4632 = vmul.f32 %v4605, %v4147
      %v4633 = vmul.f32 %v4609, %v4149
      %v4634 = vmul.f32 %v4613, %v4151
      %v4635 = vmul.f32 %v4617, %v4153
      %v4636 = vmul.f32 %v4621, %v4155
      %v4637 = vmul.f32 %v4625, %v4157
      %v4638 = vmul.f32 %v4581, %v4159
      %v4639 = vmul.f32 %v4585, %v4161
      %v4640 = vmul.f32 %v4589, %v4163
      %v4641 = vmul.f32 %v4593, %v4165
      %v4642 = vmul.f32 %v4597, %v4167
      %v4643 = vmul.f32 %v4601, %v4169
      %v4644 = vmul.f32 %v4605, %v4171
      %v4645 = vmul.f32 %v4609, %v4173
      %v4646 = vmul.f32 %v4613, %v4175
      %v4647 = vmul.f32 %v4617, %v4177
      %v4648 = vmul.f32 %v4621, %v4179
      %v4649 = vmul.f32 %v4625, %v4181
      %v4650 = vmul.f32 %v4581, %v4183
      %v4651 = vmul.f32 %v4585, %v4185
      %v4652 = vmul.f32 %v4589, %v4187
      %v4653 = vmul.f32 %v4593, %v4189
      %v4654 = vmul.f32 %v4597, %v4191
      %v4655 = vmul.f32 %v4601, %v4193
      %v4656 = vmul.f32 %v4605, %v4195
      %v4657 = vmul.f32 %v4609, %v4197
      %v4658 = vmul.f32 %v4613, %v4199
      %v4659 = vmul.f32 %v4617, %v4201
      %v4660 = vmul.f32 %v4621, %v4203
      %v4661 = vmul.f32 %v4625, %v4205
      %v4662 = vmul.f32 %v4581, %v4207
      %v4663 = vmul.f32 %v4585, %v4209
      %v4664 = vmul.f32 %v4589, %v4211
      %v4665 = vmul.f32 %v4593, %v4213
      %v4666 = vmul.f32 %v4597, %v4215
      %v4667 = vmul.f32 %v4601, %v4217
      %v4668 = vmul.f32 %v4605, %v4219
      %v4669 = vmul.f32 %v4609, %v4221
      %v4670 = vmul.f32 %v4613, %v4223
      %v4671 = vmul.f32 %v4617, %v4225
      %v4672 = vmul.f32 %v4621, %v4227
      %v4673 = vmul.f32 %v4625, %v4229
      %v4674 = vmul.f32 %v4581, %v4231
      %v4675 = vmul.f32 %v4585, %v4233
      %v4676 = vmul.f32 %v4589, %v4235
      %v4677 = vmul.f32 %v4593, %v4237
      %v4678 = vmul.f32 %v4597, %v4239
      %v4679 = vmul.f32 %v4601, %v4241
      %v4680 = vmul.f32 %v4605, %v4243
      %v4681 = vmul.f32 %v4609, %v4245
      %v4682 = vmul.f32 %v4613, %v4247
      %v4683 = vmul.f32 %v4617, %v4249
      %v4684 = vmul.f32 %v4621, %v4251
      %v4685 = vmul.f32 %v4625, %v4253
      %v4686 = vmul.f32 %v4581, %v4255
      %v4687 = vmul.f32 %v4585, %v4257
      %v4688 = vmul.f32 %v4589, %v4259
      %v4689 = vmul.f32 %v4593, %v4261
      %v4690 = vmul.f32 %v4597, %v4263
      %v4691 = vmul.f32 %v4601, %v4265
      %v4692 = vmul.f32 %v4605, %v4267
      %v4693 = vmul.f32 %v4609, %v4269
      %v4694 = vmul.f32 %v4613, %v4271
      %v4695 = vmul.f32 %v4617, %v4273
      %v4696 = vmul.f32 %v4621, %v4275
      %v4697 = vmul.f32 %v4625, %v4277
      %v4698 = vmul.f32 %v4581, %v4279
      %v4699 = vmul.f32 %v4585, %v4281
      %v4700 = vmul.f32 %v4589, %v4283
      %v4701 = vmul.f32 %v4593, %v4285
      %v4702 = vmul.f32 %v4597, %v4287
      %v4703 = vmul.f32 %v4601, %v4289
      %v4704 = vmul.f32 %v4605, %v4291
      %v4705 = vmul.f32 %v4609, %v4293
      %v4706 = vmul.f32 %v4613, %v4295
      %v4707 = vmul.f32 %v4617, %v4297
      %v4708 = vmul.f32 %v4621, %v4299
      %v4709 = vmul.f32 %v4625, %v4301
      %v4710 = vmul.f32 %v4581, %v4303
      %v4711 = vmul.f32 %v4585, %v4305
      %v4712 = vmul.f32 %v4589, %v4307
      %v4713 = vmul.f32 %v4593, %v4309
      %v4714 = vmul.f32 %v4597, %v4311
      %v4715 = vmul.f32 %v4601, %v4313
      %v4716 = vmul.f32 %v4605, %v4315
      %v4717 = vmul.f32 %v4609, %v4317
      %v4718 = vmul.f32 %v4613, %v4319
      %v4719 = vmul.f32 %v4617, %v4321
      %v4720 = vmul.f32 %v4621, %v4323
      %v4721 = vmul.f32 %v4625, %v4325
      %v4722 = vmul.f32 %v4581, %v4327
      %v4723 = vmul.f32 %v4585, %v4329
      %v4724 = vmul.f32 %v4589, %v4331
      %v4725 = vmul.f32 %v4593, %v4333
      %v4726 = vmul.f32 %v4597, %v4335
      %v4727 = vmul.f32 %v4601, %v4337
      %v4728 = vmul.f32 %v4605, %v4339
      %v4729 = vmul.f32 %v4609, %v4341
      %v4730 = vmul.f32 %v4613, %v4343
      %v4731 = vmul.f32 %v4617, %v4345
      %v4732 = vmul.f32 %v4621, %v4347
      %v4733 = vmul.f32 %v4625, %v4349
      %v4734 = vmul.f32 %v4581, %v4351
      %v4735 = vmul.f32 %v4585, %v4353
      %v4736 = vmul.f32 %v4589, %v4355
      %v4737 = vmul.f32 %v4593, %v4357
      %v4738 = vmul.f32 %v4597, %v4359
      %v4739 = vmul.f32 %v4601, %v4361
      %v4740 = vmul.f32 %v4605, %v4363
      %v4741 = vmul.f32 %v4609, %v4365
      %v4742 = vmul.f32 %v4613, %v4367
      %v4743 = vmul.f32 %v4617, %v4369
      %v4744 = vmul.f32 %v4621, %v4371
      %v4745 = vmul.f32 %v4625, %v4373
      %v4746 = vmul.f32 %v4581, %v4375
      %v4747 = vmul.f32 %v4585, %v4377
      %v4748 = vmul.f32 %v4589, %v4379
      %v4749 = vmul.f32 %v4593, %v4381
      %v4750 = vmul.f32 %v4597, %v4383
      %v4751 = vmul.f32 %v4601, %v4385
      %v4752 = vmul.f32 %v4605, %v4387
      %v4753 = vmul.f32 %v4609, %v4389
      %v4754 = vmul.f32 %v4613, %v4391
      %v4755 = vmul.f32 %v4617, %v4393
      %v4756 = vmul.f32 %v4621, %v4395
      %v4757 = vmul.f32 %v4625, %v4397
      %v4758 = vmul.f32 %v4581, %v4399
      %v4759 = vmul.f32 %v4585, %v4401
      %v4760 = vmul.f32 %v4589, %v4403
      %v4761 = vmul.f32 %v4593, %v4405
      %v4762 = vmul.f32 %v4597, %v4407
      %v4763 = vmul.f32 %v4601, %v4409
      %v4764 = vmul.f32 %v4605, %v4411
      %v4765 = vmul.f32 %v4609, %v4413
      %v4766 = vmul.f32 %v4613, %v4415
      %v4767 = vmul.f32 %v4617, %v4417
      %v4768 = vmul.f32 %v4621, %v4419
      %v4769 = vmul.f32 %v4625, %v4421
      %v4770 = vmul.f32 %v4581, %v4423
      %v4771 = vmul.f32 %v4585, %v4425
      %v4772 = vmul.f32 %v4589, %v4427
      %v4773 = vmul.f32 %v4593, %v4429
      %v4774 = vmul.f32 %v4597, %v4431
      %v4775 = vmul.f32 %v4601, %v4433
      %v4776 = vmul.f32 %v4605, %v4435
      %v4777 = vmul.f32 %v4609, %v4437
      %v4778 = vmul.f32 %v4613, %v4439
      %v4779 = vmul.f32 %v4617, %v4441
      %v4780 = vmul.f32 %v4621, %v4443
      %v4781 = vmul.f32 %v4625, %v4445
      %v4782 = vmul.f32 %v4581, %v4447
      %v4783 = vmul.f32 %v4585, %v4449
      %v4784 = vmul.f32 %v4589, %v4451
      %v4785 = vmul.f32 %v4593, %v4453
      %v4786 = vmul.f32 %v4597, %v4455
      %v4787 = vmul.f32 %v4601, %v4457
      %v4788 = vmul.f32 %v4605, %v4459
      %v4789 = vmul.f32 %v4609, %v4461
      %v4790 = vmul.f32 %v4613, %v4463
      %v4791 = vmul.f32 %v4617, %v4465
      %v4792 = vmul.f32 %v4621, %v4467
      %v4793 = vmul.f32 %v4625, %v4469
      %v4794 = vmul.f32 %v4581, %v4471
      %v4795 = vmul.f32 %v4585, %v4473
      %v4796 = vmul.f32 %v4589, %v4475
      %v4797 = vmul.f32 %v4593, %v4477
      %v4798 = vmul.f32 %v4597, %v4479
      %v4799 = vmul.f32 %v4601, %v4481
      %v4800 = vmul.f32 %v4605, %v4483
      %v4801 = vmul.f32 %v4609, %v4485
      %v4802 = vmul.f32 %v4613, %v4487
      %v4803 = vmul.f32 %v4617, %v4489
      %v4804 = vmul.f32 %v4621, %v4491
      %v4805 = vmul.f32 %v4625, %v4493
      %v4806 = vmul.f32 %v4581, %v4495
      %v4807 = vmul.f32 %v4585, %v4497
      %v4808 = vmul.f32 %v4589, %v4499
      %v4809 = vmul.f32 %v4593, %v4501
      %v4810 = vmul.f32 %v4597, %v4503
      %v4811 = vmul.f32 %v4601, %v4505
      %v4812 = vmul.f32 %v4605, %v4507
      %v4813 = vmul.f32 %v4609, %v4509
      %v4814 = vmul.f32 %v4613, %v4511
      %v4815 = vmul.f32 %v4617, %v4513
      %v4816 = vmul.f32 %v4621, %v4515
      %v4817 = vmul.f32 %v4625, %v4517
      %v4818 = vld [vmem:[%s10] sm:$0xff]
      %v4819 = vld [vmem:[%s10 + $0x8] sm:$0xff]
      %v4820 = vld [vmem:[%s10 + $0x10] sm:$0xff]
      %v4821 = vld [vmem:[%s10 + $0x18] sm:$0xff]
      %v4822 = vld [vmem:[%s10 + $0x20] sm:$0xff]
      %v4823 = vld [vmem:[%s10 + $0x28] sm:$0xff]
      %v4824 = vld [vmem:[%s10 + $0x30] sm:$0xff]
      %v4825 = vld [vmem:[%s10 + $0x38] sm:$0xff]
      %v4826 = vld [vmem:[%s10 + $0x40] sm:$0xff]
      %v4827 = vld [vmem:[%s10 + $0x48] sm:$0xff]
      %v4828 = vld [vmem:[%s10 + $0x50] sm:$0xff]
      %v4829 = vld [vmem:[%s10 + $0x58] sm:$0xff]
      %v4830 = vld [vmem:[%s10 + $0x60] sm:$0xff]
      %v4831 = vld [vmem:[%s10 + $0x68] sm:$0xff]
      %v4832 = vld [vmem:[%s10 + $0x70] sm:$0xff]
      %v4833 = vld [vmem:[%s10 + $0x78] sm:$0xff]
      %v4834 = vld [vmem:[%s10 + $0x80] sm:$0xff]
      %v4835 = vld [vmem:[%s10 + $0x88] sm:$0xff]
      %v4836 = vld [vmem:[%s10 + $0x90] sm:$0xff]
      %v4837 = vld [vmem:[%s10 + $0x98] sm:$0xff]
      %v4838 = vld [vmem:[%s10 + $0xa0] sm:$0xff]
      %v4839 = vld [vmem:[%s10 + $0xa8] sm:$0xff]
      %v4840 = vld [vmem:[%s10 + $0xb0] sm:$0xff]
      %v4841 = vld [vmem:[%s10 + $0xb8] sm:$0xff]
      %v4842 = vld [vmem:[%s10 + $0xc0] sm:$0xff]
      %v4843 = vld [vmem:[%s10 + $0xc8] sm:$0xff]
      %v4844 = vld [vmem:[%s10 + $0xd0] sm:$0xff]
      %v4845 = vld [vmem:[%s10 + $0xd8] sm:$0xff]
      %v4846 = vld [vmem:[%s10 + $0xe0] sm:$0xff]
      %v4847 = vld [vmem:[%s10 + $0xe8] sm:$0xff]
      %v4848 = vld [vmem:[%s10 + $0xf0] sm:$0xff]
      %v4849 = vld [vmem:[%s10 + $0xf8] sm:$0xff]
      %v4850 = vld [vmem:[%s10 + $0x100] sm:$0xff]
      %v4851 = vld [vmem:[%s10 + $0x108] sm:$0xff]
      %v4852 = vld [vmem:[%s10 + $0x110] sm:$0xff]
      %v4853 = vld [vmem:[%s10 + $0x118] sm:$0xff]
      %v4854 = vld [vmem:[%s10 + $0x120] sm:$0xff]
      %v4855 = vld [vmem:[%s10 + $0x128] sm:$0xff]
      %v4856 = vld [vmem:[%s10 + $0x130] sm:$0xff]
      %v4857 = vld [vmem:[%s10 + $0x138] sm:$0xff]
      %v4858 = vld [vmem:[%s10 + $0x140] sm:$0xff]
      %v4859 = vld [vmem:[%s10 + $0x148] sm:$0xff]
      %v4860 = vld [vmem:[%s10 + $0x150] sm:$0xff]
      %v4861 = vld [vmem:[%s10 + $0x158] sm:$0xff]
      %v4862 = vld [vmem:[%s10 + $0x160] sm:$0xff]
      %v4863 = vld [vmem:[%s10 + $0x168] sm:$0xff]
      %v4864 = vld [vmem:[%s10 + $0x170] sm:$0xff]
      %v4865 = vld [vmem:[%s10 + $0x178] sm:$0xff]
      %v4866 = vld [vmem:[%s10 + $0x180] sm:$0xff]
      %v4867 = vld [vmem:[%s10 + $0x188] sm:$0xff]
      %v4868 = vld [vmem:[%s10 + $0x190] sm:$0xff]
      %v4869 = vld [vmem:[%s10 + $0x198] sm:$0xff]
      %v4870 = vld [vmem:[%s10 + $0x1a0] sm:$0xff]
      %v4871 = vld [vmem:[%s10 + $0x1a8] sm:$0xff]
      %v4872 = vld [vmem:[%s10 + $0x1b0] sm:$0xff]
      %v4873 = vld [vmem:[%s10 + $0x1b8] sm:$0xff]
      %v4874 = vld [vmem:[%s10 + $0x1c0] sm:$0xff]
      %v4875 = vld [vmem:[%s10 + $0x1c8] sm:$0xff]
      %v4876 = vld [vmem:[%s10 + $0x1d0] sm:$0xff]
      %v4877 = vld [vmem:[%s10 + $0x1d8] sm:$0xff]
      %v4878 = vld [vmem:[%s10 + $0x1e0] sm:$0xff]
      %v4879 = vld [vmem:[%s10 + $0x1e8] sm:$0xff]
      %v4880 = vld [vmem:[%s10 + $0x1f0] sm:$0xff]
      %v4881 = vld [vmem:[%s10 + $0x1f8] sm:$0xff]
      %v4882 = vld [vmem:[%s10 + $0x200] sm:$0xff]
      %v4883 = vld [vmem:[%s10 + $0x208] sm:$0xff]
      %v4884 = vld [vmem:[%s10 + $0x210] sm:$0xff]
      %v4885 = vld [vmem:[%s10 + $0x218] sm:$0xff]
      %v4886 = vld [vmem:[%s10 + $0x220] sm:$0xff]
      %v4887 = vld [vmem:[%s10 + $0x228] sm:$0xff]
      %v4888 = vld [vmem:[%s10 + $0x230] sm:$0xff]
      %v4889 = vld [vmem:[%s10 + $0x238] sm:$0xff]
      %v4890 = vld [vmem:[%s10 + $0x240] sm:$0xff]
      %v4891 = vld [vmem:[%s10 + $0x248] sm:$0xff]
      %v4892 = vld [vmem:[%s10 + $0x250] sm:$0xff]
      %v4893 = vld [vmem:[%s10 + $0x258] sm:$0xff]
      %v4894 = vld [vmem:[%s10 + $0x260] sm:$0xff]
      %v4895 = vld [vmem:[%s10 + $0x268] sm:$0xff]
      %v4896 = vld [vmem:[%s10 + $0x270] sm:$0xff]
      %v4897 = vld [vmem:[%s10 + $0x278] sm:$0xff]
      %v4898 = vld [vmem:[%s10 + $0x280] sm:$0xff]
      %v4899 = vld [vmem:[%s10 + $0x288] sm:$0xff]
      %v4900 = vld [vmem:[%s10 + $0x290] sm:$0xff]
      %v4901 = vld [vmem:[%s10 + $0x298] sm:$0xff]
      %v4902 = vld [vmem:[%s10 + $0x2a0] sm:$0xff]
      %v4903 = vld [vmem:[%s10 + $0x2a8] sm:$0xff]
      %v4904 = vld [vmem:[%s10 + $0x2b0] sm:$0xff]
      %v4905 = vld [vmem:[%s10 + $0x2b8] sm:$0xff]
      %v4906 = vld [vmem:[%s10 + $0x2c0] sm:$0xff]
      %v4907 = vld [vmem:[%s10 + $0x2c8] sm:$0xff]
      %v4908 = vld [vmem:[%s10 + $0x2d0] sm:$0xff]
      %v4909 = vld [vmem:[%s10 + $0x2d8] sm:$0xff]
      %v4910 = vld [vmem:[%s10 + $0x2e0] sm:$0xff]
      %v4911 = vld [vmem:[%s10 + $0x2e8] sm:$0xff]
      %v4912 = vld [vmem:[%s10 + $0x2f0] sm:$0xff]
      %v4913 = vld [vmem:[%s10 + $0x2f8] sm:$0xff]
      %v4914 = vld [vmem:[%s10 + $0x300] sm:$0xff]
      %v4915 = vld [vmem:[%s10 + $0x308] sm:$0xff]
      %v4916 = vld [vmem:[%s10 + $0x310] sm:$0xff]
      %v4917 = vld [vmem:[%s10 + $0x318] sm:$0xff]
      %v4918 = vld [vmem:[%s10 + $0x320] sm:$0xff]
      %v4919 = vld [vmem:[%s10 + $0x328] sm:$0xff]
      %v4920 = vld [vmem:[%s10 + $0x330] sm:$0xff]
      %v4921 = vld [vmem:[%s10 + $0x338] sm:$0xff]
      %v4922 = vld [vmem:[%s10 + $0x340] sm:$0xff]
      %v4923 = vld [vmem:[%s10 + $0x348] sm:$0xff]
      %v4924 = vld [vmem:[%s10 + $0x350] sm:$0xff]
      %v4925 = vld [vmem:[%s10 + $0x358] sm:$0xff]
      %v4926 = vld [vmem:[%s10 + $0x360] sm:$0xff]
      %v4927 = vld [vmem:[%s10 + $0x368] sm:$0xff]
      %v4928 = vld [vmem:[%s10 + $0x370] sm:$0xff]
      %v4929 = vld [vmem:[%s10 + $0x378] sm:$0xff]
      %v4930 = vld [vmem:[%s10 + $0x380] sm:$0xff]
      %v4931 = vld [vmem:[%s10 + $0x388] sm:$0xff]
      %v4932 = vld [vmem:[%s10 + $0x390] sm:$0xff]
      %v4933 = vld [vmem:[%s10 + $0x398] sm:$0xff]
      %v4934 = vld [vmem:[%s10 + $0x3a0] sm:$0xff]
      %v4935 = vld [vmem:[%s10 + $0x3a8] sm:$0xff]
      %v4936 = vld [vmem:[%s10 + $0x3b0] sm:$0xff]
      %v4937 = vld [vmem:[%s10 + $0x3b8] sm:$0xff]
      %v4938 = vld [vmem:[%s10 + $0x3c0] sm:$0xff]
      %v4939 = vld [vmem:[%s10 + $0x3c8] sm:$0xff]
      %v4940 = vld [vmem:[%s10 + $0x3d0] sm:$0xff]
      %v4941 = vld [vmem:[%s10 + $0x3d8] sm:$0xff]
      %v4942 = vld [vmem:[%s10 + $0x3e0] sm:$0xff]
      %v4943 = vld [vmem:[%s10 + $0x3e8] sm:$0xff]
      %v4944 = vld [vmem:[%s10 + $0x3f0] sm:$0xff]
      %v4945 = vld [vmem:[%s10 + $0x3f8] sm:$0xff]
      %v4946 = vld [vmem:[%s10 + $0x400] sm:$0xff]
      %v4947 = vld [vmem:[%s10 + $0x408] sm:$0xff]
      %v4948 = vld [vmem:[%s10 + $0x410] sm:$0xff]
      %v4949 = vld [vmem:[%s10 + $0x418] sm:$0xff]
      %v4950 = vld [vmem:[%s10 + $0x420] sm:$0xff]
      %v4951 = vld [vmem:[%s10 + $0x428] sm:$0xff]
      %v4952 = vld [vmem:[%s10 + $0x430] sm:$0xff]
      %v4953 = vld [vmem:[%s10 + $0x438] sm:$0xff]
      %v4954 = vld [vmem:[%s10 + $0x440] sm:$0xff]
      %v4955 = vld [vmem:[%s10 + $0x448] sm:$0xff]
      %v4956 = vld [vmem:[%s10 + $0x450] sm:$0xff]
      %v4957 = vld [vmem:[%s10 + $0x458] sm:$0xff]
      %v4958 = vld [vmem:[%s10 + $0x460] sm:$0xff]
      %v4959 = vld [vmem:[%s10 + $0x468] sm:$0xff]
      %v4960 = vld [vmem:[%s10 + $0x470] sm:$0xff]
      %v4961 = vld [vmem:[%s10 + $0x478] sm:$0xff]
      %v4962 = vld [vmem:[%s10 + $0x480] sm:$0xff]
      %v4963 = vld [vmem:[%s10 + $0x488] sm:$0xff]
      %v4964 = vld [vmem:[%s10 + $0x490] sm:$0xff]
      %v4965 = vld [vmem:[%s10 + $0x498] sm:$0xff]
      %v4966 = vld [vmem:[%s10 + $0x4a0] sm:$0xff]
      %v4967 = vld [vmem:[%s10 + $0x4a8] sm:$0xff]
      %v4968 = vld [vmem:[%s10 + $0x4b0] sm:$0xff]
      %v4969 = vld [vmem:[%s10 + $0x4b8] sm:$0xff]
      %v4970 = vld [vmem:[%s10 + $0x4c0] sm:$0xff]
      %v4971 = vld [vmem:[%s10 + $0x4c8] sm:$0xff]
      %v4972 = vld [vmem:[%s10 + $0x4d0] sm:$0xff]
      %v4973 = vld [vmem:[%s10 + $0x4d8] sm:$0xff]
      %v4974 = vld [vmem:[%s10 + $0x4e0] sm:$0xff]
      %v4975 = vld [vmem:[%s10 + $0x4e8] sm:$0xff]
      %v4976 = vld [vmem:[%s10 + $0x4f0] sm:$0xff]
      %v4977 = vld [vmem:[%s10 + $0x4f8] sm:$0xff]
      %v4978 = vld [vmem:[%s10 + $0x500] sm:$0xff]
      %v4979 = vld [vmem:[%s10 + $0x508] sm:$0xff]
      %v4980 = vld [vmem:[%s10 + $0x510] sm:$0xff]
      %v4981 = vld [vmem:[%s10 + $0x518] sm:$0xff]
      %v4982 = vld [vmem:[%s10 + $0x520] sm:$0xff]
      %v4983 = vld [vmem:[%s10 + $0x528] sm:$0xff]
      %v4984 = vld [vmem:[%s10 + $0x530] sm:$0xff]
      %v4985 = vld [vmem:[%s10 + $0x538] sm:$0xff]
      %v4986 = vld [vmem:[%s10 + $0x540] sm:$0xff]
      %v4987 = vld [vmem:[%s10 + $0x548] sm:$0xff]
      %v4988 = vld [vmem:[%s10 + $0x550] sm:$0xff]
      %v4989 = vld [vmem:[%s10 + $0x558] sm:$0xff]
      %v4990 = vld [vmem:[%s10 + $0x560] sm:$0xff]
      %v4991 = vld [vmem:[%s10 + $0x568] sm:$0xff]
      %v4992 = vld [vmem:[%s10 + $0x570] sm:$0xff]
      %v4993 = vld [vmem:[%s10 + $0x578] sm:$0xff]
      %v4994 = vld [vmem:[%s10 + $0x580] sm:$0xff]
      %v4995 = vld [vmem:[%s10 + $0x588] sm:$0xff]
      %v4996 = vld [vmem:[%s10 + $0x590] sm:$0xff]
      %v4997 = vld [vmem:[%s10 + $0x598] sm:$0xff]
      %v4998 = vld [vmem:[%s10 + $0x5a0] sm:$0xff]
      %v4999 = vld [vmem:[%s10 + $0x5a8] sm:$0xff]
      %v5000 = vld [vmem:[%s10 + $0x5b0] sm:$0xff]
      %v5001 = vld [vmem:[%s10 + $0x5b8] sm:$0xff]
      %v5002 = vld [vmem:[%s10 + $0x5c0] sm:$0xff]
      %v5003 = vld [vmem:[%s10 + $0x5c8] sm:$0xff]
      %v5004 = vld [vmem:[%s10 + $0x5d0] sm:$0xff]
      %v5005 = vld [vmem:[%s10 + $0x5d8] sm:$0xff]
      %v5006 = vld [vmem:[%s10 + $0x5e0] sm:$0xff]
      %v5007 = vld [vmem:[%s10 + $0x5e8] sm:$0xff]
      %v5008 = vld [vmem:[%s10 + $0x5f0] sm:$0xff]
      %v5009 = vld [vmem:[%s10 + $0x5f8] sm:$0xff]
      %v5010 = vld [vmem:[%s10 + $0x600] sm:$0xff]
      %v5011 = vld [vmem:[%s10 + $0x608] sm:$0xff]
      %v5012 = vld [vmem:[%s10 + $0x610] sm:$0xff]
      %v5013 = vld [vmem:[%s10 + $0x618] sm:$0xff]
      %v5014 = vld [vmem:[%s10 + $0x620] sm:$0xff]
      %v5015 = vld [vmem:[%s10 + $0x628] sm:$0xff]
      %v5016 = vld [vmem:[%s10 + $0x630] sm:$0xff]
      %v5017 = vld [vmem:[%s10 + $0x638] sm:$0xff]
      %v5018 = vld [vmem:[%s10 + $0x640] sm:$0xff]
      %v5019 = vld [vmem:[%s10 + $0x648] sm:$0xff]
      %v5020 = vld [vmem:[%s10 + $0x650] sm:$0xff]
      %v5021 = vld [vmem:[%s10 + $0x658] sm:$0xff]
      %v5022 = vld [vmem:[%s10 + $0x660] sm:$0xff]
      %v5023 = vld [vmem:[%s10 + $0x668] sm:$0xff]
      %v5024 = vld [vmem:[%s10 + $0x670] sm:$0xff]
      %v5025 = vld [vmem:[%s10 + $0x678] sm:$0xff]
      %v5026 = vld [vmem:[%s10 + $0x680] sm:$0xff]
      %v5027 = vld [vmem:[%s10 + $0x688] sm:$0xff]
      %v5028 = vld [vmem:[%s10 + $0x690] sm:$0xff]
      %v5029 = vld [vmem:[%s10 + $0x698] sm:$0xff]
      %v5030 = vld [vmem:[%s10 + $0x6a0] sm:$0xff]
      %v5031 = vld [vmem:[%s10 + $0x6a8] sm:$0xff]
      %v5032 = vld [vmem:[%s10 + $0x6b0] sm:$0xff]
      %v5033 = vld [vmem:[%s10 + $0x6b8] sm:$0xff]
      %v5034 = vld [vmem:[%s10 + $0x6c0] sm:$0xff]
      %v5035 = vld [vmem:[%s10 + $0x6c8] sm:$0xff]
      %v5036 = vld [vmem:[%s10 + $0x6d0] sm:$0xff]
      %v5037 = vld [vmem:[%s10 + $0x6d8] sm:$0xff]
      %v5038 = vld [vmem:[%s10 + $0x6e0] sm:$0xff]
      %v5039 = vld [vmem:[%s10 + $0x6e8] sm:$0xff]
      %v5040 = vld [vmem:[%s10 + $0x6f0] sm:$0xff]
      %v5041 = vld [vmem:[%s10 + $0x6f8] sm:$0xff]
      %v5042 = vld [vmem:[%s10 + $0x700] sm:$0xff]
      %v5043 = vld [vmem:[%s10 + $0x708] sm:$0xff]
      %v5044 = vld [vmem:[%s10 + $0x710] sm:$0xff]
      %v5045 = vld [vmem:[%s10 + $0x718] sm:$0xff]
      %v5046 = vld [vmem:[%s10 + $0x720] sm:$0xff]
      %v5047 = vld [vmem:[%s10 + $0x728] sm:$0xff]
      %v5048 = vld [vmem:[%s10 + $0x730] sm:$0xff]
      %v5049 = vld [vmem:[%s10 + $0x738] sm:$0xff]
      %v5050 = vld [vmem:[%s10 + $0x740] sm:$0xff]
      %v5051 = vld [vmem:[%s10 + $0x748] sm:$0xff]
      %v5052 = vld [vmem:[%s10 + $0x750] sm:$0xff]
      %v5053 = vld [vmem:[%s10 + $0x758] sm:$0xff]
      %v5054 = vld [vmem:[%s10 + $0x760] sm:$0xff]
      %v5055 = vld [vmem:[%s10 + $0x768] sm:$0xff]
      %v5056 = vld [vmem:[%s10 + $0x770] sm:$0xff]
      %v5057 = vld [vmem:[%s10 + $0x778] sm:$0xff]
      %v5058 = vld [vmem:[%s10 + $0x780] sm:$0xff]
      %v5059 = vld [vmem:[%s10 + $0x788] sm:$0xff]
      %v5060 = vld [vmem:[%s10 + $0x790] sm:$0xff]
      %v5061 = vld [vmem:[%s10 + $0x798] sm:$0xff]
      %v5062 = vld [vmem:[%s10 + $0x7a0] sm:$0xff]
      %v5063 = vld [vmem:[%s10 + $0x7a8] sm:$0xff]
      %v5064 = vld [vmem:[%s10 + $0x7b0] sm:$0xff]
      %v5065 = vld [vmem:[%s10 + $0x7b8] sm:$0xff]
      %v5066 = vld [vmem:[%s10 + $0x7c0] sm:$0xff]
      %v5067 = vld [vmem:[%s10 + $0x7c8] sm:$0xff]
      %v5068 = vld [vmem:[%s10 + $0x7d0] sm:$0xff]
      %v5069 = vld [vmem:[%s10 + $0x7d8] sm:$0xff]
      %v5070 = vld [vmem:[%s10 + $0x7e0] sm:$0xff]
      %v5071 = vld [vmem:[%s10 + $0x7e8] sm:$0xff]
      %v5072 = vld [vmem:[%s10 + $0x7f0] sm:$0xff]
      %v5073 = vld [vmem:[%s10 + $0x7f8] sm:$0xff]
      %v5074 = vld [vmem:[%s10 + $0x800] sm:$0xff]
      %v5075 = vld [vmem:[%s10 + $0x808] sm:$0xff]
      %v5076 = vld [vmem:[%s10 + $0x810] sm:$0xff]
      %v5077 = vld [vmem:[%s10 + $0x818] sm:$0xff]
      %v5078 = vld [vmem:[%s10 + $0x820] sm:$0xff]
      %v5079 = vld [vmem:[%s10 + $0x828] sm:$0xff]
      %v5080 = vld [vmem:[%s10 + $0x830] sm:$0xff]
      %v5081 = vld [vmem:[%s10 + $0x838] sm:$0xff]
      %v5082 = vld [vmem:[%s10 + $0x840] sm:$0xff]
      %v5083 = vld [vmem:[%s10 + $0x848] sm:$0xff]
      %v5084 = vld [vmem:[%s10 + $0x850] sm:$0xff]
      %v5085 = vld [vmem:[%s10 + $0x858] sm:$0xff]
      %v5086 = vld [vmem:[%s10 + $0x860] sm:$0xff]
      %v5087 = vld [vmem:[%s10 + $0x868] sm:$0xff]
      %v5088 = vld [vmem:[%s10 + $0x870] sm:$0xff]
      %v5089 = vld [vmem:[%s10 + $0x878] sm:$0xff]
      %v5090 = vld [vmem:[%s10 + $0x880] sm:$0xff]
      %v5091 = vld [vmem:[%s10 + $0x888] sm:$0xff]
      %v5092 = vld [vmem:[%s10 + $0x890] sm:$0xff]
      %v5093 = vld [vmem:[%s10 + $0x898] sm:$0xff]
      %v5094 = vld [vmem:[%s10 + $0x8a0] sm:$0xff]
      %v5095 = vld [vmem:[%s10 + $0x8a8] sm:$0xff]
      %v5096 = vld [vmem:[%s10 + $0x8b0] sm:$0xff]
      %v5097 = vld [vmem:[%s10 + $0x8b8] sm:$0xff]
      %v5098 = vld [vmem:[%s10 + $0x8c0] sm:$0xff]
      %v5099 = vld [vmem:[%s10 + $0x8c8] sm:$0xff]
      %v5100 = vld [vmem:[%s10 + $0x8d0] sm:$0xff]
      %v5101 = vld [vmem:[%s10 + $0x8d8] sm:$0xff]
      %v5102 = vld [vmem:[%s10 + $0x8e0] sm:$0xff]
      %v5103 = vld [vmem:[%s10 + $0x8e8] sm:$0xff]
      %v5104 = vld [vmem:[%s10 + $0x8f0] sm:$0xff]
      %v5105 = vld [vmem:[%s10 + $0x8f8] sm:$0xff]
      %v5106 = vld [vmem:[%s10 + $0x900] sm:$0xff]
      %v5107 = vld [vmem:[%s10 + $0x908] sm:$0xff]
      %v5108 = vld [vmem:[%s10 + $0x910] sm:$0xff]
      %v5109 = vld [vmem:[%s10 + $0x918] sm:$0xff]
      %v5110 = vld [vmem:[%s10 + $0x920] sm:$0xff]
      %v5111 = vld [vmem:[%s10 + $0x928] sm:$0xff]
      %v5112 = vld [vmem:[%s10 + $0x930] sm:$0xff]
      %v5113 = vld [vmem:[%s10 + $0x938] sm:$0xff]
      %v5114 = vld [vmem:[%s10 + $0x940] sm:$0xff]
      %v5115 = vld [vmem:[%s10 + $0x948] sm:$0xff]
      %v5116 = vld [vmem:[%s10 + $0x950] sm:$0xff]
      %v5117 = vld [vmem:[%s10 + $0x958] sm:$0xff]
      %v5118 = vld [vmem:[%s10 + $0x960] sm:$0xff]
      %v5119 = vld [vmem:[%s10 + $0x968] sm:$0xff]
      %v5120 = vld [vmem:[%s10 + $0x970] sm:$0xff]
      %v5121 = vld [vmem:[%s10 + $0x978] sm:$0xff]
      %v5122 = vld [vmem:[%s10 + $0x980] sm:$0xff]
      %v5123 = vld [vmem:[%s10 + $0x988] sm:$0xff]
      %v5124 = vld [vmem:[%s10 + $0x990] sm:$0xff]
      %v5125 = vld [vmem:[%s10 + $0x998] sm:$0xff]
      %v5126 = vld [vmem:[%s10 + $0x9a0] sm:$0xff]
      %v5127 = vld [vmem:[%s10 + $0x9a8] sm:$0xff]
      %v5128 = vld [vmem:[%s10 + $0x9b0] sm:$0xff]
      %v5129 = vld [vmem:[%s10 + $0x9b8] sm:$0xff]
      %v5130 = vld [vmem:[%s10 + $0x9c0] sm:$0xff]
      %v5131 = vld [vmem:[%s10 + $0x9c8] sm:$0xff]
      %v5132 = vld [vmem:[%s10 + $0x9d0] sm:$0xff]
      %v5133 = vld [vmem:[%s10 + $0x9d8] sm:$0xff]
      %v5134 = vld [vmem:[%s10 + $0x9e0] sm:$0xff]
      %v5135 = vld [vmem:[%s10 + $0x9e8] sm:$0xff]
      %v5136 = vld [vmem:[%s10 + $0x9f0] sm:$0xff]
      %v5137 = vld [vmem:[%s10 + $0x9f8] sm:$0xff]
      %v5138 = vld [vmem:[%s10 + $0xa00] sm:$0xff]
      %v5139 = vld [vmem:[%s10 + $0xa08] sm:$0xff]
      %v5140 = vld [vmem:[%s10 + $0xa10] sm:$0xff]
      %v5141 = vld [vmem:[%s10 + $0xa18] sm:$0xff]
      %v5142 = vld [vmem:[%s10 + $0xa20] sm:$0xff]
      %v5143 = vld [vmem:[%s10 + $0xa28] sm:$0xff]
      %v5144 = vld [vmem:[%s10 + $0xa30] sm:$0xff]
      %v5145 = vld [vmem:[%s10 + $0xa38] sm:$0xff]
      %v5146 = vld [vmem:[%s10 + $0xa40] sm:$0xff]
      %v5147 = vld [vmem:[%s10 + $0xa48] sm:$0xff]
      %v5148 = vld [vmem:[%s10 + $0xa50] sm:$0xff]
      %v5149 = vld [vmem:[%s10 + $0xa58] sm:$0xff]
      %v5150 = vld [vmem:[%s10 + $0xa60] sm:$0xff]
      %v5151 = vld [vmem:[%s10 + $0xa68] sm:$0xff]
      %v5152 = vld [vmem:[%s10 + $0xa70] sm:$0xff]
      %v5153 = vld [vmem:[%s10 + $0xa78] sm:$0xff]
      %v5154 = vld [vmem:[%s10 + $0xa80] sm:$0xff]
      %v5155 = vld [vmem:[%s10 + $0xa88] sm:$0xff]
      %v5156 = vld [vmem:[%s10 + $0xa90] sm:$0xff]
      %v5157 = vld [vmem:[%s10 + $0xa98] sm:$0xff]
      %v5158 = vld [vmem:[%s10 + $0xaa0] sm:$0xff]
      %v5159 = vld [vmem:[%s10 + $0xaa8] sm:$0xff]
      %v5160 = vld [vmem:[%s10 + $0xab0] sm:$0xff]
      %v5161 = vld [vmem:[%s10 + $0xab8] sm:$0xff]
      %v5162 = vld [vmem:[%s10 + $0xac0] sm:$0xff]
      %v5163 = vld [vmem:[%s10 + $0xac8] sm:$0xff]
      %v5164 = vld [vmem:[%s10 + $0xad0] sm:$0xff]
      %v5165 = vld [vmem:[%s10 + $0xad8] sm:$0xff]
      %v5166 = vld [vmem:[%s10 + $0xae0] sm:$0xff]
      %v5167 = vld [vmem:[%s10 + $0xae8] sm:$0xff]
      %v5168 = vld [vmem:[%s10 + $0xaf0] sm:$0xff]
      %v5169 = vld [vmem:[%s10 + $0xaf8] sm:$0xff]
      %v5170 = vld [vmem:[%s10 + $0xb00] sm:$0xff]
      %v5171 = vld [vmem:[%s10 + $0xb08] sm:$0xff]
      %v5172 = vld [vmem:[%s10 + $0xb10] sm:$0xff]
      %v5173 = vld [vmem:[%s10 + $0xb18] sm:$0xff]
      %v5174 = vld [vmem:[%s10 + $0xb20] sm:$0xff]
      %v5175 = vld [vmem:[%s10 + $0xb28] sm:$0xff]
      %v5176 = vld [vmem:[%s10 + $0xb30] sm:$0xff]
      %v5177 = vld [vmem:[%s10 + $0xb38] sm:$0xff]
      %v5178 = vld [vmem:[%s10 + $0xb40] sm:$0xff]
      %v5179 = vld [vmem:[%s10 + $0xb48] sm:$0xff]
      %v5180 = vld [vmem:[%s10 + $0xb50] sm:$0xff]
      %v5181 = vld [vmem:[%s10 + $0xb58] sm:$0xff]
      %v5182 = vld [vmem:[%s10 + $0xb60] sm:$0xff]
      %v5183 = vld [vmem:[%s10 + $0xb68] sm:$0xff]
      %v5184 = vld [vmem:[%s10 + $0xb70] sm:$0xff]
      %v5185 = vld [vmem:[%s10 + $0xb78] sm:$0xff]
      %v5186 = vld [vmem:[%s10 + $0xb80] sm:$0xff]
      %v5187 = vld [vmem:[%s10 + $0xb88] sm:$0xff]
      %v5188 = vld [vmem:[%s10 + $0xb90] sm:$0xff]
      %v5189 = vld [vmem:[%s10 + $0xb98] sm:$0xff]
      %v5190 = vld [vmem:[%s10 + $0xba0] sm:$0xff]
      %v5191 = vld [vmem:[%s10 + $0xba8] sm:$0xff]
      %v5192 = vld [vmem:[%s10 + $0xbb0] sm:$0xff]
      %v5193 = vld [vmem:[%s10 + $0xbb8] sm:$0xff]
      %v5194 = vld [vmem:[%s10 + $0xbc0] sm:$0xff]
      %v5195 = vld [vmem:[%s10 + $0xbc8] sm:$0xff]
      %v5196 = vld [vmem:[%s10 + $0xbd0] sm:$0xff]
      %v5197 = vld [vmem:[%s10 + $0xbd8] sm:$0xff]
      %v5198 = vld [vmem:[%s10 + $0xbe0] sm:$0xff]
      %v5199 = vld [vmem:[%s10 + $0xbe8] sm:$0xff]
      %v5200 = vld [vmem:[%s10 + $0xbf0] sm:$0xff]
      %v5201 = vld [vmem:[%s10 + $0xbf8] sm:$0xff]
      %5202 = vmatprep.subr.mxu0 %v4819
      %5203 = vmatpush1.msra.mxu0 %v4818
      %5204 = vmatprep.subr.mxu0 %v4821
      %5205 = vmatpush1.msra.mxu0 %v4820
      %5206 = vmatprep.subr.mxu0 %v4823
      %5207 = vmatpush1.msra.mxu0 %v4822
      %5208 = vmatprep.subr.mxu0 %v4825
      %5209 = vmatpush1.msra.mxu0 %v4824
      %5210 = vmatprep.subr.mxu0 %v4827
      %5211 = vmatpush1.msra.mxu0 %v4826
      %5212 = vmatprep.subr.mxu0 %v4829
      %5213 = vmatpush1.msra.mxu0 %v4828
      %5214 = vmatprep.subr.mxu0 %v4831
      %5215 = vmatpush1.msra.mxu0 %v4830
      %5216 = vmatprep.subr.mxu0 %v4833
      %5217 = vmatpush1.msra.mxu0 %v4832
      %5218 = vmatprep.subr.mxu0 %v4835
      %5219 = vmatpush1.msra.mxu0 %v4834
      %5220 = vmatprep.subr.mxu0 %v4837
      %5221 = vmatpush1.msra.mxu0 %v4836
      %5222 = vmatprep.subr.mxu0 %v4839
      %5223 = vmatpush1.msra.mxu0 %v4838
      %5224 = vmatprep.subr.mxu0 %v4841
      %5225 = vmatpush1.msra.mxu0 %v4840
      %5226 = vmatprep.subr.mxu0 %v4843
      %5227 = vmatpush1.msra.mxu0 %v4842
      %5228 = vmatprep.subr.mxu0 %v4845
      %5229 = vmatpush1.msra.mxu0 %v4844
      %5230 = vmatprep.subr.mxu0 %v4847
      %5231 = vmatpush1.msra.mxu0 %v4846
      %5232 = vmatprep.subr.mxu0 %v4849
      %5233 = vmatpush1.msra.mxu0 %v4848
      %5234 = vmatprep.subr.mxu0 %v4851
      %5235 = vmatpush1.msra.mxu0 %v4850
      %5236 = vmatprep.subr.mxu0 %v4853
      %5237 = vmatpush1.msra.mxu0 %v4852
      %5238 = vmatprep.subr.mxu0 %v4855
      %5239 = vmatpush1.msra.mxu0 %v4854
      %5240 = vmatprep.subr.mxu0 %v4857
      %5241 = vmatpush1.msra.mxu0 %v4856
      %5242 = vmatprep.subr.mxu0 %v4859
      %5243 = vmatpush1.msra.mxu0 %v4858
      %5244 = vmatprep.subr.mxu0 %v4861
      %5245 = vmatpush1.msra.mxu0 %v4860
      %5246 = vmatprep.subr.mxu0 %v4863
      %5247 = vmatpush1.msra.mxu0 %v4862
      %5248 = vmatprep.subr.mxu0 %v4865
      %5249 = vmatpush1.msra.mxu0 %v4864
      %5250 = vmatprep.subr.mxu0 %v4867
      %5251 = vmatpush1.msra.mxu0 %v4866
      %5252 = vmatprep.subr.mxu0 %v4869
      %5253 = vmatpush1.msra.mxu0 %v4868
      %5254 = vmatprep.subr.mxu0 %v4871
      %5255 = vmatpush1.msra.mxu0 %v4870
      %5256 = vmatprep.subr.mxu0 %v4873
      %5257 = vmatpush1.msra.mxu0 %v4872
      %5258 = vmatprep.subr.mxu0 %v4875
      %5259 = vmatpush1.msra.mxu0 %v4874
      %5260 = vmatprep.subr.mxu0 %v4877
      %5261 = vmatpush1.msra.mxu0 %v4876
      %5262 = vmatprep.subr.mxu0 %v4879
      %5263 = vmatpush1.msra.mxu0 %v4878
      %5264 = vmatprep.subr.mxu0 %v4881
      %5265 = vmatpush1.msra.mxu0 %v4880
      %5266 = vmatprep.mubr.f32.mxu0 %v4627
      %5267 = vmatmul.mubr.f32.gmra.mrb[0].mxu0 %v4626
      %v5268 = vpop.f32.mrb[0].mxu0
      %v5269 = vadd.f32 0.0, %v5268
      %v5270 = vpop.f32.mrb[0].mxu0
      %v5271 = vadd.f32 0.0, %v5270
      %5272 = vmatprep.mubr.f32.mxu0 %v4639
      %5273 = vmatmul.mubr.f32.gmra.mrb[0].mxu0 %v4638
      %v5274 = vpop.f32.mrb[0].mxu0
      %v5275 = vadd.f32 0.0, %v5274
      %v5276 = vpop.f32.mrb[0].mxu0
      %v5277 = vadd.f32 0.0, %v5276
      %5278 = vmatprep.mubr.f32.mxu0 %v4651
      %5279 = vmatmul.mubr.f32.gmra.mrb[0].mxu0 %v4650
      %v5280 = vpop.f32.mrb[0].mxu0
      %v5281 = vadd.f32 0.0, %v5280
      %v5282 = vpop.f32.mrb[0].mxu0
      %v5283 = vadd.f32 0.0, %v5282
      %5284 = vmatprep.mubr.f32.mxu0 %v4663
      %5285 = vmatmul.mubr.f32.gmra.mrb[0].mxu0 %v4662
      %v5286 = vpop.f32.mrb[0].mxu0
      %v5287 = vadd.f32 0.0, %v5286
      %v5288 = vpop.f32.mrb[0].mxu0
      %v5289 = vadd.f32 0.0, %v5288
      %5290 = vmatprep.mubr.f32.mxu0 %v4675
      %5291 = vmatmul.mubr.f32.gmra.mrb[0].mxu0 %v4674
      %v5292 = vpop.f32.mrb[0].mxu0
      %v5293 = vadd.f32 0.0, %v5292
      %v5294 = vpop.f32.mrb[0].mxu0
      %v5295 = vadd.f32 0.0, %v5294
      %5296 = vmatprep.mubr.f32.mxu0 %v4687
      %5297 = vmatmul.mubr.f32.gmra.mrb[0].mxu0 %v4686
      %v5298 = vpop.f32.mrb[0].mxu0
      %v5299 = vadd.f32 0.0, %v5298
      %v5300 = vpop.f32.mrb[0].mxu0
      %v5301 = vadd.f32 0.0, %v5300
      %5302 = vmatprep.mubr.f32.mxu0 %v4699
      %5303 = vmatmul.mubr.f32.gmra.mrb[0].mxu0 %v4698
      %v5304 = vpop.f32.mrb[0].mxu0
      %v5305 = vadd.f32 0.0, %v5304
      %v5306 = vpop.f32.mrb[0].mxu0
      %v5307 = vadd.f32 0.0, %v5306
      %5308 = vmatprep.mubr.f32.mxu0 %v4711
      %5309 = vmatmul.mubr.f32.gmra.mrb[0].mxu0 %v4710
      %v5310 = vpop.f32.mrb[0].mxu0
      %v5311 = vadd.f32 0.0, %v5310
      %v5312 = vpop.f32.mrb[0].mxu0
      %v5313 = vadd.f32 0.0, %v5312
      %5314 = vmatprep.mubr.f32.mxu0 %v4723
      %5315 = vmatmul.mubr.f32.gmra.mrb[0].mxu0 %v4722
      %v5316 = vpop.f32.mrb[0].mxu0
      %v5317 = vadd.f32 0.0, %v5316
      %v5318 = vpop.f32.mrb[0].mxu0
      %v5319 = vadd.f32 0.0, %v5318
      %5320 = vmatprep.mubr.f32.mxu0 %v4735
      %5321 = vmatmul.mubr.f32.gmra.mrb[0].mxu0 %v4734
      %v5322 = vpop.f32.mrb[0].mxu0
      %v5323 = vadd.f32 0.0, %v5322
      %v5324 = vpop.f32.mrb[0].mxu0
      %v5325 = vadd.f32 0.0, %v5324
      %5326 = vmatprep.mubr.f32.mxu0 %v4747
      %5327 = vmatmul.mubr.f32.gmra.mrb[0].mxu0 %v4746
      %v5328 = vpop.f32.mrb[0].mxu0
      %v5329 = vadd.f32 0.0, %v5328
      %v5330 = vpop.f32.mrb[0].mxu0
      %v5331 = vadd.f32 0.0, %v5330
      %5332 = vmatprep.mubr.f32.mxu0 %v4759
      %5333 = vmatmul.mubr.f32.gmra.mrb[0].mxu0 %v4758
      %v5334 = vpop.f32.mrb[0].mxu0
      %v5335 = vadd.f32 0.0, %v5334
      %v5336 = vpop.f32.mrb[0].mxu0
      %v5337 = vadd.f32 0.0, %v5336
      %5338 = vmatprep.mubr.f32.mxu0 %v4771
      %5339 = vmatmul.mubr.f32.gmra.mrb[0].mxu0 %v4770
      %v5340 = vpop.f32.mrb[0].mxu0
      %v5341 = vadd.f32 0.0, %v5340
      %v5342 = vpop.f32.mrb[0].mxu0
      %v5343 = vadd.f32 0.0, %v5342
      %5344 = vmatprep.mubr.f32.mxu0 %v4783
      %5345 = vmatmul.mubr.f32.gmra.mrb[0].mxu0 %v4782
      %v5346 = vpop.f32.mrb[0].mxu0
      %v5347 = vadd.f32 0.0, %v5346
      %v5348 = vpop.f32.mrb[0].mxu0
      %v5349 = vadd.f32 0.0, %v5348
      %5350 = vmatprep.mubr.f32.mxu0 %v4795
      %5351 = vmatmul.mubr.f32.gmra.mrb[0].mxu0 %v4794
      %v5352 = vpop.f32.mrb[0].mxu0
      %v5353 = vadd.f32 0.0, %v5352
      %v5354 = vpop.f32.mrb[0].mxu0
      %v5355 = vadd.f32 0.0, %v5354
      %5356 = vmatprep.mubr.f32.mxu0 %v4807
      %5357 = vmatmul.mubr.f32.gmra.mrb[0].mxu0 %v4806
      %v5358 = vpop.f32.mrb[0].mxu0
      %v5359 = vadd.f32 0.0, %v5358
      %v5360 = vpop.f32.mrb[0].mxu0
      %v5361 = vadd.f32 0.0, %v5360
      %5362 = vdwg.mxu0
      %5363 = vmatprep.subr.mxu0 %v4883
      %5364 = vmatpush1.msra.mxu0 %v4882
      %5365 = vmatprep.subr.mxu0 %v4885
      %5366 = vmatpush1.msra.mxu0 %v4884
      %5367 = vmatprep.subr.mxu0 %v4887
      %5368 = vmatpush1.msra.mxu0 %v4886
      %5369 = vmatprep.subr.mxu0 %v4889
      %5370 = vmatpush1.msra.mxu0 %v4888
      %5371 = vmatprep.subr.mxu0 %v4891
      %5372 = vmatpush1.msra.mxu0 %v4890
      %5373 = vmatprep.subr.mxu0 %v4893
      %5374 = vmatpush1.msra.mxu0 %v4892
      %5375 = vmatprep.subr.mxu0 %v4895
      %5376 = vmatpush1.msra.mxu0 %v4894
      %5377 = vmatprep.subr.mxu0 %v4897
      %5378 = vmatpush1.msra.mxu0 %v4896
      %5379 = vmatprep.subr.mxu0 %v4899
      %5380 = vmatpush1.msra.mxu0 %v4898
      %5381 = vmatprep.subr.mxu0 %v4901
      %5382 = vmatpush1.msra.mxu0 %v4900
      %5383 = vmatprep.subr.mxu0 %v4903
      %5384 = vmatpush1.msra.mxu0 %v4902
      %5385 = vmatprep.subr.mxu0 %v4905
      %5386 = vmatpush1.msra.mxu0 %v4904
      %5387 = vmatprep.subr.mxu0 %v4907
      %5388 = vmatpush1.msra.mxu0 %v4906
      %5389 = vmatprep.subr.mxu0 %v4909
      %5390 = vmatpush1.msra.mxu0 %v4908
      %5391 = vmatprep.subr.mxu0 %v4911
      %5392 = vmatpush1.msra.mxu0 %v4910
      %5393 = vmatprep.subr.mxu0 %v4913
      %5394 = vmatpush1.msra.mxu0 %v4912
      %5395 = vmatprep.subr.mxu0 %v4915
      %5396 = vmatpush1.msra.mxu0 %v4914
      %5397 = vmatprep.subr.mxu0 %v4917
      %5398 = vmatpush1.msra.mxu0 %v4916
      %5399 = vmatprep.subr.mxu0 %v4919
      %5400 = vmatpush1.msra.mxu0 %v4918
      %5401 = vmatprep.subr.mxu0 %v4921
      %5402 = vmatpush1.msra.mxu0 %v4920
      %5403 = vmatprep.subr.mxu0 %v4923
      %5404 = vmatpush1.msra.mxu0 %v4922
      %5405 = vmatprep.subr.mxu0 %v4925
      %5406 = vmatpush1.msra.mxu0 %v4924
      %5407 = vmatprep.subr.mxu0 %v4927
      %5408 = vmatpush1.msra.mxu0 %v4926
      %5409 = vmatprep.subr.mxu0 %v4929
      %5410 = vmatpush1.msra.mxu0 %v4928
      %5411 = vmatprep.subr.mxu0 %v4931
      %5412 = vmatpush1.msra.mxu0 %v4930
      %5413 = vmatprep.subr.mxu0 %v4933
      %5414 = vmatpush1.msra.mxu0 %v4932
      %5415 = vmatprep.subr.mxu0 %v4935
      %5416 = vmatpush1.msra.mxu0 %v4934
      %5417 = vmatprep.subr.mxu0 %v4937
      %5418 = vmatpush1.msra.mxu0 %v4936
      %5419 = vmatprep.subr.mxu0 %v4939
      %5420 = vmatpush1.msra.mxu0 %v4938
      %5421 = vmatprep.subr.mxu0 %v4941
      %5422 = vmatpush1.msra.mxu0 %v4940
      %5423 = vmatprep.subr.mxu0 %v4943
      %5424 = vmatpush1.msra.mxu0 %v4942
      %5425 = vmatprep.subr.mxu0 %v4945
      %5426 = vmatpush1.msra.mxu0 %v4944
      %5427 = vmatprep.mubr.f32.mxu0 %v4629
      %5428 = vmatmul.mubr.f32.gmra.mrb[0].mxu0 %v4628
      %v5429 = vpop.f32.mrb[0].mxu0
      %v5430 = vadd.f32 %v5269, %v5429
      %v5431 = vpop.f32.mrb[0].mxu0
      %v5432 = vadd.f32 %v5271, %v5431
      %5433 = vmatprep.mubr.f32.mxu0 %v4641
      %5434 = vmatmul.mubr.f32.gmra.mrb[0].mxu0 %v4640
      %v5435 = vpop.f32.mrb[0].mxu0
      %v5436 = vadd.f32 %v5275, %v5435
      %v5437 = vpop.f32.mrb[0].mxu0
      %v5438 = vadd.f32 %v5277, %v5437
      %5439 = vmatprep.mubr.f32.mxu0 %v4653
      %5440 = vmatmul.mubr.f32.gmra.mrb[0].mxu0 %v4652
      %v5441 = vpop.f32.mrb[0].mxu0
      %v5442 = vadd.f32 %v5281, %v5441
      %v5443 = vpop.f32.mrb[0].mxu0
      %v5444 = vadd.f32 %v5283, %v5443
      %5445 = vmatprep.mubr.f32.mxu0 %v4665
      %5446 = vmatmul.mubr.f32.gmra.mrb[0].mxu0 %v4664
      %v5447 = vpop.f32.mrb[0].mxu0
      %v5448 = vadd.f32 %v5287, %v5447
      %v5449 = vpop.f32.mrb[0].mxu0
      %v5450 = vadd.f32 %v5289, %v5449
      %5451 = vmatprep.mubr.f32.mxu0 %v4677
      %5452 = vmatmul.mubr.f32.gmra.mrb[0].mxu0 %v4676
      %v5453 = vpop.f32.mrb[0].mxu0
      %v5454 = vadd.f32 %v5293, %v5453
      %v5455 = vpop.f32.mrb[0].mxu0
      %v5456 = vadd.f32 %v5295, %v5455
      %5457 = vmatprep.mubr.f32.mxu0 %v4689
      %5458 = vmatmul.mubr.f32.gmra.mrb[0].mxu0 %v4688
      %v5459 = vpop.f32.mrb[0].mxu0
      %v5460 = vadd.f32 %v5299, %v5459
      %v5461 = vpop.f32.mrb[0].mxu0
      %v5462 = vadd.f32 %v5301, %v5461
      %5463 = vmatprep.mubr.f32.mxu0 %v4701
      %5464 = vmatmul.mubr.f32.gmra.mrb[0].mxu0 %v4700
      %v5465 = vpop.f32.mrb[0].mxu0
      %v5466 = vadd.f32 %v5305, %v5465
      %v5467 = vpop.f32.mrb[0].mxu0
      %v5468 = vadd.f32 %v5307, %v5467
      %5469 = vmatprep.mubr.f32.mxu0 %v4713
      %5470 = vmatmul.mubr.f32.gmra.mrb[0].mxu0 %v4712
      %v5471 = vpop.f32.mrb[0].mxu0
      %v5472 = vadd.f32 %v5311, %v5471
      %v5473 = vpop.f32.mrb[0].mxu0
      %v5474 = vadd.f32 %v5313, %v5473
      %5475 = vmatprep.mubr.f32.mxu0 %v4725
      %5476 = vmatmul.mubr.f32.gmra.mrb[0].mxu0 %v4724
      %v5477 = vpop.f32.mrb[0].mxu0
      %v5478 = vadd.f32 %v5317, %v5477
      %v5479 = vpop.f32.mrb[0].mxu0
      %v5480 = vadd.f32 %v5319, %v5479
      %5481 = vmatprep.mubr.f32.mxu0 %v4737
      %5482 = vmatmul.mubr.f32.gmra.mrb[0].mxu0 %v4736
      %v5483 = vpop.f32.mrb[0].mxu0
      %v5484 = vadd.f32 %v5323, %v5483
      %v5485 = vpop.f32.mrb[0].mxu0
      %v5486 = vadd.f32 %v5325, %v5485
      %5487 = vmatprep.mubr.f32.mxu0 %v4749
      %5488 = vmatmul.mubr.f32.gmra.mrb[0].mxu0 %v4748
      %v5489 = vpop.f32.mrb[0].mxu0
      %v5490 = vadd.f32 %v5329, %v5489
      %v5491 = vpop.f32.mrb[0].mxu0
      %v5492 = vadd.f32 %v5331, %v5491
      %5493 = vmatprep.mubr.f32.mxu0 %v4761
      %5494 = vmatmul.mubr.f32.gmra.mrb[0].mxu0 %v4760
      %v5495 = vpop.f32.mrb[0].mxu0
      %v5496 = vadd.f32 %v5335, %v5495
      %v5497 = vpop.f32.mrb[0].mxu0
      %v5498 = vadd.f32 %v5337, %v5497
      %5499 = vmatprep.mubr.f32.mxu0 %v4773
      %5500 = vmatmul.mubr.f32.gmra.mrb[0].mxu0 %v4772
      %v5501 = vpop.f32.mrb[0].mxu0
      %v5502 = vadd.f32 %v5341, %v5501
      %v5503 = vpop.f32.mrb[0].mxu0
      %v5504 = vadd.f32 %v5343, %v5503
      %5505 = vmatprep.mubr.f32.mxu0 %v4785
      %5506 = vmatmul.mubr.f32.gmra.mrb[0].mxu0 %v4784
      %v5507 = vpop.f32.mrb[0].mxu0
      %v5508 = vadd.f32 %v5347, %v5507
      %v5509 = vpop.f32.mrb[0].mxu0
      %v5510 = vadd.f32 %v5349, %v5509
      %5511 = vmatprep.mubr.f32.mxu0 %v4797
      %5512 = vmatmul.mubr.f32.gmra.mrb[0].mxu0 %v4796
      %v5513 = vpop.f32.mrb[0].mxu0
      %v5514 = vadd.f32 %v5353, %v5513
      %v5515 = vpop.f32.mrb[0].mxu0
      %v5516 = vadd.f32 %v5355, %v5515
      %5517 = vmatprep.mubr.f32.mxu0 %v4809
      %5518 = vmatmul.mubr.f32.gmra.mrb[0].mxu0 %v4808
      %v5519 = vpop.f32.mrb[0].mxu0
      %v5520 = vadd.f32 %v5359, %v5519
      %v5521 = vpop.f32.mrb[0].mxu0
      %v5522 = vadd.f32 %v5361, %v5521
      %5523 = vdwg.mxu0
      %5524 = vmatprep.subr.mxu0 %v4947
      %5525 = vmatpush1.msra.mxu0 %v4946
      %5526 = vmatprep.subr.mxu0 %v4949
      %5527 = vmatpush1.msra.mxu0 %v4948
      %5528 = vmatprep.subr.mxu0 %v4951
      %5529 = vmatpush1.msra.mxu0 %v4950
      %5530 = vmatprep.subr.mxu0 %v4953
      %5531 = vmatpush1.msra.mxu0 %v4952
      %5532 = vmatprep.subr.mxu0 %v4955
      %5533 = vmatpush1.msra.mxu0 %v4954
      %5534 = vmatprep.subr.mxu0 %v4957
      %5535 = vmatpush1.msra.mxu0 %v4956
      %5536 = vmatprep.subr.mxu0 %v4959
      %5537 = vmatpush1.msra.mxu0 %v4958
      %5538 = vmatprep.subr.mxu0 %v4961
      %5539 = vmatpush1.msra.mxu0 %v4960
      %5540 = vmatprep.subr.mxu0 %v4963
      %5541 = vmatpush1.msra.mxu0 %v4962
      %5542 = vmatprep.subr.mxu0 %v4965
      %5543 = vmatpush1.msra.mxu0 %v4964
      %5544 = vmatprep.subr.mxu0 %v4967
      %5545 = vmatpush1.msra.mxu0 %v4966
      %5546 = vmatprep.subr.mxu0 %v4969
      %5547 = vmatpush1.msra.mxu0 %v4968
      %5548 = vmatprep.subr.mxu0 %v4971
      %5549 = vmatpush1.msra.mxu0 %v4970
      %5550 = vmatprep.subr.mxu0 %v4973
      %5551 = vmatpush1.msra.mxu0 %v4972
      %5552 = vmatprep.subr.mxu0 %v4975
      %5553 = vmatpush1.msra.mxu0 %v4974
      %5554 = vmatprep.subr.mxu0 %v4977
      %5555 = vmatpush1.msra.mxu0 %v4976
      %5556 = vmatprep.subr.mxu0 %v4979
      %5557 = vmatpush1.msra.mxu0 %v4978
      %5558 = vmatprep.subr.mxu0 %v4981
      %5559 = vmatpush1.msra.mxu0 %v4980
      %5560 = vmatprep.subr.mxu0 %v4983
      %5561 = vmatpush1.msra.mxu0 %v4982
      %5562 = vmatprep.subr.mxu0 %v4985
      %5563 = vmatpush1.msra.mxu0 %v4984
      %5564 = vmatprep.subr.mxu0 %v4987
      %5565 = vmatpush1.msra.mxu0 %v4986
      %5566 = vmatprep.subr.mxu0 %v4989
      %5567 = vmatpush1.msra.mxu0 %v4988
      %5568 = vmatprep.subr.mxu0 %v4991
      %5569 = vmatpush1.msra.mxu0 %v4990
      %5570 = vmatprep.subr.mxu0 %v4993
      %5571 = vmatpush1.msra.mxu0 %v4992
      %5572 = vmatprep.subr.mxu0 %v4995
      %5573 = vmatpush1.msra.mxu0 %v4994
      %5574 = vmatprep.subr.mxu0 %v4997
      %5575 = vmatpush1.msra.mxu0 %v4996
      %5576 = vmatprep.subr.mxu0 %v4999
      %5577 = vmatpush1.msra.mxu0 %v4998
      %5578 = vmatprep.subr.mxu0 %v5001
      %5579 = vmatpush1.msra.mxu0 %v5000
      %5580 = vmatprep.subr.mxu0 %v5003
      %5581 = vmatpush1.msra.mxu0 %v5002
      %5582 = vmatprep.subr.mxu0 %v5005
      %5583 = vmatpush1.msra.mxu0 %v5004
      %5584 = vmatprep.subr.mxu0 %v5007
      %5585 = vmatpush1.msra.mxu0 %v5006
      %5586 = vmatprep.subr.mxu0 %v5009
      %5587 = vmatpush1.msra.mxu0 %v5008
      %5588 = vmatprep.mubr.f32.mxu0 %v4631
      %5589 = vmatmul.mubr.f32.gmra.mrb[0].mxu0 %v4630
      %v5590 = vpop.f32.mrb[0].mxu0
      %v5591 = vadd.f32 %v5430, %v5590
      %v5592 = vpop.f32.mrb[0].mxu0
      %v5593 = vadd.f32 %v5432, %v5592
      %5594 = vmatprep.mubr.f32.mxu0 %v4643
      %5595 = vmatmul.mubr.f32.gmra.mrb[0].mxu0 %v4642
      %v5596 = vpop.f32.mrb[0].mxu0
      %v5597 = vadd.f32 %v5436, %v5596
      %v5598 = vpop.f32.mrb[0].mxu0
      %v5599 = vadd.f32 %v5438, %v5598
      %5600 = vmatprep.mubr.f32.mxu0 %v4655
      %5601 = vmatmul.mubr.f32.gmra.mrb[0].mxu0 %v4654
      %v5602 = vpop.f32.mrb[0].mxu0
      %v5603 = vadd.f32 %v5442, %v5602
      %v5604 = vpop.f32.mrb[0].mxu0
      %v5605 = vadd.f32 %v5444, %v5604
      %5606 = vmatprep.mubr.f32.mxu0 %v4667
      %5607 = vmatmul.mubr.f32.gmra.mrb[0].mxu0 %v4666
      %v5608 = vpop.f32.mrb[0].mxu0
      %v5609 = vadd.f32 %v5448, %v5608
      %v5610 = vpop.f32.mrb[0].mxu0
      %v5611 = vadd.f32 %v5450, %v5610
      %5612 = vmatprep.mubr.f32.mxu0 %v4679
      %5613 = vmatmul.mubr.f32.gmra.mrb[0].mxu0 %v4678
      %v5614 = vpop.f32.mrb[0].mxu0
      %v5615 = vadd.f32 %v5454, %v5614
      %v5616 = vpop.f32.mrb[0].mxu0
      %v5617 = vadd.f32 %v5456, %v5616
      %5618 = vmatprep.mubr.f32.mxu0 %v4691
      %5619 = vmatmul.mubr.f32.gmra.mrb[0].mxu0 %v4690
      %v5620 = vpop.f32.mrb[0].mxu0
      %v5621 = vadd.f32 %v5460, %v5620
      %v5622 = vpop.f32.mrb[0].mxu0
      %v5623 = vadd.f32 %v5462, %v5622
      %5624 = vmatprep.mubr.f32.mxu0 %v4703
      %5625 = vmatmul.mubr.f32.gmra.mrb[0].mxu0 %v4702
      %v5626 = vpop.f32.mrb[0].mxu0
      %v5627 = vadd.f32 %v5466, %v5626
      %v5628 = vpop.f32.mrb[0].mxu0
      %v5629 = vadd.f32 %v5468, %v5628
      %5630 = vmatprep.mubr.f32.mxu0 %v4715
      %5631 = vmatmul.mubr.f32.gmra.mrb[0].mxu0 %v4714
      %v5632 = vpop.f32.mrb[0].mxu0
      %v5633 = vadd.f32 %v5472, %v5632
      %v5634 = vpop.f32.mrb[0].mxu0
      %v5635 = vadd.f32 %v5474, %v5634
      %5636 = vmatprep.mubr.f32.mxu0 %v4727
      %5637 = vmatmul.mubr.f32.gmra.mrb[0].mxu0 %v4726
      %v5638 = vpop.f32.mrb[0].mxu0
      %v5639 = vadd.f32 %v5478, %v5638
      %v5640 = vpop.f32.mrb[0].mxu0
      %v5641 = vadd.f32 %v5480, %v5640
      %5642 = vmatprep.mubr.f32.mxu0 %v4739
      %5643 = vmatmul.mubr.f32.gmra.mrb[0].mxu0 %v4738
      %v5644 = vpop.f32.mrb[0].mxu0
      %v5645 = vadd.f32 %v5484, %v5644
      %v5646 = vpop.f32.mrb[0].mxu0
      %v5647 = vadd.f32 %v5486, %v5646
      %5648 = vmatprep.mubr.f32.mxu0 %v4751
      %5649 = vmatmul.mubr.f32.gmra.mrb[0].mxu0 %v4750
      %v5650 = vpop.f32.mrb[0].mxu0
      %v5651 = vadd.f32 %v5490, %v5650
      %v5652 = vpop.f32.mrb[0].mxu0
      %v5653 = vadd.f32 %v5492, %v5652
      %5654 = vmatprep.mubr.f32.mxu0 %v4763
      %5655 = vmatmul.mubr.f32.gmra.mrb[0].mxu0 %v4762
      %v5656 = vpop.f32.mrb[0].mxu0
      %v5657 = vadd.f32 %v5496, %v5656
      %v5658 = vpop.f32.mrb[0].mxu0
      %v5659 = vadd.f32 %v5498, %v5658
      %5660 = vmatprep.mubr.f32.mxu0 %v4775
      %5661 = vmatmul.mubr.f32.gmra.mrb[0].mxu0 %v4774
      %v5662 = vpop.f32.mrb[0].mxu0
      %v5663 = vadd.f32 %v5502, %v5662
      %v5664 = vpop.f32.mrb[0].mxu0
      %v5665 = vadd.f32 %v5504, %v5664
      %5666 = vmatprep.mubr.f32.mxu0 %v4787
      %5667 = vmatmul.mubr.f32.gmra.mrb[0].mxu0 %v4786
      %v5668 = vpop.f32.mrb[0].mxu0
      %v5669 = vadd.f32 %v5508, %v5668
      %v5670 = vpop.f32.mrb[0].mxu0
      %v5671 = vadd.f32 %v5510, %v5670
      %5672 = vmatprep.mubr.f32.mxu0 %v4799
      %5673 = vmatmul.mubr.f32.gmra.mrb[0].mxu0 %v4798
      %v5674 = vpop.f32.mrb[0].mxu0
      %v5675 = vadd.f32 %v5514, %v5674
      %v5676 = vpop.f32.mrb[0].mxu0
      %v5677 = vadd.f32 %v5516, %v5676
      %5678 = vmatprep.mubr.f32.mxu0 %v4811
      %5679 = vmatmul.mubr.f32.gmra.mrb[0].mxu0 %v4810
      %v5680 = vpop.f32.mrb[0].mxu0
      %v5681 = vadd.f32 %v5520, %v5680
      %v5682 = vpop.f32.mrb[0].mxu0
      %v5683 = vadd.f32 %v5522, %v5682
      %5684 = vdwg.mxu0
      %5685 = vmatprep.subr.mxu0 %v5011
      %5686 = vmatpush1.msra.mxu0 %v5010
      %5687 = vmatprep.subr.mxu0 %v5013
      %5688 = vmatpush1.msra.mxu0 %v5012
      %5689 = vmatprep.subr.mxu0 %v5015
      %5690 = vmatpush1.msra.mxu0 %v5014
      %5691 = vmatprep.subr.mxu0 %v5017
      %5692 = vmatpush1.msra.mxu0 %v5016
      %5693 = vmatprep.subr.mxu0 %v5019
      %5694 = vmatpush1.msra.mxu0 %v5018
      %5695 = vmatprep.subr.mxu0 %v5021
      %5696 = vmatpush1.msra.mxu0 %v5020
      %5697 = vmatprep.subr.mxu0 %v5023
      %5698 = vmatpush1.msra.mxu0 %v5022
      %5699 = vmatprep.subr.mxu0 %v5025
      %5700 = vmatpush1.msra.mxu0 %v5024
      %5701 = vmatprep.subr.mxu0 %v5027
      %5702 = vmatpush1.msra.mxu0 %v5026
      %5703 = vmatprep.subr.mxu0 %v5029
      %5704 = vmatpush1.msra.mxu0 %v5028
      %5705 = vmatprep.subr.mxu0 %v5031
      %5706 = vmatpush1.msra.mxu0 %v5030
      %5707 = vmatprep.subr.mxu0 %v5033
      %5708 = vmatpush1.msra.mxu0 %v5032
      %5709 = vmatprep.subr.mxu0 %v5035
      %5710 = vmatpush1.msra.mxu0 %v5034
      %5711 = vmatprep.subr.mxu0 %v5037
      %5712 = vmatpush1.msra.mxu0 %v5036
      %5713 = vmatprep.subr.mxu0 %v5039
      %5714 = vmatpush1.msra.mxu0 %v5038
      %5715 = vmatprep.subr.mxu0 %v5041
      %5716 = vmatpush1.msra.mxu0 %v5040
      %5717 = vmatprep.subr.mxu0 %v5043
      %5718 = vmatpush1.msra.mxu0 %v5042
      %5719 = vmatprep.subr.mxu0 %v5045
      %5720 = vmatpush1.msra.mxu0 %v5044
      %5721 = vmatprep.subr.mxu0 %v5047
      %5722 = vmatpush1.msra.mxu0 %v5046
      %5723 = vmatprep.subr.mxu0 %v5049
      %5724 = vmatpush1.msra.mxu0 %v5048
      %5725 = vmatprep.subr.mxu0 %v5051
      %5726 = vmatpush1.msra.mxu0 %v5050
      %5727 = vmatprep.subr.mxu0 %v5053
      %5728 = vmatpush1.msra.mxu0 %v5052
      %5729 = vmatprep.subr.mxu0 %v5055
      %5730 = vmatpush1.msra.mxu0 %v5054
      %5731 = vmatprep.subr.mxu0 %v5057
      %5732 = vmatpush1.msra.mxu0 %v5056
      %5733 = vmatprep.subr.mxu0 %v5059
      %5734 = vmatpush1.msra.mxu0 %v5058
      %5735 = vmatprep.subr.mxu0 %v5061
      %5736 = vmatpush1.msra.mxu0 %v5060
      %5737 = vmatprep.subr.mxu0 %v5063
      %5738 = vmatpush1.msra.mxu0 %v5062
      %5739 = vmatprep.subr.mxu0 %v5065
      %5740 = vmatpush1.msra.mxu0 %v5064
      %5741 = vmatprep.subr.mxu0 %v5067
      %5742 = vmatpush1.msra.mxu0 %v5066
      %5743 = vmatprep.subr.mxu0 %v5069
      %5744 = vmatpush1.msra.mxu0 %v5068
      %5745 = vmatprep.subr.mxu0 %v5071
      %5746 = vmatpush1.msra.mxu0 %v5070
      %5747 = vmatprep.subr.mxu0 %v5073
      %5748 = vmatpush1.msra.mxu0 %v5072
      %5749 = vmatprep.mubr.f32.mxu0 %v4633
      %5750 = vmatmul.mubr.f32.gmra.mrb[0].mxu0 %v4632
      %v5751 = vpop.f32.mrb[0].mxu0
      %v5752 = vadd.f32 %v5591, %v5751
      %v5753 = vpop.f32.mrb[0].mxu0
      %v5754 = vadd.f32 %v5593, %v5753
      %5755 = vmatprep.mubr.f32.mxu0 %v4645
      %5756 = vmatmul.mubr.f32.gmra.mrb[0].mxu0 %v4644
      %v5757 = vpop.f32.mrb[0].mxu0
      %v5758 = vadd.f32 %v5597, %v5757
      %v5759 = vpop.f32.mrb[0].mxu0
      %v5760 = vadd.f32 %v5599, %v5759
      %5761 = vmatprep.mubr.f32.mxu0 %v4657
      %5762 = vmatmul.mubr.f32.gmra.mrb[0].mxu0 %v4656
      %v5763 = vpop.f32.mrb[0].mxu0
      %v5764 = vadd.f32 %v5603, %v5763
      %v5765 = vpop.f32.mrb[0].mxu0
      %v5766 = vadd.f32 %v5605, %v5765
      %5767 = vmatprep.mubr.f32.mxu0 %v4669
      %5768 = vmatmul.mubr.f32.gmra.mrb[0].mxu0 %v4668
      %v5769 = vpop.f32.mrb[0].mxu0
      %v5770 = vadd.f32 %v5609, %v5769
      %v5771 = vpop.f32.mrb[0].mxu0
      %v5772 = vadd.f32 %v5611, %v5771
      %5773 = vmatprep.mubr.f32.mxu0 %v4681
      %5774 = vmatmul.mubr.f32.gmra.mrb[0].mxu0 %v4680
      %v5775 = vpop.f32.mrb[0].mxu0
      %v5776 = vadd.f32 %v5615, %v5775
      %v5777 = vpop.f32.mrb[0].mxu0
      %v5778 = vadd.f32 %v5617, %v5777
      %5779 = vmatprep.mubr.f32.mxu0 %v4693
      %5780 = vmatmul.mubr.f32.gmra.mrb[0].mxu0 %v4692
      %v5781 = vpop.f32.mrb[0].mxu0
      %v5782 = vadd.f32 %v5621, %v5781
      %v5783 = vpop.f32.mrb[0].mxu0
      %v5784 = vadd.f32 %v5623, %v5783
      %5785 = vmatprep.mubr.f32.mxu0 %v4705
      %5786 = vmatmul.mubr.f32.gmra.mrb[0].mxu0 %v4704
      %v5787 = vpop.f32.mrb[0].mxu0
      %v5788 = vadd.f32 %v5627, %v5787
      %v5789 = vpop.f32.mrb[0].mxu0
      %v5790 = vadd.f32 %v5629, %v5789
      %5791 = vmatprep.mubr.f32.mxu0 %v4717
      %5792 = vmatmul.mubr.f32.gmra.mrb[0].mxu0 %v4716
      %v5793 = vpop.f32.mrb[0].mxu0
      %v5794 = vadd.f32 %v5633, %v5793
      %v5795 = vpop.f32.mrb[0].mxu0
      %v5796 = vadd.f32 %v5635, %v5795
      %5797 = vmatprep.mubr.f32.mxu0 %v4729
      %5798 = vmatmul.mubr.f32.gmra.mrb[0].mxu0 %v4728
      %v5799 = vpop.f32.mrb[0].mxu0
      %v5800 = vadd.f32 %v5639, %v5799
      %v5801 = vpop.f32.mrb[0].mxu0
      %v5802 = vadd.f32 %v5641, %v5801
      %5803 = vmatprep.mubr.f32.mxu0 %v4741
      %5804 = vmatmul.mubr.f32.gmra.mrb[0].mxu0 %v4740
      %v5805 = vpop.f32.mrb[0].mxu0
      %v5806 = vadd.f32 %v5645, %v5805
      %v5807 = vpop.f32.mrb[0].mxu0
      %v5808 = vadd.f32 %v5647, %v5807
      %5809 = vmatprep.mubr.f32.mxu0 %v4753
      %5810 = vmatmul.mubr.f32.gmra.mrb[0].mxu0 %v4752
      %v5811 = vpop.f32.mrb[0].mxu0
      %v5812 = vadd.f32 %v5651, %v5811
      %v5813 = vpop.f32.mrb[0].mxu0
      %v5814 = vadd.f32 %v5653, %v5813
      %5815 = vmatprep.mubr.f32.mxu0 %v4765
      %5816 = vmatmul.mubr.f32.gmra.mrb[0].mxu0 %v4764
      %v5817 = vpop.f32.mrb[0].mxu0
      %v5818 = vadd.f32 %v5657, %v5817
      %v5819 = vpop.f32.mrb[0].mxu0
      %v5820 = vadd.f32 %v5659, %v5819
      %5821 = vmatprep.mubr.f32.mxu0 %v4777
      %5822 = vmatmul.mubr.f32.gmra.mrb[0].mxu0 %v4776
      %v5823 = vpop.f32.mrb[0].mxu0
      %v5824 = vadd.f32 %v5663, %v5823
      %v5825 = vpop.f32.mrb[0].mxu0
      %v5826 = vadd.f32 %v5665, %v5825
      %5827 = vmatprep.mubr.f32.mxu0 %v4789
      %5828 = vmatmul.mubr.f32.gmra.mrb[0].mxu0 %v4788
      %v5829 = vpop.f32.mrb[0].mxu0
      %v5830 = vadd.f32 %v5669, %v5829
      %v5831 = vpop.f32.mrb[0].mxu0
      %v5832 = vadd.f32 %v5671, %v5831
      %5833 = vmatprep.mubr.f32.mxu0 %v4801
      %5834 = vmatmul.mubr.f32.gmra.mrb[0].mxu0 %v4800
      %v5835 = vpop.f32.mrb[0].mxu0
      %v5836 = vadd.f32 %v5675, %v5835
      %v5837 = vpop.f32.mrb[0].mxu0
      %v5838 = vadd.f32 %v5677, %v5837
      %5839 = vmatprep.mubr.f32.mxu0 %v4813
      %5840 = vmatmul.mubr.f32.gmra.mrb[0].mxu0 %v4812
      %v5841 = vpop.f32.mrb[0].mxu0
      %v5842 = vadd.f32 %v5681, %v5841
      %v5843 = vpop.f32.mrb[0].mxu0
      %v5844 = vadd.f32 %v5683, %v5843
      %5845 = vdwg.mxu0
      %5846 = vmatprep.subr.mxu0 %v5075
      %5847 = vmatpush1.msra.mxu0 %v5074
      %5848 = vmatprep.subr.mxu0 %v5077
      %5849 = vmatpush1.msra.mxu0 %v5076
      %5850 = vmatprep.subr.mxu0 %v5079
      %5851 = vmatpush1.msra.mxu0 %v5078
      %5852 = vmatprep.subr.mxu0 %v5081
      %5853 = vmatpush1.msra.mxu0 %v5080
      %5854 = vmatprep.subr.mxu0 %v5083
      %5855 = vmatpush1.msra.mxu0 %v5082
      %5856 = vmatprep.subr.mxu0 %v5085
      %5857 = vmatpush1.msra.mxu0 %v5084
      %5858 = vmatprep.subr.mxu0 %v5087
      %5859 = vmatpush1.msra.mxu0 %v5086
      %5860 = vmatprep.subr.mxu0 %v5089
      %5861 = vmatpush1.msra.mxu0 %v5088
      %5862 = vmatprep.subr.mxu0 %v5091
      %5863 = vmatpush1.msra.mxu0 %v5090
      %5864 = vmatprep.subr.mxu0 %v5093
      %5865 = vmatpush1.msra.mxu0 %v5092
      %5866 = vmatprep.subr.mxu0 %v5095
      %5867 = vmatpush1.msra.mxu0 %v5094
      %5868 = vmatprep.subr.mxu0 %v5097
      %5869 = vmatpush1.msra.mxu0 %v5096
      %5870 = vmatprep.subr.mxu0 %v5099
      %5871 = vmatpush1.msra.mxu0 %v5098
      %5872 = vmatprep.subr.mxu0 %v5101
      %5873 = vmatpush1.msra.mxu0 %v5100
      %5874 = vmatprep.subr.mxu0 %v5103
      %5875 = vmatpush1.msra.mxu0 %v5102
      %5876 = vmatprep.subr.mxu0 %v5105
      %5877 = vmatpush1.msra.mxu0 %v5104
      %5878 = vmatprep.subr.mxu0 %v5107
      %5879 = vmatpush1.msra.mxu0 %v5106
      %5880 = vmatprep.subr.mxu0 %v5109
      %5881 = vmatpush1.msra.mxu0 %v5108
      %5882 = vmatprep.subr.mxu0 %v5111
      %5883 = vmatpush1.msra.mxu0 %v5110
      %5884 = vmatprep.subr.mxu0 %v5113
      %5885 = vmatpush1.msra.mxu0 %v5112
      %5886 = vmatprep.subr.mxu0 %v5115
      %5887 = vmatpush1.msra.mxu0 %v5114
      %5888 = vmatprep.subr.mxu0 %v5117
      %5889 = vmatpush1.msra.mxu0 %v5116
      %5890 = vmatprep.subr.mxu0 %v5119
      %5891 = vmatpush1.msra.mxu0 %v5118
      %5892 = vmatprep.subr.mxu0 %v5121
      %5893 = vmatpush1.msra.mxu0 %v5120
      %5894 = vmatprep.subr.mxu0 %v5123
      %5895 = vmatpush1.msra.mxu0 %v5122
      %5896 = vmatprep.subr.mxu0 %v5125
      %5897 = vmatpush1.msra.mxu0 %v5124
      %5898 = vmatprep.subr.mxu0 %v5127
      %5899 = vmatpush1.msra.mxu0 %v5126
      %5900 = vmatprep.subr.mxu0 %v5129
      %5901 = vmatpush1.msra.mxu0 %v5128
      %5902 = vmatprep.subr.mxu0 %v5131
      %5903 = vmatpush1.msra.mxu0 %v5130
      %5904 = vmatprep.subr.mxu0 %v5133
      %5905 = vmatpush1.msra.mxu0 %v5132
      %5906 = vmatprep.subr.mxu0 %v5135
      %5907 = vmatpush1.msra.mxu0 %v5134
      %5908 = vmatprep.subr.mxu0 %v5137
      %5909 = vmatpush1.msra.mxu0 %v5136
      %5910 = vmatprep.mubr.f32.mxu0 %v4635
      %5911 = vmatmul.mubr.f32.gmra.mrb[0].mxu0 %v4634
      %v5912 = vpop.f32.mrb[0].mxu0
      %v5913 = vadd.f32 %v5752, %v5912
      %v5914 = vpop.f32.mrb[0].mxu0
      %v5915 = vadd.f32 %v5754, %v5914
      %5916 = vmatprep.mubr.f32.mxu0 %v4647
      %5917 = vmatmul.mubr.f32.gmra.mrb[0].mxu0 %v4646
      %v5918 = vpop.f32.mrb[0].mxu0
      %v5919 = vadd.f32 %v5758, %v5918
      %v5920 = vpop.f32.mrb[0].mxu0
      %v5921 = vadd.f32 %v5760, %v5920
      %5922 = vmatprep.mubr.f32.mxu0 %v4659
      %5923 = vmatmul.mubr.f32.gmra.mrb[0].mxu0 %v4658
      %v5924 = vpop.f32.mrb[0].mxu0
      %v5925 = vadd.f32 %v5764, %v5924
      %v5926 = vpop.f32.mrb[0].mxu0
      %v5927 = vadd.f32 %v5766, %v5926
      %5928 = vmatprep.mubr.f32.mxu0 %v4671
      %5929 = vmatmul.mubr.f32.gmra.mrb[0].mxu0 %v4670
      %v5930 = vpop.f32.mrb[0].mxu0
      %v5931 = vadd.f32 %v5770, %v5930
      %v5932 = vpop.f32.mrb[0].mxu0
      %v5933 = vadd.f32 %v5772, %v5932
      %5934 = vmatprep.mubr.f32.mxu0 %v4683
      %5935 = vmatmul.mubr.f32.gmra.mrb[0].mxu0 %v4682
      %v5936 = vpop.f32.mrb[0].mxu0
      %v5937 = vadd.f32 %v5776, %v5936
      %v5938 = vpop.f32.mrb[0].mxu0
      %v5939 = vadd.f32 %v5778, %v5938
      %5940 = vmatprep.mubr.f32.mxu0 %v4695
      %5941 = vmatmul.mubr.f32.gmra.mrb[0].mxu0 %v4694
      %v5942 = vpop.f32.mrb[0].mxu0
      %v5943 = vadd.f32 %v5782, %v5942
      %v5944 = vpop.f32.mrb[0].mxu0
      %v5945 = vadd.f32 %v5784, %v5944
      %5946 = vmatprep.mubr.f32.mxu0 %v4707
      %5947 = vmatmul.mubr.f32.gmra.mrb[0].mxu0 %v4706
      %v5948 = vpop.f32.mrb[0].mxu0
      %v5949 = vadd.f32 %v5788, %v5948
      %v5950 = vpop.f32.mrb[0].mxu0
      %v5951 = vadd.f32 %v5790, %v5950
      %5952 = vmatprep.mubr.f32.mxu0 %v4719
      %5953 = vmatmul.mubr.f32.gmra.mrb[0].mxu0 %v4718
      %v5954 = vpop.f32.mrb[0].mxu0
      %v5955 = vadd.f32 %v5794, %v5954
      %v5956 = vpop.f32.mrb[0].mxu0
      %v5957 = vadd.f32 %v5796, %v5956
      %5958 = vmatprep.mubr.f32.mxu0 %v4731
      %5959 = vmatmul.mubr.f32.gmra.mrb[0].mxu0 %v4730
      %v5960 = vpop.f32.mrb[0].mxu0
      %v5961 = vadd.f32 %v5800, %v5960
      %v5962 = vpop.f32.mrb[0].mxu0
      %v5963 = vadd.f32 %v5802, %v5962
      %5964 = vmatprep.mubr.f32.mxu0 %v4743
      %5965 = vmatmul.mubr.f32.gmra.mrb[0].mxu0 %v4742
      %v5966 = vpop.f32.mrb[0].mxu0
      %v5967 = vadd.f32 %v5806, %v5966
      %v5968 = vpop.f32.mrb[0].mxu0
      %v5969 = vadd.f32 %v5808, %v5968
      %5970 = vmatprep.mubr.f32.mxu0 %v4755
      %5971 = vmatmul.mubr.f32.gmra.mrb[0].mxu0 %v4754
      %v5972 = vpop.f32.mrb[0].mxu0
      %v5973 = vadd.f32 %v5812, %v5972
      %v5974 = vpop.f32.mrb[0].mxu0
      %v5975 = vadd.f32 %v5814, %v5974
      %5976 = vmatprep.mubr.f32.mxu0 %v4767
      %5977 = vmatmul.mubr.f32.gmra.mrb[0].mxu0 %v4766
      %v5978 = vpop.f32.mrb[0].mxu0
      %v5979 = vadd.f32 %v5818, %v5978
      %v5980 = vpop.f32.mrb[0].mxu0
      %v5981 = vadd.f32 %v5820, %v5980
      %5982 = vmatprep.mubr.f32.mxu0 %v4779
      %5983 = vmatmul.mubr.f32.gmra.mrb[0].mxu0 %v4778
      %v5984 = vpop.f32.mrb[0].mxu0
      %v5985 = vadd.f32 %v5824, %v5984
      %v5986 = vpop.f32.mrb[0].mxu0
      %v5987 = vadd.f32 %v5826, %v5986
      %5988 = vmatprep.mubr.f32.mxu0 %v4791
      %5989 = vmatmul.mubr.f32.gmra.mrb[0].mxu0 %v4790
      %v5990 = vpop.f32.mrb[0].mxu0
      %v5991 = vadd.f32 %v5830, %v5990
      %v5992 = vpop.f32.mrb[0].mxu0
      %v5993 = vadd.f32 %v5832, %v5992
      %5994 = vmatprep.mubr.f32.mxu0 %v4803
      %5995 = vmatmul.mubr.f32.gmra.mrb[0].mxu0 %v4802
      %v5996 = vpop.f32.mrb[0].mxu0
      %v5997 = vadd.f32 %v5836, %v5996
      %v5998 = vpop.f32.mrb[0].mxu0
      %v5999 = vadd.f32 %v5838, %v5998
      %6000 = vmatprep.mubr.f32.mxu0 %v4815
      %6001 = vmatmul.mubr.f32.gmra.mrb[0].mxu0 %v4814
      %v6002 = vpop.f32.mrb[0].mxu0
      %v6003 = vadd.f32 %v5842, %v6002
      %v6004 = vpop.f32.mrb[0].mxu0
      %v6005 = vadd.f32 %v5844, %v6004
      %6006 = vdwg.mxu0
      %6007 = vmatprep.subr.mxu0 %v5139
      %6008 = vmatpush1.msra.mxu0 %v5138
      %6009 = vmatprep.subr.mxu0 %v5141
      %6010 = vmatpush1.msra.mxu0 %v5140
      %6011 = vmatprep.subr.mxu0 %v5143
      %6012 = vmatpush1.msra.mxu0 %v5142
      %6013 = vmatprep.subr.mxu0 %v5145
      %6014 = vmatpush1.msra.mxu0 %v5144
      %6015 = vmatprep.subr.mxu0 %v5147
      %6016 = vmatpush1.msra.mxu0 %v5146
      %6017 = vmatprep.subr.mxu0 %v5149
      %6018 = vmatpush1.msra.mxu0 %v5148
      %6019 = vmatprep.subr.mxu0 %v5151
      %6020 = vmatpush1.msra.mxu0 %v5150
      %6021 = vmatprep.subr.mxu0 %v5153
      %6022 = vmatpush1.msra.mxu0 %v5152
      %6023 = vmatprep.subr.mxu0 %v5155
      %6024 = vmatpush1.msra.mxu0 %v5154
      %6025 = vmatprep.subr.mxu0 %v5157
      %6026 = vmatpush1.msra.mxu0 %v5156
      %6027 = vmatprep.subr.mxu0 %v5159
      %6028 = vmatpush1.msra.mxu0 %v5158
      %6029 = vmatprep.subr.mxu0 %v5161
      %6030 = vmatpush1.msra.mxu0 %v5160
      %6031 = vmatprep.subr.mxu0 %v5163
      %6032 = vmatpush1.msra.mxu0 %v5162
      %6033 = vmatprep.subr.mxu0 %v5165
      %6034 = vmatpush1.msra.mxu0 %v5164
      %6035 = vmatprep.subr.mxu0 %v5167
      %6036 = vmatpush1.msra.mxu0 %v5166
      %6037 = vmatprep.subr.mxu0 %v5169
      %6038 = vmatpush1.msra.mxu0 %v5168
      %6039 = vmatprep.subr.mxu0 %v5171
      %6040 = vmatpush1.msra.mxu0 %v5170
      %6041 = vmatprep.subr.mxu0 %v5173
      %6042 = vmatpush1.msra.mxu0 %v5172
      %6043 = vmatprep.subr.mxu0 %v5175
      %6044 = vmatpush1.msra.mxu0 %v5174
      %6045 = vmatprep.subr.mxu0 %v5177
      %6046 = vmatpush1.msra.mxu0 %v5176
      %6047 = vmatprep.subr.mxu0 %v5179
      %6048 = vmatpush1.msra.mxu0 %v5178
      %6049 = vmatprep.subr.mxu0 %v5181
      %6050 = vmatpush1.msra.mxu0 %v5180
      %6051 = vmatprep.subr.mxu0 %v5183
      %6052 = vmatpush1.msra.mxu0 %v5182
      %6053 = vmatprep.subr.mxu0 %v5185
      %6054 = vmatpush1.msra.mxu0 %v5184
      %6055 = vmatprep.subr.mxu0 %v5187
      %6056 = vmatpush1.msra.mxu0 %v5186
      %6057 = vmatprep.subr.mxu0 %v5189
      %6058 = vmatpush1.msra.mxu0 %v5188
      %6059 = vmatprep.subr.mxu0 %v5191
      %6060 = vmatpush1.msra.mxu0 %v5190
      %6061 = vmatprep.subr.mxu0 %v5193
      %6062 = vmatpush1.msra.mxu0 %v5192
      %6063 = vmatprep.subr.mxu0 %v5195
      %6064 = vmatpush1.msra.mxu0 %v5194
      %6065 = vmatprep.subr.mxu0 %v5197
      %6066 = vmatpush1.msra.mxu0 %v5196
      %6067 = vmatprep.subr.mxu0 %v5199
      %6068 = vmatpush1.msra.mxu0 %v5198
      %6069 = vmatprep.subr.mxu0 %v5201
      %6070 = vmatpush1.msra.mxu0 %v5200
      %6071 = vmatprep.mubr.f32.mxu0 %v4637
      %6072 = vmatmul.mubr.f32.gmra.mrb[0].mxu0 %v4636
      %v6073 = vpop.f32.mrb[0].mxu0
      %v6074 = vadd.f32 %v5913, %v6073
      %v6075 = vpop.f32.mrb[0].mxu0
      %v6076 = vadd.f32 %v5915, %v6075
      %6077 = vmatprep.mubr.f32.mxu0 %v4649
      %6078 = vmatmul.mubr.f32.gmra.mrb[0].mxu0 %v4648
      %v6079 = vpop.f32.mrb[0].mxu0
      %v6080 = vadd.f32 %v5919, %v6079
      %v6081 = vpop.f32.mrb[0].mxu0
      %v6082 = vadd.f32 %v5921, %v6081
      %6083 = vmatprep.mubr.f32.mxu0 %v4661
      %6084 = vmatmul.mubr.f32.gmra.mrb[0].mxu0 %v4660
      %v6085 = vpop.f32.mrb[0].mxu0
      %v6086 = vadd.f32 %v5925, %v6085
      %v6087 = vpop.f32.mrb[0].mxu0
      %v6088 = vadd.f32 %v5927, %v6087
      %6089 = vmatprep.mubr.f32.mxu0 %v4673
      %6090 = vmatmul.mubr.f32.gmra.mrb[0].mxu0 %v4672
      %v6091 = vpop.f32.mrb[0].mxu0
      %v6092 = vadd.f32 %v5931, %v6091
      %v6093 = vpop.f32.mrb[0].mxu0
      %v6094 = vadd.f32 %v5933, %v6093
      %6095 = vmatprep.mubr.f32.mxu0 %v4685
      %6096 = vmatmul.mubr.f32.gmra.mrb[0].mxu0 %v4684
      %v6097 = vpop.f32.mrb[0].mxu0
      %v6098 = vadd.f32 %v5937, %v6097
      %v6099 = vpop.f32.mrb[0].mxu0
      %v6100 = vadd.f32 %v5939, %v6099
      %6101 = vmatprep.mubr.f32.mxu0 %v4697
      %6102 = vmatmul.mubr.f32.gmra.mrb[0].mxu0 %v4696
      %v6103 = vpop.f32.mrb[0].mxu0
      %v6104 = vadd.f32 %v5943, %v6103
      %v6105 = vpop.f32.mrb[0].mxu0
      %v6106 = vadd.f32 %v5945, %v6105
      %6107 = vmatprep.mubr.f32.mxu0 %v4709
      %6108 = vmatmul.mubr.f32.gmra.mrb[0].mxu0 %v4708
      %v6109 = vpop.f32.mrb[0].mxu0
      %v6110 = vadd.f32 %v5949, %v6109
      %v6111 = vpop.f32.mrb[0].mxu0
      %v6112 = vadd.f32 %v5951, %v6111
      %6113 = vmatprep.mubr.f32.mxu0 %v4721
      %6114 = vmatmul.mubr.f32.gmra.mrb[0].mxu0 %v4720
      %v6115 = vpop.f32.mrb[0].mxu0
      %v6116 = vadd.f32 %v5955, %v6115
      %v6117 = vpop.f32.mrb[0].mxu0
      %v6118 = vadd.f32 %v5957, %v6117
      %6119 = vmatprep.mubr.f32.mxu0 %v4733
      %6120 = vmatmul.mubr.f32.gmra.mrb[0].mxu0 %v4732
      %v6121 = vpop.f32.mrb[0].mxu0
      %v6122 = vadd.f32 %v5961, %v6121
      %v6123 = vpop.f32.mrb[0].mxu0
      %v6124 = vadd.f32 %v5963, %v6123
      %6125 = vmatprep.mubr.f32.mxu0 %v4745
      %6126 = vmatmul.mubr.f32.gmra.mrb[0].mxu0 %v4744
      %v6127 = vpop.f32.mrb[0].mxu0
      %v6128 = vadd.f32 %v5967, %v6127
      %v6129 = vpop.f32.mrb[0].mxu0
      %v6130 = vadd.f32 %v5969, %v6129
      %6131 = vmatprep.mubr.f32.mxu0 %v4757
      %6132 = vmatmul.mubr.f32.gmra.mrb[0].mxu0 %v4756
      %v6133 = vpop.f32.mrb[0].mxu0
      %v6134 = vadd.f32 %v5973, %v6133
      %v6135 = vpop.f32.mrb[0].mxu0
      %v6136 = vadd.f32 %v5975, %v6135
      %6137 = vmatprep.mubr.f32.mxu0 %v4769
      %6138 = vmatmul.mubr.f32.gmra.mrb[0].mxu0 %v4768
      %v6139 = vpop.f32.mrb[0].mxu0
      %v6140 = vadd.f32 %v5979, %v6139
      %v6141 = vpop.f32.mrb[0].mxu0
      %v6142 = vadd.f32 %v5981, %v6141
      %6143 = vmatprep.mubr.f32.mxu0 %v4781
      %6144 = vmatmul.mubr.f32.gmra.mrb[0].mxu0 %v4780
      %v6145 = vpop.f32.mrb[0].mxu0
      %v6146 = vadd.f32 %v5985, %v6145
      %v6147 = vpop.f32.mrb[0].mxu0
      %v6148 = vadd.f32 %v5987, %v6147
      %6149 = vmatprep.mubr.f32.mxu0 %v4793
      %6150 = vmatmul.mubr.f32.gmra.mrb[0].mxu0 %v4792
      %v6151 = vpop.f32.mrb[0].mxu0
      %v6152 = vadd.f32 %v5991, %v6151
      %v6153 = vpop.f32.mrb[0].mxu0
      %v6154 = vadd.f32 %v5993, %v6153
      %6155 = vmatprep.mubr.f32.mxu0 %v4805
      %6156 = vmatmul.mubr.f32.gmra.mrb[0].mxu0 %v4804
      %v6157 = vpop.f32.mrb[0].mxu0
      %v6158 = vadd.f32 %v5997, %v6157
      %v6159 = vpop.f32.mrb[0].mxu0
      %v6160 = vadd.f32 %v5999, %v6159
      %6161 = vmatprep.mubr.f32.mxu0 %v4817
      %6162 = vmatmul.mubr.f32.gmra.mrb[0].mxu0 %v4816
      %v6163 = vpop.f32.mrb[0].mxu0
      %v6164 = vadd.f32 %v6003, %v6163
      %v6165 = vpop.f32.mrb[0].mxu0
      %v6166 = vadd.f32 %v6005, %v6165
      %6167 = vdwg.mxu0
      %6184 = vrot.lane.b32.xlu0 %v1798, 48
      %v6185 = vpop.permute.xlu0 %6184
      %6186 = vrot.lane.b32.xlu0 %v1799, 48
      %v6187 = vpop.permute.xlu0 %6186
      %6188 = vrot.lane.b32.xlu0 %v1800, 48
      %v6189 = vpop.permute.xlu0 %6188
      %6190 = vrot.lane.b32.xlu0 %v1801, 48
      %v6191 = vpop.permute.xlu0 %6190
      %6192 = vrot.lane.b32.xlu0 %v1802, 48
      %v6193 = vpop.permute.xlu0 %6192
      %6194 = vrot.lane.b32.xlu0 %v1803, 48
      %v6195 = vpop.permute.xlu0 %6194
      %6196 = vrot.lane.b32.xlu0 %v1804, 48
      %v6197 = vpop.permute.xlu0 %6196
      %6198 = vrot.lane.b32.xlu0 %v1805, 48
      %v6199 = vpop.permute.xlu0 %6198
      %6200 = vrot.lane.b32.xlu0 %v1806, 48
      %v6201 = vpop.permute.xlu0 %6200
      %6202 = vrot.lane.b32.xlu0 %v1807, 48
      %v6203 = vpop.permute.xlu0 %6202
      %6204 = vrot.lane.b32.xlu0 %v1808, 48
      %v6205 = vpop.permute.xlu0 %6204
      %6206 = vrot.lane.b32.xlu0 %v1809, 48
      %v6207 = vpop.permute.xlu0 %6206
      %6208 = vrot.lane.b32.xlu0 %v1810, 48
      %v6209 = vpop.permute.xlu0 %6208
      %6210 = vrot.lane.b32.xlu0 %v1811, 48
      %v6211 = vpop.permute.xlu0 %6210
      %6212 = vrot.lane.b32.xlu0 %v1812, 48
      %v6213 = vpop.permute.xlu0 %6212
      %6214 = vrot.lane.b32.xlu0 %v1813, 48
      %v6215 = vpop.permute.xlu0 %6214
      %6232 = vrot.lane.b32.xlu0 %v1798, 96
      %v6233 = vpop.permute.xlu0 %6232
      %6234 = vrot.lane.b32.xlu0 %v1799, 96
      %v6235 = vpop.permute.xlu0 %6234
      %6236 = vrot.lane.b32.xlu0 %v1800, 96
      %v6237 = vpop.permute.xlu0 %6236
      %6238 = vrot.lane.b32.xlu0 %v1801, 96
      %v6239 = vpop.permute.xlu0 %6238
      %6240 = vrot.lane.b32.xlu0 %v1802, 96
      %v6241 = vpop.permute.xlu0 %6240
      %6242 = vrot.lane.b32.xlu0 %v1803, 96
      %v6243 = vpop.permute.xlu0 %6242
      %6244 = vrot.lane.b32.xlu0 %v1804, 96
      %v6245 = vpop.permute.xlu0 %6244
      %6246 = vrot.lane.b32.xlu0 %v1805, 96
      %v6247 = vpop.permute.xlu0 %6246
      %6248 = vrot.lane.b32.xlu0 %v1806, 96
      %v6249 = vpop.permute.xlu0 %6248
      %6250 = vrot.lane.b32.xlu0 %v1807, 96
      %v6251 = vpop.permute.xlu0 %6250
      %6252 = vrot.lane.b32.xlu0 %v1808, 96
      %v6253 = vpop.permute.xlu0 %6252
      %6254 = vrot.lane.b32.xlu0 %v1809, 96
      %v6255 = vpop.permute.xlu0 %6254
      %6256 = vrot.lane.b32.xlu0 %v1810, 96
      %v6257 = vpop.permute.xlu0 %6256
      %6258 = vrot.lane.b32.xlu0 %v1811, 96
      %v6259 = vpop.permute.xlu0 %6258
      %6260 = vrot.lane.b32.xlu0 %v1812, 96
      %v6261 = vpop.permute.xlu0 %6260
      %6262 = vrot.lane.b32.xlu0 %v1813, 96
      %v6263 = vpop.permute.xlu0 %6262
      %6280 = vrot.lane.b32.xlu0 %v1798, 16
      %v6281 = vpop.permute.xlu0 %6280
      %6282 = vrot.lane.b32.xlu0 %v1799, 16
      %v6283 = vpop.permute.xlu0 %6282
      %6284 = vrot.lane.b32.xlu0 %v1800, 16
      %v6285 = vpop.permute.xlu0 %6284
      %6286 = vrot.lane.b32.xlu0 %v1801, 16
      %v6287 = vpop.permute.xlu0 %6286
      %6288 = vrot.lane.b32.xlu0 %v1802, 16
      %v6289 = vpop.permute.xlu0 %6288
      %6290 = vrot.lane.b32.xlu0 %v1803, 16
      %v6291 = vpop.permute.xlu0 %6290
      %6292 = vrot.lane.b32.xlu0 %v1804, 16
      %v6293 = vpop.permute.xlu0 %6292
      %6294 = vrot.lane.b32.xlu0 %v1805, 16
      %v6295 = vpop.permute.xlu0 %6294
      %6296 = vrot.lane.b32.xlu0 %v1806, 16
      %v6297 = vpop.permute.xlu0 %6296
      %6298 = vrot.lane.b32.xlu0 %v1807, 16
      %v6299 = vpop.permute.xlu0 %6298
      %6300 = vrot.lane.b32.xlu0 %v1808, 16
      %v6301 = vpop.permute.xlu0 %6300
      %6302 = vrot.lane.b32.xlu0 %v1809, 16
      %v6303 = vpop.permute.xlu0 %6302
      %6304 = vrot.lane.b32.xlu0 %v1810, 16
      %v6305 = vpop.permute.xlu0 %6304
      %6306 = vrot.lane.b32.xlu0 %v1811, 16
      %v6307 = vpop.permute.xlu0 %6306
      %6308 = vrot.lane.b32.xlu0 %v1812, 16
      %v6309 = vpop.permute.xlu0 %6308
      %6310 = vrot.lane.b32.xlu0 %v1813, 16
      %v6311 = vpop.permute.xlu0 %6310
      %vm6328 = vcmask 392192
      %v6329 = vsel %vm6328, %v1798, %v6185
      %v6330 = vsel %vm6328, %v1799, %v6187
      %v6331 = vsel %vm6328, %v1800, %v6189
      %v6332 = vsel %vm6328, %v1801, %v6191
      %v6333 = vsel %vm6328, %v1802, %v6193
      %v6334 = vsel %vm6328, %v1803, %v6195
      %v6335 = vsel %vm6328, %v1804, %v6197
      %v6336 = vsel %vm6328, %v1805, %v6199
      %v6337 = vsel %vm6328, %v1806, %v6201
      %v6338 = vsel %vm6328, %v1807, %v6203
      %v6339 = vsel %vm6328, %v1808, %v6205
      %v6340 = vsel %vm6328, %v1809, %v6207
      %v6341 = vsel %vm6328, %v1810, %v6209
      %v6342 = vsel %vm6328, %v1811, %v6211
      %v6343 = vsel %vm6328, %v1812, %v6213
      %v6344 = vsel %vm6328, %v1813, %v6215
      %vm6345 = vcmask 785408
      %v6346 = vsel %vm6345, %v6329, %v6233
      %v6347 = vsel %vm6345, %v6330, %v6235
      %v6348 = vsel %vm6345, %v6331, %v6237
      %v6349 = vsel %vm6345, %v6332, %v6239
      %v6350 = vsel %vm6345, %v6333, %v6241
      %v6351 = vsel %vm6345, %v6334, %v6243
      %v6352 = vsel %vm6345, %v6335, %v6245
      %v6353 = vsel %vm6345, %v6336, %v6247
      %v6354 = vsel %vm6345, %v6337, %v6249
      %v6355 = vsel %vm6345, %v6338, %v6251
      %v6356 = vsel %vm6345, %v6339, %v6253
      %v6357 = vsel %vm6345, %v6340, %v6255
      %v6358 = vsel %vm6345, %v6341, %v6257
      %v6359 = vsel %vm6345, %v6342, %v6259
      %v6360 = vsel %vm6345, %v6343, %v6261
      %v6361 = vsel %vm6345, %v6344, %v6263
      %v6362 = vsel %vm431, %v6233, %v6281
      %v6363 = vsel %vm431, %v6235, %v6283
      %v6364 = vsel %vm431, %v6237, %v6285
      %v6365 = vsel %vm431, %v6239, %v6287
      %v6366 = vsel %vm431, %v6241, %v6289
      %v6367 = vsel %vm431, %v6243, %v6291
      %v6368 = vsel %vm431, %v6245, %v6293
      %v6369 = vsel %vm431, %v6247, %v6295
      %v6370 = vsel %vm431, %v6249, %v6297
      %v6371 = vsel %vm431, %v6251, %v6299
      %v6372 = vsel %vm431, %v6253, %v6301
      %v6373 = vsel %vm431, %v6255, %v6303
      %v6374 = vsel %vm431, %v6257, %v6305
      %v6375 = vsel %vm431, %v6259, %v6307
      %v6376 = vsel %vm431, %v6261, %v6309
      %v6377 = vsel %vm431, %v6263, %v6311
      %v6378 = vmul.f32 %v6074, %v6346
      %v6379 = vmul.f32 %v6076, %v6362
      %v6380 = vmul.f32 %v6080, %v6347
      %v6381 = vmul.f32 %v6082, %v6363
      %v6382 = vmul.f32 %v6086, %v6348
      %v6383 = vmul.f32 %v6088, %v6364
      %v6384 = vmul.f32 %v6092, %v6349
      %v6385 = vmul.f32 %v6094, %v6365
      %v6386 = vmul.f32 %v6098, %v6350
      %v6387 = vmul.f32 %v6100, %v6366
      %v6388 = vmul.f32 %v6104, %v6351
      %v6389 = vmul.f32 %v6106, %v6367
      %v6390 = vmul.f32 %v6110, %v6352
      %v6391 = vmul.f32 %v6112, %v6368
      %v6392 = vmul.f32 %v6116, %v6353
      %v6393 = vmul.f32 %v6118, %v6369
      %v6394 = vmul.f32 %v6122, %v6354
      %v6395 = vmul.f32 %v6124, %v6370
      %v6396 = vmul.f32 %v6128, %v6355
      %v6397 = vmul.f32 %v6130, %v6371
      %v6398 = vmul.f32 %v6134, %v6356
      %v6399 = vmul.f32 %v6136, %v6372
      %v6400 = vmul.f32 %v6140, %v6357
      %v6401 = vmul.f32 %v6142, %v6373
      %v6402 = vmul.f32 %v6146, %v6358
      %v6403 = vmul.f32 %v6148, %v6374
      %v6404 = vmul.f32 %v6152, %v6359
      %v6405 = vmul.f32 %v6154, %v6375
      %v6406 = vmul.f32 %v6158, %v6360
      %v6407 = vmul.f32 %v6160, %v6376
      %v6408 = vmul.f32 %v6164, %v6361
      %v6409 = vmul.f32 %v6166, %v6377
      %6410 = vst [vmem:[%s390] sm:$0xff] %v6378
      %vm6411 = vcmask 523264
      %6412 = vst.msk [vmem:[%s390 + $0x8] sm:$0xff] %vm6411, %v6379
      %6413 = vst [vmem:[%s390 + $0x10] sm:$0xff] %v6380
      %6414 = vst.msk [vmem:[%s390 + $0x18] sm:$0xff] %vm6411, %v6381
      %6415 = vst [vmem:[%s390 + $0x20] sm:$0xff] %v6382
      %6416 = vst.msk [vmem:[%s390 + $0x28] sm:$0xff] %vm6411, %v6383
      %6417 = vst [vmem:[%s390 + $0x30] sm:$0xff] %v6384
      %6418 = vst.msk [vmem:[%s390 + $0x38] sm:$0xff] %vm6411, %v6385
      %6419 = vst [vmem:[%s390 + $0x40] sm:$0xff] %v6386
      %6420 = vst.msk [vmem:[%s390 + $0x48] sm:$0xff] %vm6411, %v6387
      %6421 = vst [vmem:[%s390 + $0x50] sm:$0xff] %v6388
      %6422 = vst.msk [vmem:[%s390 + $0x58] sm:$0xff] %vm6411, %v6389
      %6423 = vst [vmem:[%s390 + $0x60] sm:$0xff] %v6390
      %6424 = vst.msk [vmem:[%s390 + $0x68] sm:$0xff] %vm6411, %v6391
      %6425 = vst [vmem:[%s390 + $0x70] sm:$0xff] %v6392
      %6426 = vst.msk [vmem:[%s390 + $0x78] sm:$0xff] %vm6411, %v6393
      %6427 = vst [vmem:[%s390 + $0x80] sm:$0xff] %v6394
      %6428 = vst.msk [vmem:[%s390 + $0x88] sm:$0xff] %vm6411, %v6395
      %6429 = vst [vmem:[%s390 + $0x90] sm:$0xff] %v6396
      %6430 = vst.msk [vmem:[%s390 + $0x98] sm:$0xff] %vm6411, %v6397
      %6431 = vst [vmem:[%s390 + $0xa0] sm:$0xff] %v6398
      %6432 = vst.msk [vmem:[%s390 + $0xa8] sm:$0xff] %vm6411, %v6399
      %6433 = vst [vmem:[%s390 + $0xb0] sm:$0xff] %v6400
      %6434 = vst.msk [vmem:[%s390 + $0xb8] sm:$0xff] %vm6411, %v6401
      %6435 = vst [vmem:[%s390 + $0xc0] sm:$0xff] %v6402
      %6436 = vst.msk [vmem:[%s390 + $0xc8] sm:$0xff] %vm6411, %v6403
      %6437 = vst [vmem:[%s390 + $0xd0] sm:$0xff] %v6404
      %6438 = vst.msk [vmem:[%s390 + $0xd8] sm:$0xff] %vm6411, %v6405
      %6439 = vst [vmem:[%s390 + $0xe0] sm:$0xff] %v6406
      %6440 = vst.msk [vmem:[%s390 + $0xe8] sm:$0xff] %vm6411, %v6407
      %6441 = vst [vmem:[%s390 + $0xf0] sm:$0xff] %v6408
      %6442 = vst.msk [vmem:[%s390 + $0xf8] sm:$0xff] %vm6411, %v6409
      %s6443 = smul.u32 16, %s22
      %p6444 = scmp.lt.s32.totalorder %s6443, 31
      %s6445 = scalar_select %p6444, %s6443, 31
      %s6446 = smul.addr %s6445, 2
      %s6447 = smul.addr %s6446, 8
      %s6448 = scalar_lea.vmem %s11, %s6447
      // Predicated region
      $region65: #{tpu_custom_call.1} parent=63 // pred_check
        %p6449 = pneg %p276
      $region66: #{tpu_custom_call.1} parent=63 // pred_check_branch
        %6451 = sbr.rel (%p6449) target = $region68
      $region67: #{tpu_custom_call.1} parent=63 // pred_region
        %s6452 = smul.u32 16, %s22
      $region68: #{tpu_custom_call.1} parent=63 // pred_fallthru
        _
    $region64: #{tpu_custom_call.1} parent=5 // pred_fallthru
      _
    %p6453 = scmp.le.s32.totalorder 2, %s17
    // Predicated region
    $region69: #{tpu_custom_call.1} parent=5 // pred_check
      %p6454 = pneg %p6453
    $region70: #{tpu_custom_call.1} parent=5 // pred_check_branch
      %6456 = sbr.rel (%p6454) target = $region72
    $region71: #{tpu_custom_call.1} parent=5 // pred_region
      %s6457 = ssub.s32 %s17, 2
      // Predicated region
      $region73: #{tpu_custom_call.1} parent=71 // pred_check
        %p6458 = pneg %p282
      $region74: #{tpu_custom_call.1} parent=71 // pred_check_branch
        %6460 = sbr.rel (%p6458) target = $region76
      $region75: #{tpu_custom_call.1} parent=71 // pred_region
        %s6461 = smul.u32 16, %s23
        %p6462 = scmp.lt.s32.totalorder %s6461, 31
        %s6463 = scalar_select %p6462, %s6461, 31
        %s6464 = smul.addr %s6463, 2
        %s6465 = smul.addr %s6464, 8
        %s6466 = scalar_lea.vmem %s11, %s6465
      $region76: #{tpu_custom_call.1} parent=71 // pred_fallthru
        _
    $region72: #{tpu_custom_call.1} parent=5 // pred_fallthru
      _
  $region6: #{tpu_custom_call.1} parent=0 // loop_footer
    %s21 = sadd.s32 1, %s17
  $region7: #{tpu_custom_call.1} parent=0 // loop_footer_branch
    %16 = sbr.rel target = $region3
  $region8: #{tpu_custom_call.1} parent=0 // loop_exit
    _

</llo_original>
